<compile_context>
chip_gen: v7x
topology: tpu7x:2x2x1
jax: 0.10.0
libtpu: 0.0.40
codegen_flags: <defaults>
</compile_context>

<pallas_src>
import functools

import jax
import jax.numpy as jnp
from jax.experimental import pallas as pl
from jax.experimental.pallas import tpu as pltpu

# ----------------------------- small ViT config -----------------------------
BATCH = 2
IN_CHANS = 3
IMG = 32
PATCH = 16                    # -> 2x2 = 4 patches
EMBED = 64
DEPTH = 2
HEADS = 4
MLP_HIDDEN = 4 * EMBED
NUM_CLASSES = 1
NUM_PATCHES = (IMG // PATCH) ** 2
SEQ = NUM_PATCHES + 1         # + cls token
HEAD_DIM = EMBED // HEADS
HEAD_PAD = 128                # lane-dense classifier output width


# ------------------------------ fused kernel --------------------------------
def _ln(x, g, b, eps=1e-6):
    """LayerNorm over the last dim of an f32 value; g/b are (1, D)."""
    mean = jnp.mean(x, axis=-1, keepdims=True)
    xc = x - mean
    var = jnp.mean(xc * xc, axis=-1, keepdims=True)
    return xc * jax.lax.rsqrt(var + eps) * g + b


def _deit_fused_kernel(
    patches_ref, tok_bias_ref, patch_w_ref,
    ln1_g_ref, ln1_b_ref, qkv_w_ref, qkv_b_ref, proj_w_ref, proj_b_ref,
    ln2_g_ref, ln2_b_ref, fc1_w_ref, fc1_b_ref, fc2_w_ref, fc2_b_ref,
    norm_g_ref, norm_b_ref, head_w_ref, head_b_ref,
    feat_ref, logits_ref,
    attn_scratch,
):
    scale = HEAD_DIM ** -0.5
    bf16 = jnp.bfloat16

    # ---- patch-embed conv (stride = kernel) as a matmul; cls/pos/bias folded
    #      into the precomputed additive slab tok_bias (cls rows have zero
    #      patches, so their matmul contribution is exactly zero). ----
    xf = jnp.dot(patches_ref[...], patch_w_ref[...],
                 preferred_element_type=jnp.float32) + tok_bias_ref[...]   # (B*S, D) f32

    for d in range(DEPTH):
        # ---- attention branch:  x = x + proj(attn(norm1(x))) ----
        h = _ln(xf, ln1_g_ref[d], ln1_b_ref[d])
        qkv = jnp.dot(h.astype(bf16), qkv_w_ref[d],
                      preferred_element_type=jnp.float32) + qkv_b_ref[d]   # (B*S, 3D)

        # heads handled with static slices; Q.K^T folded into dot_general dims
        for b in range(BATCH):
            r0 = b * SEQ
            q_b = (qkv[r0:r0 + SEQ, 0 * EMBED:1 * EMBED] * scale).astype(bf16)
            k_b = qkv[r0:r0 + SEQ, 1 * EMBED:2 * EMBED].astype(bf16)
            v_b = qkv[r0:r0 + SEQ, 2 * EMBED:3 * EMBED].astype(bf16)
            for hh in range(HEADS):
                c0 = hh * HEAD_DIM
                s = jax.lax.dot_general(
                    q_b[:, c0:c0 + HEAD_DIM], k_b[:, c0:c0 + HEAD_DIM],
                    (((1,), (1,)), ((), ())),
                    preferred_element_type=jnp.float32)                    # (S, S)
                s = s - jnp.max(s, axis=-1, keepdims=True)
                p = jnp.exp(s)
                p = p * pl.reciprocal(jnp.sum(p, axis=-1, keepdims=True),
                                      approx=True)
                attn_scratch[r0:r0 + SEQ, c0:c0 + HEAD_DIM] = jnp.dot(
                    p.astype(bf16), v_b[:, c0:c0 + HEAD_DIM],
                    preferred_element_type=jnp.float32)

        o = jnp.dot(attn_scratch[...].astype(bf16), proj_w_ref[d],
                    preferred_element_type=jnp.float32) + proj_b_ref[d]
        xf = xf + o                                   # drop_path == id (eval)

        # ---- MLP branch:  x = x + fc2(gelu(fc1(norm2(x)))) ----
        h = _ln(xf, ln2_g_ref[d], ln2_b_ref[d])
        h = jnp.dot(h.astype(bf16), fc1_w_ref[d],
                    preferred_element_type=jnp.float32) + fc1_b_ref[d]
        # TODO(synk): timm's nn.GELU is exact erf-GELU; tanh approximation is
        # used since lax.erf is not reliably lowered by Mosaic.
        h = jax.nn.gelu(h, approximate=True)
        h = jnp.dot(h.astype(bf16), fc2_w_ref[d],
                    preferred_element_type=jnp.float32) + fc2_b_ref[d]
        xf = xf + h

    # ---- final LayerNorm + lane-dense classifier head on the cls rows only
    #      (LayerNorm is row-wise, so norming just the cls rows is exactly the
    #      timm "norm whole sequence then take [:, 0]" semantics). ----
    for b in range(BATCH):
        row = _ln(xf[b * SEQ:b * SEQ + 1, :], norm_g_ref[...], norm_b_ref[...])
        feat_ref[b:b + 1, :] = row.astype(feat_ref.dtype)
        logits = jnp.dot(row, head_w_ref[...],
                         preferred_element_type=jnp.float32) + head_b_ref[...]
        logits_ref[b:b + 1, :] = logits.astype(logits_ref.dtype)


def _zero_map(nd):
    return lambda i: (0,) * nd


# ------------------------------ model forward -------------------------------
def deit_forward(params, x, return_feature=False):
    """x: (B, C, H, W) NCHW float32."""
    B, C, H, W = x.shape
    Hp, Wp = H // PATCH, W // PATCH
    K = C * PATCH * PATCH

    # patchify (wrapper glue); prepend a zero "patch" row for the cls slot so
    # the in-kernel patch-embed matmul covers all SEQ rows.
    patches = (x.reshape(B, C, Hp, PATCH, Wp, PATCH)
                .transpose(0, 2, 4, 1, 3, 5)
                .reshape(B, Hp * Wp, K))
    patches = jnp.concatenate(
        [jnp.zeros((B, 1, K), patches.dtype), patches], axis=1
    ).reshape(B * SEQ, K).astype(jnp.bfloat16)

    # fold cls token + positional embedding + conv bias into one additive slab
    tok_bias = jnp.concatenate(
        [params["cls_token"].reshape(1, EMBED) + params["pos_embed"][0, :1],
         params["patch_b"].reshape(1, EMBED) + params["pos_embed"][0, 1:]],
        axis=0)                                                     # (S, D)
    tok_bias = jnp.broadcast_to(tok_bias[None], (B, SEQ, EMBED)).reshape(
        B * SEQ, EMBED)

    # lane-dense (128-wide) classifier head; sliced back to NUM_CLASSES below
    head_w = jnp.zeros((EMBED, HEAD_PAD), jnp.float32).at[:, :NUM_CLASSES].set(
        params["fc_w"])
    head_b = jnp.zeros((1, HEAD_PAD), jnp.float32).at[:, :NUM_CLASSES].set(
        params["fc_b"].reshape(1, NUM_CLASSES))

    bf16 = jnp.bfloat16
    inputs = (
        patches, tok_bias, params["patch_w"].astype(bf16),
        params["ln1_g"], params["ln1_b"],
        params["qkv_w"].astype(bf16), params["qkv_b"],
        params["proj_w"].astype(bf16), params["proj_b"],
        params["ln2_g"], params["ln2_b"],
        params["fc1_w"].astype(bf16), params["fc1_b"],
        params["fc2_w"].astype(bf16), params["fc2_b"],
        params["norm_g"], params["norm_b"],
        head_w, head_b,
    )
    in_specs = [pl.BlockSpec(a.shape, _zero_map(a.ndim)) for a in inputs]

    feats, logits = pl.pallas_call(
        _deit_fused_kernel,
        out_shape=(jax.ShapeDtypeStruct((B, EMBED), jnp.float32),
                   jax.ShapeDtypeStruct((B, HEAD_PAD), jnp.float32)),
        grid=(1,),
        in_specs=in_specs,
        out_specs=(pl.BlockSpec((B, EMBED), lambda i: (0, 0)),
                   pl.BlockSpec((B, HEAD_PAD), lambda i: (0, 0))),
        scratch_shapes=[pltpu.VMEM((B * SEQ, EMBED), jnp.float32)],
        compiler_params=pltpu.CompilerParams(
            dimension_semantics=("arbitrary",)),
    )(*inputs)

    if return_feature:
        return feats                                  # 'token' pooling (cls)
    return logits[:, :NUM_CLASSES]


# ------------------------------ parameter init -------------------------------
def init_params(key):
    keys = iter(jax.random.split(key, 32))

    def nrm(shape, std=0.02):
        return std * jax.random.normal(next(keys), shape, jnp.float32)

    # per-block params are stacked along a leading DEPTH dim (indexed in-kernel)
    return {
        "patch_w": nrm((IN_CHANS * PATCH * PATCH, EMBED)),
        "patch_b": jnp.zeros((EMBED,), jnp.float32),
        "cls_token": nrm((1, 1, EMBED)),
        "pos_embed": nrm((1, SEQ, EMBED)),
        "ln1_g": jnp.ones((DEPTH, 1, EMBED), jnp.float32),
        "ln1_b": jnp.zeros((DEPTH, 1, EMBED), jnp.float32),
        "qkv_w": nrm((DEPTH, EMBED, 3 * EMBED)),
        "qkv_b": jnp.zeros((DEPTH, 1, 3 * EMBED), jnp.float32),
        "proj_w": nrm((DEPTH, EMBED, EMBED)),
        "proj_b": jnp.zeros((DEPTH, 1, EMBED), jnp.float32),
        "ln2_g": jnp.ones((DEPTH, 1, EMBED), jnp.float32),
        "ln2_b": jnp.zeros((DEPTH, 1, EMBED), jnp.float32),
        "fc1_w": nrm((DEPTH, EMBED, MLP_HIDDEN)),
        "fc1_b": jnp.zeros((DEPTH, 1, MLP_HIDDEN), jnp.float32),
        "fc2_w": nrm((DEPTH, MLP_HIDDEN, EMBED)),
        "fc2_b": jnp.zeros((DEPTH, 1, EMBED), jnp.float32),
        "norm_g": jnp.ones((1, EMBED), jnp.float32),
        "norm_b": jnp.zeros((1, EMBED), jnp.float32),
        "fc_w": nrm((EMBED, NUM_CLASSES)),
        "fc_b": jnp.zeros((NUM_CLASSES,), jnp.float32),
    }


# ------------------------------------ main -----------------------------------
if __name__ == "__main__":
    key = jax.random.PRNGKey(0)
    pkey, xkey = jax.random.split(key)
    params = init_params(pkey)
    x = jax.random.normal(xkey, (BATCH, IN_CHANS, IMG, IMG), jnp.float32)

    fwd = jax.jit(functools.partial(deit_forward, return_feature=False))
    out = jax.block_until_ready(fwd(params, x))

    assert out.shape == (BATCH, NUM_CLASSES), out.shape
    assert bool(jnp.all(jnp.isfinite(out))), "non-finite output"

    feats = jax.block_until_ready(
        jax.jit(functools.partial(deit_forward, return_feature=True))(params, x))
    assert feats.shape == (BATCH, EMBED), feats.shape
    assert bool(jnp.all(jnp.isfinite(feats))), "non-finite features"

    print("KERNEL_OK")
</pallas_src>

<mosaic_0001>
module attributes {stable_mosaic.version = 11 : i64} {
  func.func @_deit_fused_kernel(%arg0: i32, %arg1: memref<10x768xbf16, #tpu.memory_space<vmem>>, %arg2: memref<10x64xf32, #tpu.memory_space<vmem>>, %arg3: memref<768x64xbf16, #tpu.memory_space<vmem>>, %arg4: memref<2x1x64xf32, #tpu.memory_space<vmem>>, %arg5: memref<2x1x64xf32, #tpu.memory_space<vmem>>, %arg6: memref<2x64x192xbf16, #tpu.memory_space<vmem>>, %arg7: memref<2x1x192xf32, #tpu.memory_space<vmem>>, %arg8: memref<2x64x64xbf16, #tpu.memory_space<vmem>>, %arg9: memref<2x1x64xf32, #tpu.memory_space<vmem>>, %arg10: memref<2x1x64xf32, #tpu.memory_space<vmem>>, %arg11: memref<2x1x64xf32, #tpu.memory_space<vmem>>, %arg12: memref<2x64x256xbf16, #tpu.memory_space<vmem>>, %arg13: memref<2x1x256xf32, #tpu.memory_space<vmem>>, %arg14: memref<2x256x64xbf16, #tpu.memory_space<vmem>>, %arg15: memref<2x1x64xf32, #tpu.memory_space<vmem>>, %arg16: memref<1x64xf32, #tpu.memory_space<vmem>>, %arg17: memref<1x64xf32, #tpu.memory_space<vmem>>, %arg18: memref<64x128xf32, #tpu.memory_space<vmem>>, %arg19: memref<1x128xf32, #tpu.memory_space<vmem>>, %arg20: memref<2x64xf32, #tpu.memory_space<vmem>>, %arg21: memref<2x128xf32, #tpu.memory_space<vmem>>, %arg22: memref<10x64xf32, #tpu.memory_space<vmem>>) attributes {dimension_semantics = [#tpu.dimension_semantics<arbitrary>], iteration_bounds = array<i64: 1>, scalar_prefetch = 0 : i64, scratch_operands = 1 : i64, tpu.core_type = #tpu.core_type<tc>, window_params = [{pipeline_mode = #tpu.pipeline_mode<synchronous>, transform_indices = @transform_0, window_bounds = array<i64: 10, 768>}, {pipeline_mode = #tpu.pipeline_mode<synchronous>, transform_indices = @transform_1, window_bounds = array<i64: 10, 64>}, {pipeline_mode = #tpu.pipeline_mode<synchronous>, transform_indices = @transform_2, window_bounds = array<i64: 768, 64>}, {pipeline_mode = #tpu.pipeline_mode<synchronous>, transform_indices = @transform_3, window_bounds = array<i64: 2, 1, 64>}, {pipeline_mode = #tpu.pipeline_mode<synchronous>, transform_indices = @transform_4, window_bounds = array<i64: 2, 1, 64>}, {pipeline_mode = #tpu.pipeline_mode<synchronous>, transform_indices = @transform_5, window_bounds = array<i64: 2, 64, 192>}, {pipeline_mode = #tpu.pipeline_mode<synchronous>, transform_indices = @transform_6, window_bounds = array<i64: 2, 1, 192>}, {pipeline_mode = #tpu.pipeline_mode<synchronous>, transform_indices = @transform_7, window_bounds = array<i64: 2, 64, 64>}, {pipeline_mode = #tpu.pipeline_mode<synchronous>, transform_indices = @transform_8, window_bounds = array<i64: 2, 1, 64>}, {pipeline_mode = #tpu.pipeline_mode<synchronous>, transform_indices = @transform_9, window_bounds = array<i64: 2, 1, 64>}, {pipeline_mode = #tpu.pipeline_mode<synchronous>, transform_indices = @transform_10, window_bounds = array<i64: 2, 1, 64>}, {pipeline_mode = #tpu.pipeline_mode<synchronous>, transform_indices = @transform_11, window_bounds = array<i64: 2, 64, 256>}, {pipeline_mode = #tpu.pipeline_mode<synchronous>, transform_indices = @transform_12, window_bounds = array<i64: 2, 1, 256>}, {pipeline_mode = #tpu.pipeline_mode<synchronous>, transform_indices = @transform_13, window_bounds = array<i64: 2, 256, 64>}, {pipeline_mode = #tpu.pipeline_mode<synchronous>, transform_indices = @transform_14, window_bounds = array<i64: 2, 1, 64>}, {pipeline_mode = #tpu.pipeline_mode<synchronous>, transform_indices = @transform_15, window_bounds = array<i64: 1, 64>}, {pipeline_mode = #tpu.pipeline_mode<synchronous>, transform_indices = @transform_16, window_bounds = array<i64: 1, 64>}, {pipeline_mode = #tpu.pipeline_mode<synchronous>, transform_indices = @transform_17, window_bounds = array<i64: 64, 128>}, {pipeline_mode = #tpu.pipeline_mode<synchronous>, transform_indices = @transform_18, window_bounds = array<i64: 1, 128>}, {pipeline_mode = #tpu.pipeline_mode<synchronous>, transform_indices = @transform_19, window_bounds = array<i64: 2, 64>}, {pipeline_mode = #tpu.pipeline_mode<synchronous>, transform_indices = @transform_20, window_bounds = array<i64: 2, 128>}]} {
    %c0 = arith.constant 0 : index
    %c0_0 = arith.constant 0 : index
    %0 = vector.load %arg1[%c0, %c0_0] : memref<10x768xbf16, #tpu.memory_space<vmem>>, vector<10x768xbf16>
    %c0_1 = arith.constant 0 : index
    %c0_2 = arith.constant 0 : index
    %1 = vector.load %arg3[%c0_1, %c0_2] : memref<768x64xbf16, #tpu.memory_space<vmem>>, vector<768x64xbf16>
    %cst = arith.constant dense<0.000000e+00> : vector<10x64xf32>
    %2 = tpu.matmul %0, %1, %cst {dimension_numbers = #tpu.dot_dimension_numbers<[1], [0], [0], [1], [0, 0, 1, 1], [], []>} : vector<10x768xbf16>, vector<768x64xbf16>, vector<10x64xf32> -> vector<10x64xf32>
    %c0_3 = arith.constant 0 : index
    %c0_4 = arith.constant 0 : index
    %3 = vector.load %arg2[%c0_3, %c0_4] : memref<10x64xf32, #tpu.memory_space<vmem>>, vector<10x64xf32>
    %4 = arith.addf %2, %3 : vector<10x64xf32>
    %c0_5 = arith.constant 0 : index
    %c0_6 = arith.constant 0 : index
    %c0_7 = arith.constant 0 : index
    %5 = vector.load %arg4[%c0_5, %c0_6, %c0_7] : memref<2x1x64xf32, #tpu.memory_space<vmem>>, vector<1x1x64xf32>
    %6 = vector.shape_cast %5 : vector<1x1x64xf32> to vector<1x64xf32>
    %c0_8 = arith.constant 0 : index
    %c0_9 = arith.constant 0 : index
    %c0_10 = arith.constant 0 : index
    %7 = vector.load %arg5[%c0_8, %c0_9, %c0_10] : memref<2x1x64xf32, #tpu.memory_space<vmem>>, vector<1x1x64xf32>
    %8 = vector.shape_cast %7 : vector<1x1x64xf32> to vector<1x64xf32>
    %cst_11 = arith.constant dense<0.000000e+00> : vector<10xf32>
    %9 = vector.multi_reduction <add>, %4, %cst_11 [1] : vector<10x64xf32> to vector<10xf32>
    %10 = vector.shape_cast %9 : vector<10xf32> to vector<10x1xf32>
    %cst_12 = arith.constant 6.400000e+01 : f32
    %11 = vector.broadcast %cst_12 : f32 to vector<10x1xf32>
    %12 = arith.divf %10, %11 : vector<10x1xf32>
    %13 = vector.broadcast %12 : vector<10x1xf32> to vector<10x64xf32>
    %14 = arith.subf %4, %13 : vector<10x64xf32>
    %15 = arith.mulf %14, %14 : vector<10x64xf32>
    %cst_13 = arith.constant dense<0.000000e+00> : vector<10xf32>
    %16 = vector.multi_reduction <add>, %15, %cst_13 [1] : vector<10x64xf32> to vector<10xf32>
    %17 = vector.shape_cast %16 : vector<10xf32> to vector<10x1xf32>
    %cst_14 = arith.constant 6.400000e+01 : f32
    %18 = vector.broadcast %cst_14 : f32 to vector<10x1xf32>
    %19 = arith.divf %17, %18 : vector<10x1xf32>
    %cst_15 = arith.constant 9.99999997E-7 : f32
    %20 = vector.broadcast %cst_15 : f32 to vector<10x1xf32>
    %21 = arith.addf %19, %20 : vector<10x1xf32>
    %22 = math.rsqrt %21 : vector<10x1xf32>
    %23 = vector.broadcast %22 : vector<10x1xf32> to vector<10x64xf32>
    %24 = arith.mulf %14, %23 : vector<10x64xf32>
    %25 = vector.broadcast %6 : vector<1x64xf32> to vector<10x64xf32>
    %26 = arith.mulf %24, %25 : vector<10x64xf32>
    %27 = vector.broadcast %8 : vector<1x64xf32> to vector<10x64xf32>
    %28 = arith.addf %26, %27 : vector<10x64xf32>
    %29 = arith.truncf %28 : vector<10x64xf32> to vector<10x64xbf16>
    %c0_16 = arith.constant 0 : index
    %c0_17 = arith.constant 0 : index
    %c0_18 = arith.constant 0 : index
    %30 = vector.load %arg6[%c0_16, %c0_17, %c0_18] : memref<2x64x192xbf16, #tpu.memory_space<vmem>>, vector<1x64x192xbf16>
    %31 = vector.shape_cast %30 : vector<1x64x192xbf16> to vector<64x192xbf16>
    %cst_19 = arith.constant dense<0.000000e+00> : vector<10x192xf32>
    %32 = tpu.matmul %29, %31, %cst_19 {dimension_numbers = #tpu.dot_dimension_numbers<[1], [0], [0], [1], [0, 0, 1, 1], [], []>} : vector<10x64xbf16>, vector<64x192xbf16>, vector<10x192xf32> -> vector<10x192xf32>
    %c0_20 = arith.constant 0 : index
    %c0_21 = arith.constant 0 : index
    %c0_22 = arith.constant 0 : index
    %33 = vector.load %arg7[%c0_20, %c0_21, %c0_22] : memref<2x1x192xf32, #tpu.memory_space<vmem>>, vector<1x1x192xf32>
    %34 = vector.shape_cast %33 : vector<1x1x192xf32> to vector<1x192xf32>
    %35 = vector.broadcast %34 : vector<1x192xf32> to vector<10x192xf32>
    %36 = arith.addf %32, %35 : vector<10x192xf32>
    %37 = vector.extract_strided_slice %36 {offsets = [0, 0], sizes = [5, 64], strides = [1, 1]} : vector<10x192xf32> to vector<5x64xf32>
    %cst_23 = arith.constant 2.500000e-01 : f32
    %38 = vector.broadcast %cst_23 : f32 to vector<5x64xf32>
    %39 = arith.mulf %37, %38 : vector<5x64xf32>
    %40 = arith.truncf %39 : vector<5x64xf32> to vector<5x64xbf16>
    %41 = vector.extract_strided_slice %36 {offsets = [0, 64], sizes = [5, 64], strides = [1, 1]} : vector<10x192xf32> to vector<5x64xf32>
    %42 = arith.truncf %41 : vector<5x64xf32> to vector<5x64xbf16>
    %43 = vector.extract_strided_slice %36 {offsets = [0, 128], sizes = [5, 64], strides = [1, 1]} : vector<10x192xf32> to vector<5x64xf32>
    %44 = arith.truncf %43 : vector<5x64xf32> to vector<5x64xbf16>
    %45 = vector.extract_strided_slice %40 {offsets = [0, 0], sizes = [5, 16], strides = [1, 1]} : vector<5x64xbf16> to vector<5x16xbf16>
    %46 = vector.extract_strided_slice %42 {offsets = [0, 0], sizes = [5, 16], strides = [1, 1]} : vector<5x64xbf16> to vector<5x16xbf16>
    %cst_24 = arith.constant dense<0.000000e+00> : vector<5x5xf32>
    %47 = tpu.matmul %45, %46, %cst_24 {dimension_numbers = #tpu.dot_dimension_numbers<[1], [1], [0], [0], [0, 0, 1, 0], [], []>} : vector<5x16xbf16>, vector<5x16xbf16>, vector<5x5xf32> -> vector<5x5xf32>
    %cst_25 = arith.constant dense<0xFF800000> : vector<5xf32>
    %48 = vector.multi_reduction <maximumf>, %47, %cst_25 [1] : vector<5x5xf32> to vector<5xf32>
    %49 = vector.shape_cast %48 : vector<5xf32> to vector<5x1xf32>
    %50 = vector.broadcast %49 : vector<5x1xf32> to vector<5x5xf32>
    %51 = arith.subf %47, %50 : vector<5x5xf32>
    %52 = math.exp %51 : vector<5x5xf32>
    %cst_26 = arith.constant dense<0.000000e+00> : vector<5xf32>
    %53 = vector.multi_reduction <add>, %52, %cst_26 [1] : vector<5x5xf32> to vector<5xf32>
    %54 = vector.shape_cast %53 : vector<5xf32> to vector<5x1xf32>
    %55 = tpu.reciprocal %54 {approx = true} : vector<5x1xf32> -> vector<5x1xf32>
    %56 = vector.broadcast %55 : vector<5x1xf32> to vector<5x5xf32>
    %57 = arith.mulf %52, %56 : vector<5x5xf32>
    %58 = arith.truncf %57 : vector<5x5xf32> to vector<5x5xbf16>
    %59 = vector.extract_strided_slice %44 {offsets = [0, 0], sizes = [5, 16], strides = [1, 1]} : vector<5x64xbf16> to vector<5x16xbf16>
    %cst_27 = arith.constant dense<0.000000e+00> : vector<5x16xf32>
    %60 = tpu.matmul %58, %59, %cst_27 {dimension_numbers = #tpu.dot_dimension_numbers<[1], [0], [0], [1], [0, 0, 1, 1], [], []>} : vector<5x5xbf16>, vector<5x16xbf16>, vector<5x16xf32> -> vector<5x16xf32>
    %c0_28 = arith.constant 0 : index
    %c0_29 = arith.constant 0 : index
    %61 = vector.load %arg22[%c0_28, %c0_29] : memref<10x64xf32, #tpu.memory_space<vmem>>, vector<5x16xf32>
    tpu.vector_store %arg22[%c0_28, %c0_29], %60 {strides = array<i32>} : memref<10x64xf32, #tpu.memory_space<vmem>>, vector<5x16xf32>,
    %62 = vector.extract_strided_slice %40 {offsets = [0, 16], sizes = [5, 16], strides = [1, 1]} : vector<5x64xbf16> to vector<5x16xbf16>
    %63 = vector.extract_strided_slice %42 {offsets = [0, 16], sizes = [5, 16], strides = [1, 1]} : vector<5x64xbf16> to vector<5x16xbf16>
    %cst_30 = arith.constant dense<0.000000e+00> : vector<5x5xf32>
    %64 = tpu.matmul %62, %63, %cst_30 {dimension_numbers = #tpu.dot_dimension_numbers<[1], [1], [0], [0], [0, 0, 1, 0], [], []>} : vector<5x16xbf16>, vector<5x16xbf16>, vector<5x5xf32> -> vector<5x5xf32>
    %cst_31 = arith.constant dense<0xFF800000> : vector<5xf32>
    %65 = vector.multi_reduction <maximumf>, %64, %cst_31 [1] : vector<5x5xf32> to vector<5xf32>
    %66 = vector.shape_cast %65 : vector<5xf32> to vector<5x1xf32>
    %67 = vector.broadcast %66 : vector<5x1xf32> to vector<5x5xf32>
    %68 = arith.subf %64, %67 : vector<5x5xf32>
    %69 = math.exp %68 : vector<5x5xf32>
    %cst_32 = arith.constant dense<0.000000e+00> : vector<5xf32>
    %70 = vector.multi_reduction <add>, %69, %cst_32 [1] : vector<5x5xf32> to vector<5xf32>
    %71 = vector.shape_cast %70 : vector<5xf32> to vector<5x1xf32>
    %72 = tpu.reciprocal %71 {approx = true} : vector<5x1xf32> -> vector<5x1xf32>
    %73 = vector.broadcast %72 : vector<5x1xf32> to vector<5x5xf32>
    %74 = arith.mulf %69, %73 : vector<5x5xf32>
    %75 = arith.truncf %74 : vector<5x5xf32> to vector<5x5xbf16>
    %76 = vector.extract_strided_slice %44 {offsets = [0, 16], sizes = [5, 16], strides = [1, 1]} : vector<5x64xbf16> to vector<5x16xbf16>
    %cst_33 = arith.constant dense<0.000000e+00> : vector<5x16xf32>
    %77 = tpu.matmul %75, %76, %cst_33 {dimension_numbers = #tpu.dot_dimension_numbers<[1], [0], [0], [1], [0, 0, 1, 1], [], []>} : vector<5x5xbf16>, vector<5x16xbf16>, vector<5x16xf32> -> vector<5x16xf32>
    %c0_34 = arith.constant 0 : index
    %c16 = arith.constant 16 : index
    %78 = vector.load %arg22[%c0_34, %c16] : memref<10x64xf32, #tpu.memory_space<vmem>>, vector<5x16xf32>
    tpu.vector_store %arg22[%c0_34, %c16], %77 {strides = array<i32>} : memref<10x64xf32, #tpu.memory_space<vmem>>, vector<5x16xf32>,
    %79 = vector.extract_strided_slice %40 {offsets = [0, 32], sizes = [5, 16], strides = [1, 1]} : vector<5x64xbf16> to vector<5x16xbf16>
    %80 = vector.extract_strided_slice %42 {offsets = [0, 32], sizes = [5, 16], strides = [1, 1]} : vector<5x64xbf16> to vector<5x16xbf16>
    %cst_35 = arith.constant dense<0.000000e+00> : vector<5x5xf32>
    %81 = tpu.matmul %79, %80, %cst_35 {dimension_numbers = #tpu.dot_dimension_numbers<[1], [1], [0], [0], [0, 0, 1, 0], [], []>} : vector<5x16xbf16>, vector<5x16xbf16>, vector<5x5xf32> -> vector<5x5xf32>
    %cst_36 = arith.constant dense<0xFF800000> : vector<5xf32>
    %82 = vector.multi_reduction <maximumf>, %81, %cst_36 [1] : vector<5x5xf32> to vector<5xf32>
    %83 = vector.shape_cast %82 : vector<5xf32> to vector<5x1xf32>
    %84 = vector.broadcast %83 : vector<5x1xf32> to vector<5x5xf32>
    %85 = arith.subf %81, %84 : vector<5x5xf32>
    %86 = math.exp %85 : vector<5x5xf32>
    %cst_37 = arith.constant dense<0.000000e+00> : vector<5xf32>
    %87 = vector.multi_reduction <add>, %86, %cst_37 [1] : vector<5x5xf32> to vector<5xf32>
    %88 = vector.shape_cast %87 : vector<5xf32> to vector<5x1xf32>
    %89 = tpu.reciprocal %88 {approx = true} : vector<5x1xf32> -> vector<5x1xf32>
    %90 = vector.broadcast %89 : vector<5x1xf32> to vector<5x5xf32>
    %91 = arith.mulf %86, %90 : vector<5x5xf32>
    %92 = arith.truncf %91 : vector<5x5xf32> to vector<5x5xbf16>
    %93 = vector.extract_strided_slice %44 {offsets = [0, 32], sizes = [5, 16], strides = [1, 1]} : vector<5x64xbf16> to vector<5x16xbf16>
    %cst_38 = arith.constant dense<0.000000e+00> : vector<5x16xf32>
    %94 = tpu.matmul %92, %93, %cst_38 {dimension_numbers = #tpu.dot_dimension_numbers<[1], [0], [0], [1], [0, 0, 1, 1], [], []>} : vector<5x5xbf16>, vector<5x16xbf16>, vector<5x16xf32> -> vector<5x16xf32>
    %c0_39 = arith.constant 0 : index
    %c32 = arith.constant 32 : index
    %95 = vector.load %arg22[%c0_39, %c32] : memref<10x64xf32, #tpu.memory_space<vmem>>, vector<5x16xf32>
    tpu.vector_store %arg22[%c0_39, %c32], %94 {strides = array<i32>} : memref<10x64xf32, #tpu.memory_space<vmem>>, vector<5x16xf32>,
    %96 = vector.extract_strided_slice %40 {offsets = [0, 48], sizes = [5, 16], strides = [1, 1]} : vector<5x64xbf16> to vector<5x16xbf16>
    %97 = vector.extract_strided_slice %42 {offsets = [0, 48], sizes = [5, 16], strides = [1, 1]} : vector<5x64xbf16> to vector<5x16xbf16>
    %cst_40 = arith.constant dense<0.000000e+00> : vector<5x5xf32>
    %98 = tpu.matmul %96, %97, %cst_40 {dimension_numbers = #tpu.dot_dimension_numbers<[1], [1], [0], [0], [0, 0, 1, 0], [], []>} : vector<5x16xbf16>, vector<5x16xbf16>, vector<5x5xf32> -> vector<5x5xf32>
    %cst_41 = arith.constant dense<0xFF800000> : vector<5xf32>
    %99 = vector.multi_reduction <maximumf>, %98, %cst_41 [1] : vector<5x5xf32> to vector<5xf32>
    %100 = vector.shape_cast %99 : vector<5xf32> to vector<5x1xf32>
    %101 = vector.broadcast %100 : vector<5x1xf32> to vector<5x5xf32>
    %102 = arith.subf %98, %101 : vector<5x5xf32>
    %103 = math.exp %102 : vector<5x5xf32>
    %cst_42 = arith.constant dense<0.000000e+00> : vector<5xf32>
    %104 = vector.multi_reduction <add>, %103, %cst_42 [1] : vector<5x5xf32> to vector<5xf32>
    %105 = vector.shape_cast %104 : vector<5xf32> to vector<5x1xf32>
    %106 = tpu.reciprocal %105 {approx = true} : vector<5x1xf32> -> vector<5x1xf32>
    %107 = vector.broadcast %106 : vector<5x1xf32> to vector<5x5xf32>
    %108 = arith.mulf %103, %107 : vector<5x5xf32>
    %109 = arith.truncf %108 : vector<5x5xf32> to vector<5x5xbf16>
    %110 = vector.extract_strided_slice %44 {offsets = [0, 48], sizes = [5, 16], strides = [1, 1]} : vector<5x64xbf16> to vector<5x16xbf16>
    %cst_43 = arith.constant dense<0.000000e+00> : vector<5x16xf32>
    %111 = tpu.matmul %109, %110, %cst_43 {dimension_numbers = #tpu.dot_dimension_numbers<[1], [0], [0], [1], [0, 0, 1, 1], [], []>} : vector<5x5xbf16>, vector<5x16xbf16>, vector<5x16xf32> -> vector<5x16xf32>
    %c0_44 = arith.constant 0 : index
    %c48 = arith.constant 48 : index
    %112 = vector.load %arg22[%c0_44, %c48] : memref<10x64xf32, #tpu.memory_space<vmem>>, vector<5x16xf32>
    tpu.vector_store %arg22[%c0_44, %c48], %111 {strides = array<i32>} : memref<10x64xf32, #tpu.memory_space<vmem>>, vector<5x16xf32>,
    %113 = vector.extract_strided_slice %36 {offsets = [5, 0], sizes = [5, 64], strides = [1, 1]} : vector<10x192xf32> to vector<5x64xf32>
    %cst_45 = arith.constant 2.500000e-01 : f32
    %114 = vector.broadcast %cst_45 : f32 to vector<5x64xf32>
    %115 = arith.mulf %113, %114 : vector<5x64xf32>
    %116 = arith.truncf %115 : vector<5x64xf32> to vector<5x64xbf16>
    %117 = vector.extract_strided_slice %36 {offsets = [5, 64], sizes = [5, 64], strides = [1, 1]} : vector<10x192xf32> to vector<5x64xf32>
    %118 = arith.truncf %117 : vector<5x64xf32> to vector<5x64xbf16>
    %119 = vector.extract_strided_slice %36 {offsets = [5, 128], sizes = [5, 64], strides = [1, 1]} : vector<10x192xf32> to vector<5x64xf32>
    %120 = arith.truncf %119 : vector<5x64xf32> to vector<5x64xbf16>
    %121 = vector.extract_strided_slice %116 {offsets = [0, 0], sizes = [5, 16], strides = [1, 1]} : vector<5x64xbf16> to vector<5x16xbf16>
    %122 = vector.extract_strided_slice %118 {offsets = [0, 0], sizes = [5, 16], strides = [1, 1]} : vector<5x64xbf16> to vector<5x16xbf16>
    %cst_46 = arith.constant dense<0.000000e+00> : vector<5x5xf32>
    %123 = tpu.matmul %121, %122, %cst_46 {dimension_numbers = #tpu.dot_dimension_numbers<[1], [1], [0], [0], [0, 0, 1, 0], [], []>} : vector<5x16xbf16>, vector<5x16xbf16>, vector<5x5xf32> -> vector<5x5xf32>
    %cst_47 = arith.constant dense<0xFF800000> : vector<5xf32>
    %124 = vector.multi_reduction <maximumf>, %123, %cst_47 [1] : vector<5x5xf32> to vector<5xf32>
    %125 = vector.shape_cast %124 : vector<5xf32> to vector<5x1xf32>
    %126 = vector.broadcast %125 : vector<5x1xf32> to vector<5x5xf32>
    %127 = arith.subf %123, %126 : vector<5x5xf32>
    %128 = math.exp %127 : vector<5x5xf32>
    %cst_48 = arith.constant dense<0.000000e+00> : vector<5xf32>
    %129 = vector.multi_reduction <add>, %128, %cst_48 [1] : vector<5x5xf32> to vector<5xf32>
    %130 = vector.shape_cast %129 : vector<5xf32> to vector<5x1xf32>
    %131 = tpu.reciprocal %130 {approx = true} : vector<5x1xf32> -> vector<5x1xf32>
    %132 = vector.broadcast %131 : vector<5x1xf32> to vector<5x5xf32>
    %133 = arith.mulf %128, %132 : vector<5x5xf32>
    %134 = arith.truncf %133 : vector<5x5xf32> to vector<5x5xbf16>
    %135 = vector.extract_strided_slice %120 {offsets = [0, 0], sizes = [5, 16], strides = [1, 1]} : vector<5x64xbf16> to vector<5x16xbf16>
    %cst_49 = arith.constant dense<0.000000e+00> : vector<5x16xf32>
    %136 = tpu.matmul %134, %135, %cst_49 {dimension_numbers = #tpu.dot_dimension_numbers<[1], [0], [0], [1], [0, 0, 1, 1], [], []>} : vector<5x5xbf16>, vector<5x16xbf16>, vector<5x16xf32> -> vector<5x16xf32>
    %c5 = arith.constant 5 : index
    %c0_50 = arith.constant 0 : index
    %137 = vector.load %arg22[%c5, %c0_50] : memref<10x64xf32, #tpu.memory_space<vmem>>, vector<5x16xf32>
    tpu.vector_store %arg22[%c5, %c0_50], %136 {strides = array<i32>} : memref<10x64xf32, #tpu.memory_space<vmem>>, vector<5x16xf32>,
    %138 = vector.extract_strided_slice %116 {offsets = [0, 16], sizes = [5, 16], strides = [1, 1]} : vector<5x64xbf16> to vector<5x16xbf16>
    %139 = vector.extract_strided_slice %118 {offsets = [0, 16], sizes = [5, 16], strides = [1, 1]} : vector<5x64xbf16> to vector<5x16xbf16>
    %cst_51 = arith.constant dense<0.000000e+00> : vector<5x5xf32>
    %140 = tpu.matmul %138, %139, %cst_51 {dimension_numbers = #tpu.dot_dimension_numbers<[1], [1], [0], [0], [0, 0, 1, 0], [], []>} : vector<5x16xbf16>, vector<5x16xbf16>, vector<5x5xf32> -> vector<5x5xf32>
    %cst_52 = arith.constant dense<0xFF800000> : vector<5xf32>
    %141 = vector.multi_reduction <maximumf>, %140, %cst_52 [1] : vector<5x5xf32> to vector<5xf32>
    %142 = vector.shape_cast %141 : vector<5xf32> to vector<5x1xf32>
    %143 = vector.broadcast %142 : vector<5x1xf32> to vector<5x5xf32>
    %144 = arith.subf %140, %143 : vector<5x5xf32>
    %145 = math.exp %144 : vector<5x5xf32>
    %cst_53 = arith.constant dense<0.000000e+00> : vector<5xf32>
    %146 = vector.multi_reduction <add>, %145, %cst_53 [1] : vector<5x5xf32> to vector<5xf32>
    %147 = vector.shape_cast %146 : vector<5xf32> to vector<5x1xf32>
    %148 = tpu.reciprocal %147 {approx = true} : vector<5x1xf32> -> vector<5x1xf32>
    %149 = vector.broadcast %148 : vector<5x1xf32> to vector<5x5xf32>
    %150 = arith.mulf %145, %149 : vector<5x5xf32>
    %151 = arith.truncf %150 : vector<5x5xf32> to vector<5x5xbf16>
    %152 = vector.extract_strided_slice %120 {offsets = [0, 16], sizes = [5, 16], strides = [1, 1]} : vector<5x64xbf16> to vector<5x16xbf16>
    %cst_54 = arith.constant dense<0.000000e+00> : vector<5x16xf32>
    %153 = tpu.matmul %151, %152, %cst_54 {dimension_numbers = #tpu.dot_dimension_numbers<[1], [0], [0], [1], [0, 0, 1, 1], [], []>} : vector<5x5xbf16>, vector<5x16xbf16>, vector<5x16xf32> -> vector<5x16xf32>
    %c5_55 = arith.constant 5 : index
    %c16_56 = arith.constant 16 : index
    %154 = vector.load %arg22[%c5_55, %c16_56] : memref<10x64xf32, #tpu.memory_space<vmem>>, vector<5x16xf32>
    tpu.vector_store %arg22[%c5_55, %c16_56], %153 {strides = array<i32>} : memref<10x64xf32, #tpu.memory_space<vmem>>, vector<5x16xf32>,
    %155 = vector.extract_strided_slice %116 {offsets = [0, 32], sizes = [5, 16], strides = [1, 1]} : vector<5x64xbf16> to vector<5x16xbf16>
    %156 = vector.extract_strided_slice %118 {offsets = [0, 32], sizes = [5, 16], strides = [1, 1]} : vector<5x64xbf16> to vector<5x16xbf16>
    %cst_57 = arith.constant dense<0.000000e+00> : vector<5x5xf32>
    %157 = tpu.matmul %155, %156, %cst_57 {dimension_numbers = #tpu.dot_dimension_numbers<[1], [1], [0], [0], [0, 0, 1, 0], [], []>} : vector<5x16xbf16>, vector<5x16xbf16>, vector<5x5xf32> -> vector<5x5xf32>
    %cst_58 = arith.constant dense<0xFF800000> : vector<5xf32>
    %158 = vector.multi_reduction <maximumf>, %157, %cst_58 [1] : vector<5x5xf32> to vector<5xf32>
    %159 = vector.shape_cast %158 : vector<5xf32> to vector<5x1xf32>
    %160 = vector.broadcast %159 : vector<5x1xf32> to vector<5x5xf32>
    %161 = arith.subf %157, %160 : vector<5x5xf32>
    %162 = math.exp %161 : vector<5x5xf32>
    %cst_59 = arith.constant dense<0.000000e+00> : vector<5xf32>
    %163 = vector.multi_reduction <add>, %162, %cst_59 [1] : vector<5x5xf32> to vector<5xf32>
    %164 = vector.shape_cast %163 : vector<5xf32> to vector<5x1xf32>
    %165 = tpu.reciprocal %164 {approx = true} : vector<5x1xf32> -> vector<5x1xf32>
    %166 = vector.broadcast %165 : vector<5x1xf32> to vector<5x5xf32>
    %167 = arith.mulf %162, %166 : vector<5x5xf32>
    %168 = arith.truncf %167 : vector<5x5xf32> to vector<5x5xbf16>
    %169 = vector.extract_strided_slice %120 {offsets = [0, 32], sizes = [5, 16], strides = [1, 1]} : vector<5x64xbf16> to vector<5x16xbf16>
    %cst_60 = arith.constant dense<0.000000e+00> : vector<5x16xf32>
    %170 = tpu.matmul %168, %169, %cst_60 {dimension_numbers = #tpu.dot_dimension_numbers<[1], [0], [0], [1], [0, 0, 1, 1], [], []>} : vector<5x5xbf16>, vector<5x16xbf16>, vector<5x16xf32> -> vector<5x16xf32>
    %c5_61 = arith.constant 5 : index
    %c32_62 = arith.constant 32 : index
    %171 = vector.load %arg22[%c5_61, %c32_62] : memref<10x64xf32, #tpu.memory_space<vmem>>, vector<5x16xf32>
    tpu.vector_store %arg22[%c5_61, %c32_62], %170 {strides = array<i32>} : memref<10x64xf32, #tpu.memory_space<vmem>>, vector<5x16xf32>,
    %172 = vector.extract_strided_slice %116 {offsets = [0, 48], sizes = [5, 16], strides = [1, 1]} : vector<5x64xbf16> to vector<5x16xbf16>
    %173 = vector.extract_strided_slice %118 {offsets = [0, 48], sizes = [5, 16], strides = [1, 1]} : vector<5x64xbf16> to vector<5x16xbf16>
    %cst_63 = arith.constant dense<0.000000e+00> : vector<5x5xf32>
    %174 = tpu.matmul %172, %173, %cst_63 {dimension_numbers = #tpu.dot_dimension_numbers<[1], [1], [0], [0], [0, 0, 1, 0], [], []>} : vector<5x16xbf16>, vector<5x16xbf16>, vector<5x5xf32> -> vector<5x5xf32>
    %cst_64 = arith.constant dense<0xFF800000> : vector<5xf32>
    %175 = vector.multi_reduction <maximumf>, %174, %cst_64 [1] : vector<5x5xf32> to vector<5xf32>
    %176 = vector.shape_cast %175 : vector<5xf32> to vector<5x1xf32>
    %177 = vector.broadcast %176 : vector<5x1xf32> to vector<5x5xf32>
    %178 = arith.subf %174, %177 : vector<5x5xf32>
    %179 = math.exp %178 : vector<5x5xf32>
    %cst_65 = arith.constant dense<0.000000e+00> : vector<5xf32>
    %180 = vector.multi_reduction <add>, %179, %cst_65 [1] : vector<5x5xf32> to vector<5xf32>
    %181 = vector.shape_cast %180 : vector<5xf32> to vector<5x1xf32>
    %182 = tpu.reciprocal %181 {approx = true} : vector<5x1xf32> -> vector<5x1xf32>
    %183 = vector.broadcast %182 : vector<5x1xf32> to vector<5x5xf32>
    %184 = arith.mulf %179, %183 : vector<5x5xf32>
    %185 = arith.truncf %184 : vector<5x5xf32> to vector<5x5xbf16>
    %186 = vector.extract_strided_slice %120 {offsets = [0, 48], sizes = [5, 16], strides = [1, 1]} : vector<5x64xbf16> to vector<5x16xbf16>
    %cst_66 = arith.constant dense<0.000000e+00> : vector<5x16xf32>
    %187 = tpu.matmul %185, %186, %cst_66 {dimension_numbers = #tpu.dot_dimension_numbers<[1], [0], [0], [1], [0, 0, 1, 1], [], []>} : vector<5x5xbf16>, vector<5x16xbf16>, vector<5x16xf32> -> vector<5x16xf32>
    %c5_67 = arith.constant 5 : index
    %c48_68 = arith.constant 48 : index
    %188 = vector.load %arg22[%c5_67, %c48_68] : memref<10x64xf32, #tpu.memory_space<vmem>>, vector<5x16xf32>
    tpu.vector_store %arg22[%c5_67, %c48_68], %187 {strides = array<i32>} : memref<10x64xf32, #tpu.memory_space<vmem>>, vector<5x16xf32>,
    %c0_69 = arith.constant 0 : index
    %c0_70 = arith.constant 0 : index
    %189 = vector.load %arg22[%c0_69, %c0_70] : memref<10x64xf32, #tpu.memory_space<vmem>>, vector<10x64xf32>
    %190 = arith.truncf %189 : vector<10x64xf32> to vector<10x64xbf16>
    %c0_71 = arith.constant 0 : index
    %c0_72 = arith.constant 0 : index
    %c0_73 = arith.constant 0 : index
    %191 = vector.load %arg8[%c0_71, %c0_72, %c0_73] : memref<2x64x64xbf16, #tpu.memory_space<vmem>>, vector<1x64x64xbf16>
    %192 = vector.shape_cast %191 : vector<1x64x64xbf16> to vector<64x64xbf16>
    %cst_74 = arith.constant dense<0.000000e+00> : vector<10x64xf32>
    %193 = tpu.matmul %190, %192, %cst_74 {dimension_numbers = #tpu.dot_dimension_numbers<[1], [0], [0], [1], [0, 0, 1, 1], [], []>} : vector<10x64xbf16>, vector<64x64xbf16>, vector<10x64xf32> -> vector<10x64xf32>
    %c0_75 = arith.constant 0 : index
    %c0_76 = arith.constant 0 : index
    %c0_77 = arith.constant 0 : index
    %194 = vector.load %arg9[%c0_75, %c0_76, %c0_77] : memref<2x1x64xf32, #tpu.memory_space<vmem>>, vector<1x1x64xf32>
    %195 = vector.shape_cast %194 : vector<1x1x64xf32> to vector<1x64xf32>
    %196 = vector.broadcast %195 : vector<1x64xf32> to vector<10x64xf32>
    %197 = arith.addf %193, %196 : vector<10x64xf32>
    %198 = arith.addf %4, %197 : vector<10x64xf32>
    %c0_78 = arith.constant 0 : index
    %c0_79 = arith.constant 0 : index
    %c0_80 = arith.constant 0 : index
    %199 = vector.load %arg10[%c0_78, %c0_79, %c0_80] : memref<2x1x64xf32, #tpu.memory_space<vmem>>, vector<1x1x64xf32>
    %200 = vector.shape_cast %199 : vector<1x1x64xf32> to vector<1x64xf32>
    %c0_81 = arith.constant 0 : index
    %c0_82 = arith.constant 0 : index
    %c0_83 = arith.constant 0 : index
    %201 = vector.load %arg11[%c0_81, %c0_82, %c0_83] : memref<2x1x64xf32, #tpu.memory_space<vmem>>, vector<1x1x64xf32>
    %202 = vector.shape_cast %201 : vector<1x1x64xf32> to vector<1x64xf32>
    %cst_84 = arith.constant dense<0.000000e+00> : vector<10xf32>
    %203 = vector.multi_reduction <add>, %198, %cst_84 [1] : vector<10x64xf32> to vector<10xf32>
    %204 = vector.shape_cast %203 : vector<10xf32> to vector<10x1xf32>
    %cst_85 = arith.constant 6.400000e+01 : f32
    %205 = vector.broadcast %cst_85 : f32 to vector<10x1xf32>
    %206 = arith.divf %204, %205 : vector<10x1xf32>
    %207 = vector.broadcast %206 : vector<10x1xf32> to vector<10x64xf32>
    %208 = arith.subf %198, %207 : vector<10x64xf32>
    %209 = arith.mulf %208, %208 : vector<10x64xf32>
    %cst_86 = arith.constant dense<0.000000e+00> : vector<10xf32>
    %210 = vector.multi_reduction <add>, %209, %cst_86 [1] : vector<10x64xf32> to vector<10xf32>
    %211 = vector.shape_cast %210 : vector<10xf32> to vector<10x1xf32>
    %cst_87 = arith.constant 6.400000e+01 : f32
    %212 = vector.broadcast %cst_87 : f32 to vector<10x1xf32>
    %213 = arith.divf %211, %212 : vector<10x1xf32>
    %cst_88 = arith.constant 9.99999997E-7 : f32
    %214 = vector.broadcast %cst_88 : f32 to vector<10x1xf32>
    %215 = arith.addf %213, %214 : vector<10x1xf32>
    %216 = math.rsqrt %215 : vector<10x1xf32>
    %217 = vector.broadcast %216 : vector<10x1xf32> to vector<10x64xf32>
    %218 = arith.mulf %208, %217 : vector<10x64xf32>
    %219 = vector.broadcast %200 : vector<1x64xf32> to vector<10x64xf32>
    %220 = arith.mulf %218, %219 : vector<10x64xf32>
    %221 = vector.broadcast %202 : vector<1x64xf32> to vector<10x64xf32>
    %222 = arith.addf %220, %221 : vector<10x64xf32>
    %223 = arith.truncf %222 : vector<10x64xf32> to vector<10x64xbf16>
    %c0_89 = arith.constant 0 : index
    %c0_90 = arith.constant 0 : index
    %c0_91 = arith.constant 0 : index
    %224 = vector.load %arg12[%c0_89, %c0_90, %c0_91] : memref<2x64x256xbf16, #tpu.memory_space<vmem>>, vector<1x64x256xbf16>
    %225 = vector.shape_cast %224 : vector<1x64x256xbf16> to vector<64x256xbf16>
    %cst_92 = arith.constant dense<0.000000e+00> : vector<10x256xf32>
    %226 = tpu.matmul %223, %225, %cst_92 {dimension_numbers = #tpu.dot_dimension_numbers<[1], [0], [0], [1], [0, 0, 1, 1], [], []>} : vector<10x64xbf16>, vector<64x256xbf16>, vector<10x256xf32> -> vector<10x256xf32>
    %c0_93 = arith.constant 0 : index
    %c0_94 = arith.constant 0 : index
    %c0_95 = arith.constant 0 : index
    %227 = vector.load %arg13[%c0_93, %c0_94, %c0_95] : memref<2x1x256xf32, #tpu.memory_space<vmem>>, vector<1x1x256xf32>
    %228 = vector.shape_cast %227 : vector<1x1x256xf32> to vector<1x256xf32>
    %229 = vector.broadcast %228 : vector<1x256xf32> to vector<10x256xf32>
    %230 = arith.addf %226, %229 : vector<10x256xf32>
    %231 = arith.mulf %230, %230 : vector<10x256xf32>
    %232 = arith.mulf %230, %231 : vector<10x256xf32>
    %cst_96 = arith.constant 4.471500e-02 : f32
    %233 = vector.broadcast %cst_96 : f32 to vector<10x256xf32>
    %234 = arith.mulf %233, %232 : vector<10x256xf32>
    %235 = arith.addf %230, %234 : vector<10x256xf32>
    %cst_97 = arith.constant 0.797884583 : f32
    %236 = vector.broadcast %cst_97 : f32 to vector<10x256xf32>
    %237 = arith.mulf %236, %235 : vector<10x256xf32>
    %238 = math.tanh %237 : vector<10x256xf32>
    %cst_98 = arith.constant 1.000000e+00 : f32
    %239 = vector.broadcast %cst_98 : f32 to vector<10x256xf32>
    %240 = arith.addf %239, %238 : vector<10x256xf32>
    %cst_99 = arith.constant 5.000000e-01 : f32
    %241 = vector.broadcast %cst_99 : f32 to vector<10x256xf32>
    %242 = arith.mulf %241, %240 : vector<10x256xf32>
    %243 = arith.mulf %230, %242 : vector<10x256xf32>
    %244 = arith.truncf %243 : vector<10x256xf32> to vector<10x256xbf16>
    %c0_100 = arith.constant 0 : index
    %c0_101 = arith.constant 0 : index
    %c0_102 = arith.constant 0 : index
    %245 = vector.load %arg14[%c0_100, %c0_101, %c0_102] : memref<2x256x64xbf16, #tpu.memory_space<vmem>>, vector<1x256x64xbf16>
    %246 = vector.shape_cast %245 : vector<1x256x64xbf16> to vector<256x64xbf16>
    %cst_103 = arith.constant dense<0.000000e+00> : vector<10x64xf32>
    %247 = tpu.matmul %244, %246, %cst_103 {dimension_numbers = #tpu.dot_dimension_numbers<[1], [0], [0], [1], [0, 0, 1, 1], [], []>} : vector<10x256xbf16>, vector<256x64xbf16>, vector<10x64xf32> -> vector<10x64xf32>
    %c0_104 = arith.constant 0 : index
    %c0_105 = arith.constant 0 : index
    %c0_106 = arith.constant 0 : index
    %248 = vector.load %arg15[%c0_104, %c0_105, %c0_106] : memref<2x1x64xf32, #tpu.memory_space<vmem>>, vector<1x1x64xf32>
    %249 = vector.shape_cast %248 : vector<1x1x64xf32> to vector<1x64xf32>
    %250 = vector.broadcast %249 : vector<1x64xf32> to vector<10x64xf32>
    %251 = arith.addf %247, %250 : vector<10x64xf32>
    %252 = arith.addf %198, %251 : vector<10x64xf32>
    %c1 = arith.constant 1 : index
    %c0_107 = arith.constant 0 : index
    %c0_108 = arith.constant 0 : index
    %253 = vector.load %arg4[%c1, %c0_107, %c0_108] : memref<2x1x64xf32, #tpu.memory_space<vmem>>, vector<1x1x64xf32>
    %254 = vector.shape_cast %253 : vector<1x1x64xf32> to vector<1x64xf32>
    %c1_109 = arith.constant 1 : index
    %c0_110 = arith.constant 0 : index
    %c0_111 = arith.constant 0 : index
    %255 = vector.load %arg5[%c1_109, %c0_110, %c0_111] : memref<2x1x64xf32, #tpu.memory_space<vmem>>, vector<1x1x64xf32>
    %256 = vector.shape_cast %255 : vector<1x1x64xf32> to vector<1x64xf32>
    %cst_112 = arith.constant dense<0.000000e+00> : vector<10xf32>
    %257 = vector.multi_reduction <add>, %252, %cst_112 [1] : vector<10x64xf32> to vector<10xf32>
    %258 = vector.shape_cast %257 : vector<10xf32> to vector<10x1xf32>
    %cst_113 = arith.constant 6.400000e+01 : f32
    %259 = vector.broadcast %cst_113 : f32 to vector<10x1xf32>
    %260 = arith.divf %258, %259 : vector<10x1xf32>
    %261 = vector.broadcast %260 : vector<10x1xf32> to vector<10x64xf32>
    %262 = arith.subf %252, %261 : vector<10x64xf32>
    %263 = arith.mulf %262, %262 : vector<10x64xf32>
    %cst_114 = arith.constant dense<0.000000e+00> : vector<10xf32>
    %264 = vector.multi_reduction <add>, %263, %cst_114 [1] : vector<10x64xf32> to vector<10xf32>
    %265 = vector.shape_cast %264 : vector<10xf32> to vector<10x1xf32>
    %cst_115 = arith.constant 6.400000e+01 : f32
    %266 = vector.broadcast %cst_115 : f32 to vector<10x1xf32>
    %267 = arith.divf %265, %266 : vector<10x1xf32>
    %cst_116 = arith.constant 9.99999997E-7 : f32
    %268 = vector.broadcast %cst_116 : f32 to vector<10x1xf32>
    %269 = arith.addf %267, %268 : vector<10x1xf32>
    %270 = math.rsqrt %269 : vector<10x1xf32>
    %271 = vector.broadcast %270 : vector<10x1xf32> to vector<10x64xf32>
    %272 = arith.mulf %262, %271 : vector<10x64xf32>
    %273 = vector.broadcast %254 : vector<1x64xf32> to vector<10x64xf32>
    %274 = arith.mulf %272, %273 : vector<10x64xf32>
    %275 = vector.broadcast %256 : vector<1x64xf32> to vector<10x64xf32>
    %276 = arith.addf %274, %275 : vector<10x64xf32>
    %277 = arith.truncf %276 : vector<10x64xf32> to vector<10x64xbf16>
    %c1_117 = arith.constant 1 : index
    %c0_118 = arith.constant 0 : index
    %c0_119 = arith.constant 0 : index
    %278 = vector.load %arg6[%c1_117, %c0_118, %c0_119] : memref<2x64x192xbf16, #tpu.memory_space<vmem>>, vector<1x64x192xbf16>
    %279 = vector.shape_cast %278 : vector<1x64x192xbf16> to vector<64x192xbf16>
    %cst_120 = arith.constant dense<0.000000e+00> : vector<10x192xf32>
    %280 = tpu.matmul %277, %279, %cst_120 {dimension_numbers = #tpu.dot_dimension_numbers<[1], [0], [0], [1], [0, 0, 1, 1], [], []>} : vector<10x64xbf16>, vector<64x192xbf16>, vector<10x192xf32> -> vector<10x192xf32>
    %c1_121 = arith.constant 1 : index
    %c0_122 = arith.constant 0 : index
    %c0_123 = arith.constant 0 : index
    %281 = vector.load %arg7[%c1_121, %c0_122, %c0_123] : memref<2x1x192xf32, #tpu.memory_space<vmem>>, vector<1x1x192xf32>
    %282 = vector.shape_cast %281 : vector<1x1x192xf32> to vector<1x192xf32>
    %283 = vector.broadcast %282 : vector<1x192xf32> to vector<10x192xf32>
    %284 = arith.addf %280, %283 : vector<10x192xf32>
    %285 = vector.extract_strided_slice %284 {offsets = [0, 0], sizes = [5, 64], strides = [1, 1]} : vector<10x192xf32> to vector<5x64xf32>
    %cst_124 = arith.constant 2.500000e-01 : f32
    %286 = vector.broadcast %cst_124 : f32 to vector<5x64xf32>
    %287 = arith.mulf %285, %286 : vector<5x64xf32>
    %288 = arith.truncf %287 : vector<5x64xf32> to vector<5x64xbf16>
    %289 = vector.extract_strided_slice %284 {offsets = [0, 64], sizes = [5, 64], strides = [1, 1]} : vector<10x192xf32> to vector<5x64xf32>
    %290 = arith.truncf %289 : vector<5x64xf32> to vector<5x64xbf16>
    %291 = vector.extract_strided_slice %284 {offsets = [0, 128], sizes = [5, 64], strides = [1, 1]} : vector<10x192xf32> to vector<5x64xf32>
    %292 = arith.truncf %291 : vector<5x64xf32> to vector<5x64xbf16>
    %293 = vector.extract_strided_slice %288 {offsets = [0, 0], sizes = [5, 16], strides = [1, 1]} : vector<5x64xbf16> to vector<5x16xbf16>
    %294 = vector.extract_strided_slice %290 {offsets = [0, 0], sizes = [5, 16], strides = [1, 1]} : vector<5x64xbf16> to vector<5x16xbf16>
    %cst_125 = arith.constant dense<0.000000e+00> : vector<5x5xf32>
    %295 = tpu.matmul %293, %294, %cst_125 {dimension_numbers = #tpu.dot_dimension_numbers<[1], [1], [0], [0], [0, 0, 1, 0], [], []>} : vector<5x16xbf16>, vector<5x16xbf16>, vector<5x5xf32> -> vector<5x5xf32>
    %cst_126 = arith.constant dense<0xFF800000> : vector<5xf32>
    %296 = vector.multi_reduction <maximumf>, %295, %cst_126 [1] : vector<5x5xf32> to vector<5xf32>
    %297 = vector.shape_cast %296 : vector<5xf32> to vector<5x1xf32>
    %298 = vector.broadcast %297 : vector<5x1xf32> to vector<5x5xf32>
    %299 = arith.subf %295, %298 : vector<5x5xf32>
    %300 = math.exp %299 : vector<5x5xf32>
    %cst_127 = arith.constant dense<0.000000e+00> : vector<5xf32>
    %301 = vector.multi_reduction <add>, %300, %cst_127 [1] : vector<5x5xf32> to vector<5xf32>
    %302 = vector.shape_cast %301 : vector<5xf32> to vector<5x1xf32>
    %303 = tpu.reciprocal %302 {approx = true} : vector<5x1xf32> -> vector<5x1xf32>
    %304 = vector.broadcast %303 : vector<5x1xf32> to vector<5x5xf32>
    %305 = arith.mulf %300, %304 : vector<5x5xf32>
    %306 = arith.truncf %305 : vector<5x5xf32> to vector<5x5xbf16>
    %307 = vector.extract_strided_slice %292 {offsets = [0, 0], sizes = [5, 16], strides = [1, 1]} : vector<5x64xbf16> to vector<5x16xbf16>
    %cst_128 = arith.constant dense<0.000000e+00> : vector<5x16xf32>
    %308 = tpu.matmul %306, %307, %cst_128 {dimension_numbers = #tpu.dot_dimension_numbers<[1], [0], [0], [1], [0, 0, 1, 1], [], []>} : vector<5x5xbf16>, vector<5x16xbf16>, vector<5x16xf32> -> vector<5x16xf32>
    %c0_129 = arith.constant 0 : index
    %c0_130 = arith.constant 0 : index
    %309 = vector.load %arg22[%c0_129, %c0_130] : memref<10x64xf32, #tpu.memory_space<vmem>>, vector<5x16xf32>
    tpu.vector_store %arg22[%c0_129, %c0_130], %308 {strides = array<i32>} : memref<10x64xf32, #tpu.memory_space<vmem>>, vector<5x16xf32>,
    %310 = vector.extract_strided_slice %288 {offsets = [0, 16], sizes = [5, 16], strides = [1, 1]} : vector<5x64xbf16> to vector<5x16xbf16>
    %311 = vector.extract_strided_slice %290 {offsets = [0, 16], sizes = [5, 16], strides = [1, 1]} : vector<5x64xbf16> to vector<5x16xbf16>
    %cst_131 = arith.constant dense<0.000000e+00> : vector<5x5xf32>
    %312 = tpu.matmul %310, %311, %cst_131 {dimension_numbers = #tpu.dot_dimension_numbers<[1], [1], [0], [0], [0, 0, 1, 0], [], []>} : vector<5x16xbf16>, vector<5x16xbf16>, vector<5x5xf32> -> vector<5x5xf32>
    %cst_132 = arith.constant dense<0xFF800000> : vector<5xf32>
    %313 = vector.multi_reduction <maximumf>, %312, %cst_132 [1] : vector<5x5xf32> to vector<5xf32>
    %314 = vector.shape_cast %313 : vector<5xf32> to vector<5x1xf32>
    %315 = vector.broadcast %314 : vector<5x1xf32> to vector<5x5xf32>
    %316 = arith.subf %312, %315 : vector<5x5xf32>
    %317 = math.exp %316 : vector<5x5xf32>
    %cst_133 = arith.constant dense<0.000000e+00> : vector<5xf32>
    %318 = vector.multi_reduction <add>, %317, %cst_133 [1] : vector<5x5xf32> to vector<5xf32>
    %319 = vector.shape_cast %318 : vector<5xf32> to vector<5x1xf32>
    %320 = tpu.reciprocal %319 {approx = true} : vector<5x1xf32> -> vector<5x1xf32>
    %321 = vector.broadcast %320 : vector<5x1xf32> to vector<5x5xf32>
    %322 = arith.mulf %317, %321 : vector<5x5xf32>
    %323 = arith.truncf %322 : vector<5x5xf32> to vector<5x5xbf16>
    %324 = vector.extract_strided_slice %292 {offsets = [0, 16], sizes = [5, 16], strides = [1, 1]} : vector<5x64xbf16> to vector<5x16xbf16>
    %cst_134 = arith.constant dense<0.000000e+00> : vector<5x16xf32>
    %325 = tpu.matmul %323, %324, %cst_134 {dimension_numbers = #tpu.dot_dimension_numbers<[1], [0], [0], [1], [0, 0, 1, 1], [], []>} : vector<5x5xbf16>, vector<5x16xbf16>, vector<5x16xf32> -> vector<5x16xf32>
    %c0_135 = arith.constant 0 : index
    %c16_136 = arith.constant 16 : index
    %326 = vector.load %arg22[%c0_135, %c16_136] : memref<10x64xf32, #tpu.memory_space<vmem>>, vector<5x16xf32>
    tpu.vector_store %arg22[%c0_135, %c16_136], %325 {strides = array<i32>} : memref<10x64xf32, #tpu.memory_space<vmem>>, vector<5x16xf32>,
    %327 = vector.extract_strided_slice %288 {offsets = [0, 32], sizes = [5, 16], strides = [1, 1]} : vector<5x64xbf16> to vector<5x16xbf16>
    %328 = vector.extract_strided_slice %290 {offsets = [0, 32], sizes = [5, 16], strides = [1, 1]} : vector<5x64xbf16> to vector<5x16xbf16>
    %cst_137 = arith.constant dense<0.000000e+00> : vector<5x5xf32>
    %329 = tpu.matmul %327, %328, %cst_137 {dimension_numbers = #tpu.dot_dimension_numbers<[1], [1], [0], [0], [0, 0, 1, 0], [], []>} : vector<5x16xbf16>, vector<5x16xbf16>, vector<5x5xf32> -> vector<5x5xf32>
    %cst_138 = arith.constant dense<0xFF800000> : vector<5xf32>
    %330 = vector.multi_reduction <maximumf>, %329, %cst_138 [1] : vector<5x5xf32> to vector<5xf32>
    %331 = vector.shape_cast %330 : vector<5xf32> to vector<5x1xf32>
    %332 = vector.broadcast %331 : vector<5x1xf32> to vector<5x5xf32>
    %333 = arith.subf %329, %332 : vector<5x5xf32>
    %334 = math.exp %333 : vector<5x5xf32>
    %cst_139 = arith.constant dense<0.000000e+00> : vector<5xf32>
    %335 = vector.multi_reduction <add>, %334, %cst_139 [1] : vector<5x5xf32> to vector<5xf32>
    %336 = vector.shape_cast %335 : vector<5xf32> to vector<5x1xf32>
    %337 = tpu.reciprocal %336 {approx = true} : vector<5x1xf32> -> vector<5x1xf32>
    %338 = vector.broadcast %337 : vector<5x1xf32> to vector<5x5xf32>
    %339 = arith.mulf %334, %338 : vector<5x5xf32>
    %340 = arith.truncf %339 : vector<5x5xf32> to vector<5x5xbf16>
    %341 = vector.extract_strided_slice %292 {offsets = [0, 32], sizes = [5, 16], strides = [1, 1]} : vector<5x64xbf16> to vector<5x16xbf16>
    %cst_140 = arith.constant dense<0.000000e+00> : vector<5x16xf32>
    %342 = tpu.matmul %340, %341, %cst_140 {dimension_numbers = #tpu.dot_dimension_numbers<[1], [0], [0], [1], [0, 0, 1, 1], [], []>} : vector<5x5xbf16>, vector<5x16xbf16>, vector<5x16xf32> -> vector<5x16xf32>
    %c0_141 = arith.constant 0 : index
    %c32_142 = arith.constant 32 : index
    %343 = vector.load %arg22[%c0_141, %c32_142] : memref<10x64xf32, #tpu.memory_space<vmem>>, vector<5x16xf32>
    tpu.vector_store %arg22[%c0_141, %c32_142], %342 {strides = array<i32>} : memref<10x64xf32, #tpu.memory_space<vmem>>, vector<5x16xf32>,
    %344 = vector.extract_strided_slice %288 {offsets = [0, 48], sizes = [5, 16], strides = [1, 1]} : vector<5x64xbf16> to vector<5x16xbf16>
    %345 = vector.extract_strided_slice %290 {offsets = [0, 48], sizes = [5, 16], strides = [1, 1]} : vector<5x64xbf16> to vector<5x16xbf16>
    %cst_143 = arith.constant dense<0.000000e+00> : vector<5x5xf32>
    %346 = tpu.matmul %344, %345, %cst_143 {dimension_numbers = #tpu.dot_dimension_numbers<[1], [1], [0], [0], [0, 0, 1, 0], [], []>} : vector<5x16xbf16>, vector<5x16xbf16>, vector<5x5xf32> -> vector<5x5xf32>
    %cst_144 = arith.constant dense<0xFF800000> : vector<5xf32>
    %347 = vector.multi_reduction <maximumf>, %346, %cst_144 [1] : vector<5x5xf32> to vector<5xf32>
    %348 = vector.shape_cast %347 : vector<5xf32> to vector<5x1xf32>
    %349 = vector.broadcast %348 : vector<5x1xf32> to vector<5x5xf32>
    %350 = arith.subf %346, %349 : vector<5x5xf32>
    %351 = math.exp %350 : vector<5x5xf32>
    %cst_145 = arith.constant dense<0.000000e+00> : vector<5xf32>
    %352 = vector.multi_reduction <add>, %351, %cst_145 [1] : vector<5x5xf32> to vector<5xf32>
    %353 = vector.shape_cast %352 : vector<5xf32> to vector<5x1xf32>
    %354 = tpu.reciprocal %353 {approx = true} : vector<5x1xf32> -> vector<5x1xf32>
    %355 = vector.broadcast %354 : vector<5x1xf32> to vector<5x5xf32>
    %356 = arith.mulf %351, %355 : vector<5x5xf32>
    %357 = arith.truncf %356 : vector<5x5xf32> to vector<5x5xbf16>
    %358 = vector.extract_strided_slice %292 {offsets = [0, 48], sizes = [5, 16], strides = [1, 1]} : vector<5x64xbf16> to vector<5x16xbf16>
    %cst_146 = arith.constant dense<0.000000e+00> : vector<5x16xf32>
    %359 = tpu.matmul %357, %358, %cst_146 {dimension_numbers = #tpu.dot_dimension_numbers<[1], [0], [0], [1], [0, 0, 1, 1], [], []>} : vector<5x5xbf16>, vector<5x16xbf16>, vector<5x16xf32> -> vector<5x16xf32>
    %c0_147 = arith.constant 0 : index
    %c48_148 = arith.constant 48 : index
    %360 = vector.load %arg22[%c0_147, %c48_148] : memref<10x64xf32, #tpu.memory_space<vmem>>, vector<5x16xf32>
    tpu.vector_store %arg22[%c0_147, %c48_148], %359 {strides = array<i32>} : memref<10x64xf32, #tpu.memory_space<vmem>>, vector<5x16xf32>,
    %361 = vector.extract_strided_slice %284 {offsets = [5, 0], sizes = [5, 64], strides = [1, 1]} : vector<10x192xf32> to vector<5x64xf32>
    %cst_149 = arith.constant 2.500000e-01 : f32
    %362 = vector.broadcast %cst_149 : f32 to vector<5x64xf32>
    %363 = arith.mulf %361, %362 : vector<5x64xf32>
    %364 = arith.truncf %363 : vector<5x64xf32> to vector<5x64xbf16>
    %365 = vector.extract_strided_slice %284 {offsets = [5, 64], sizes = [5, 64], strides = [1, 1]} : vector<10x192xf32> to vector<5x64xf32>
    %366 = arith.truncf %365 : vector<5x64xf32> to vector<5x64xbf16>
    %367 = vector.extract_strided_slice %284 {offsets = [5, 128], sizes = [5, 64], strides = [1, 1]} : vector<10x192xf32> to vector<5x64xf32>
    %368 = arith.truncf %367 : vector<5x64xf32> to vector<5x64xbf16>
    %369 = vector.extract_strided_slice %364 {offsets = [0, 0], sizes = [5, 16], strides = [1, 1]} : vector<5x64xbf16> to vector<5x16xbf16>
    %370 = vector.extract_strided_slice %366 {offsets = [0, 0], sizes = [5, 16], strides = [1, 1]} : vector<5x64xbf16> to vector<5x16xbf16>
    %cst_150 = arith.constant dense<0.000000e+00> : vector<5x5xf32>
    %371 = tpu.matmul %369, %370, %cst_150 {dimension_numbers = #tpu.dot_dimension_numbers<[1], [1], [0], [0], [0, 0, 1, 0], [], []>} : vector<5x16xbf16>, vector<5x16xbf16>, vector<5x5xf32> -> vector<5x5xf32>
    %cst_151 = arith.constant dense<0xFF800000> : vector<5xf32>
    %372 = vector.multi_reduction <maximumf>, %371, %cst_151 [1] : vector<5x5xf32> to vector<5xf32>
    %373 = vector.shape_cast %372 : vector<5xf32> to vector<5x1xf32>
    %374 = vector.broadcast %373 : vector<5x1xf32> to vector<5x5xf32>
    %375 = arith.subf %371, %374 : vector<5x5xf32>
    %376 = math.exp %375 : vector<5x5xf32>
    %cst_152 = arith.constant dense<0.000000e+00> : vector<5xf32>
    %377 = vector.multi_reduction <add>, %376, %cst_152 [1] : vector<5x5xf32> to vector<5xf32>
    %378 = vector.shape_cast %377 : vector<5xf32> to vector<5x1xf32>
    %379 = tpu.reciprocal %378 {approx = true} : vector<5x1xf32> -> vector<5x1xf32>
    %380 = vector.broadcast %379 : vector<5x1xf32> to vector<5x5xf32>
    %381 = arith.mulf %376, %380 : vector<5x5xf32>
    %382 = arith.truncf %381 : vector<5x5xf32> to vector<5x5xbf16>
    %383 = vector.extract_strided_slice %368 {offsets = [0, 0], sizes = [5, 16], strides = [1, 1]} : vector<5x64xbf16> to vector<5x16xbf16>
    %cst_153 = arith.constant dense<0.000000e+00> : vector<5x16xf32>
    %384 = tpu.matmul %382, %383, %cst_153 {dimension_numbers = #tpu.dot_dimension_numbers<[1], [0], [0], [1], [0, 0, 1, 1], [], []>} : vector<5x5xbf16>, vector<5x16xbf16>, vector<5x16xf32> -> vector<5x16xf32>
    %c5_154 = arith.constant 5 : index
    %c0_155 = arith.constant 0 : index
    %385 = vector.load %arg22[%c5_154, %c0_155] : memref<10x64xf32, #tpu.memory_space<vmem>>, vector<5x16xf32>
    tpu.vector_store %arg22[%c5_154, %c0_155], %384 {strides = array<i32>} : memref<10x64xf32, #tpu.memory_space<vmem>>, vector<5x16xf32>,
    %386 = vector.extract_strided_slice %364 {offsets = [0, 16], sizes = [5, 16], strides = [1, 1]} : vector<5x64xbf16> to vector<5x16xbf16>
    %387 = vector.extract_strided_slice %366 {offsets = [0, 16], sizes = [5, 16], strides = [1, 1]} : vector<5x64xbf16> to vector<5x16xbf16>
    %cst_156 = arith.constant dense<0.000000e+00> : vector<5x5xf32>
    %388 = tpu.matmul %386, %387, %cst_156 {dimension_numbers = #tpu.dot_dimension_numbers<[1], [1], [0], [0], [0, 0, 1, 0], [], []>} : vector<5x16xbf16>, vector<5x16xbf16>, vector<5x5xf32> -> vector<5x5xf32>
    %cst_157 = arith.constant dense<0xFF800000> : vector<5xf32>
    %389 = vector.multi_reduction <maximumf>, %388, %cst_157 [1] : vector<5x5xf32> to vector<5xf32>
    %390 = vector.shape_cast %389 : vector<5xf32> to vector<5x1xf32>
    %391 = vector.broadcast %390 : vector<5x1xf32> to vector<5x5xf32>
    %392 = arith.subf %388, %391 : vector<5x5xf32>
    %393 = math.exp %392 : vector<5x5xf32>
    %cst_158 = arith.constant dense<0.000000e+00> : vector<5xf32>
    %394 = vector.multi_reduction <add>, %393, %cst_158 [1] : vector<5x5xf32> to vector<5xf32>
    %395 = vector.shape_cast %394 : vector<5xf32> to vector<5x1xf32>
    %396 = tpu.reciprocal %395 {approx = true} : vector<5x1xf32> -> vector<5x1xf32>
    %397 = vector.broadcast %396 : vector<5x1xf32> to vector<5x5xf32>
    %398 = arith.mulf %393, %397 : vector<5x5xf32>
    %399 = arith.truncf %398 : vector<5x5xf32> to vector<5x5xbf16>
    %400 = vector.extract_strided_slice %368 {offsets = [0, 16], sizes = [5, 16], strides = [1, 1]} : vector<5x64xbf16> to vector<5x16xbf16>
    %cst_159 = arith.constant dense<0.000000e+00> : vector<5x16xf32>
    %401 = tpu.matmul %399, %400, %cst_159 {dimension_numbers = #tpu.dot_dimension_numbers<[1], [0], [0], [1], [0, 0, 1, 1], [], []>} : vector<5x5xbf16>, vector<5x16xbf16>, vector<5x16xf32> -> vector<5x16xf32>
    %c5_160 = arith.constant 5 : index
    %c16_161 = arith.constant 16 : index
    %402 = vector.load %arg22[%c5_160, %c16_161] : memref<10x64xf32, #tpu.memory_space<vmem>>, vector<5x16xf32>
    tpu.vector_store %arg22[%c5_160, %c16_161], %401 {strides = array<i32>} : memref<10x64xf32, #tpu.memory_space<vmem>>, vector<5x16xf32>,
    %403 = vector.extract_strided_slice %364 {offsets = [0, 32], sizes = [5, 16], strides = [1, 1]} : vector<5x64xbf16> to vector<5x16xbf16>
    %404 = vector.extract_strided_slice %366 {offsets = [0, 32], sizes = [5, 16], strides = [1, 1]} : vector<5x64xbf16> to vector<5x16xbf16>
    %cst_162 = arith.constant dense<0.000000e+00> : vector<5x5xf32>
    %405 = tpu.matmul %403, %404, %cst_162 {dimension_numbers = #tpu.dot_dimension_numbers<[1], [1], [0], [0], [0, 0, 1, 0], [], []>} : vector<5x16xbf16>, vector<5x16xbf16>, vector<5x5xf32> -> vector<5x5xf32>
    %cst_163 = arith.constant dense<0xFF800000> : vector<5xf32>
    %406 = vector.multi_reduction <maximumf>, %405, %cst_163 [1] : vector<5x5xf32> to vector<5xf32>
    %407 = vector.shape_cast %406 : vector<5xf32> to vector<5x1xf32>
    %408 = vector.broadcast %407 : vector<5x1xf32> to vector<5x5xf32>
    %409 = arith.subf %405, %408 : vector<5x5xf32>
    %410 = math.exp %409 : vector<5x5xf32>
    %cst_164 = arith.constant dense<0.000000e+00> : vector<5xf32>
    %411 = vector.multi_reduction <add>, %410, %cst_164 [1] : vector<5x5xf32> to vector<5xf32>
    %412 = vector.shape_cast %411 : vector<5xf32> to vector<5x1xf32>
    %413 = tpu.reciprocal %412 {approx = true} : vector<5x1xf32> -> vector<5x1xf32>
    %414 = vector.broadcast %413 : vector<5x1xf32> to vector<5x5xf32>
    %415 = arith.mulf %410, %414 : vector<5x5xf32>
    %416 = arith.truncf %415 : vector<5x5xf32> to vector<5x5xbf16>
    %417 = vector.extract_strided_slice %368 {offsets = [0, 32], sizes = [5, 16], strides = [1, 1]} : vector<5x64xbf16> to vector<5x16xbf16>
    %cst_165 = arith.constant dense<0.000000e+00> : vector<5x16xf32>
    %418 = tpu.matmul %416, %417, %cst_165 {dimension_numbers = #tpu.dot_dimension_numbers<[1], [0], [0], [1], [0, 0, 1, 1], [], []>} : vector<5x5xbf16>, vector<5x16xbf16>, vector<5x16xf32> -> vector<5x16xf32>
    %c5_166 = arith.constant 5 : index
    %c32_167 = arith.constant 32 : index
    %419 = vector.load %arg22[%c5_166, %c32_167] : memref<10x64xf32, #tpu.memory_space<vmem>>, vector<5x16xf32>
    tpu.vector_store %arg22[%c5_166, %c32_167], %418 {strides = array<i32>} : memref<10x64xf32, #tpu.memory_space<vmem>>, vector<5x16xf32>,
    %420 = vector.extract_strided_slice %364 {offsets = [0, 48], sizes = [5, 16], strides = [1, 1]} : vector<5x64xbf16> to vector<5x16xbf16>
    %421 = vector.extract_strided_slice %366 {offsets = [0, 48], sizes = [5, 16], strides = [1, 1]} : vector<5x64xbf16> to vector<5x16xbf16>
    %cst_168 = arith.constant dense<0.000000e+00> : vector<5x5xf32>
    %422 = tpu.matmul %420, %421, %cst_168 {dimension_numbers = #tpu.dot_dimension_numbers<[1], [1], [0], [0], [0, 0, 1, 0], [], []>} : vector<5x16xbf16>, vector<5x16xbf16>, vector<5x5xf32> -> vector<5x5xf32>
    %cst_169 = arith.constant dense<0xFF800000> : vector<5xf32>
    %423 = vector.multi_reduction <maximumf>, %422, %cst_169 [1] : vector<5x5xf32> to vector<5xf32>
    %424 = vector.shape_cast %423 : vector<5xf32> to vector<5x1xf32>
    %425 = vector.broadcast %424 : vector<5x1xf32> to vector<5x5xf32>
    %426 = arith.subf %422, %425 : vector<5x5xf32>
    %427 = math.exp %426 : vector<5x5xf32>
    %cst_170 = arith.constant dense<0.000000e+00> : vector<5xf32>
    %428 = vector.multi_reduction <add>, %427, %cst_170 [1] : vector<5x5xf32> to vector<5xf32>
    %429 = vector.shape_cast %428 : vector<5xf32> to vector<5x1xf32>
    %430 = tpu.reciprocal %429 {approx = true} : vector<5x1xf32> -> vector<5x1xf32>
    %431 = vector.broadcast %430 : vector<5x1xf32> to vector<5x5xf32>
    %432 = arith.mulf %427, %431 : vector<5x5xf32>
    %433 = arith.truncf %432 : vector<5x5xf32> to vector<5x5xbf16>
    %434 = vector.extract_strided_slice %368 {offsets = [0, 48], sizes = [5, 16], strides = [1, 1]} : vector<5x64xbf16> to vector<5x16xbf16>
    %cst_171 = arith.constant dense<0.000000e+00> : vector<5x16xf32>
    %435 = tpu.matmul %433, %434, %cst_171 {dimension_numbers = #tpu.dot_dimension_numbers<[1], [0], [0], [1], [0, 0, 1, 1], [], []>} : vector<5x5xbf16>, vector<5x16xbf16>, vector<5x16xf32> -> vector<5x16xf32>
    %c5_172 = arith.constant 5 : index
    %c48_173 = arith.constant 48 : index
    %436 = vector.load %arg22[%c5_172, %c48_173] : memref<10x64xf32, #tpu.memory_space<vmem>>, vector<5x16xf32>
    tpu.vector_store %arg22[%c5_172, %c48_173], %435 {strides = array<i32>} : memref<10x64xf32, #tpu.memory_space<vmem>>, vector<5x16xf32>,
    %c0_174 = arith.constant 0 : index
    %c0_175 = arith.constant 0 : index
    %437 = vector.load %arg22[%c0_174, %c0_175] : memref<10x64xf32, #tpu.memory_space<vmem>>, vector<10x64xf32>
    %438 = arith.truncf %437 : vector<10x64xf32> to vector<10x64xbf16>
    %c1_176 = arith.constant 1 : index
    %c0_177 = arith.constant 0 : index
    %c0_178 = arith.constant 0 : index
    %439 = vector.load %arg8[%c1_176, %c0_177, %c0_178] : memref<2x64x64xbf16, #tpu.memory_space<vmem>>, vector<1x64x64xbf16>
    %440 = vector.shape_cast %439 : vector<1x64x64xbf16> to vector<64x64xbf16>
    %cst_179 = arith.constant dense<0.000000e+00> : vector<10x64xf32>
    %441 = tpu.matmul %438, %440, %cst_179 {dimension_numbers = #tpu.dot_dimension_numbers<[1], [0], [0], [1], [0, 0, 1, 1], [], []>} : vector<10x64xbf16>, vector<64x64xbf16>, vector<10x64xf32> -> vector<10x64xf32>
    %c1_180 = arith.constant 1 : index
    %c0_181 = arith.constant 0 : index
    %c0_182 = arith.constant 0 : index
    %442 = vector.load %arg9[%c1_180, %c0_181, %c0_182] : memref<2x1x64xf32, #tpu.memory_space<vmem>>, vector<1x1x64xf32>
    %443 = vector.shape_cast %442 : vector<1x1x64xf32> to vector<1x64xf32>
    %444 = vector.broadcast %443 : vector<1x64xf32> to vector<10x64xf32>
    %445 = arith.addf %441, %444 : vector<10x64xf32>
    %446 = arith.addf %252, %445 : vector<10x64xf32>
    %c1_183 = arith.constant 1 : index
    %c0_184 = arith.constant 0 : index
    %c0_185 = arith.constant 0 : index
    %447 = vector.load %arg10[%c1_183, %c0_184, %c0_185] : memref<2x1x64xf32, #tpu.memory_space<vmem>>, vector<1x1x64xf32>
    %448 = vector.shape_cast %447 : vector<1x1x64xf32> to vector<1x64xf32>
    %c1_186 = arith.constant 1 : index
    %c0_187 = arith.constant 0 : index
    %c0_188 = arith.constant 0 : index
    %449 = vector.load %arg11[%c1_186, %c0_187, %c0_188] : memref<2x1x64xf32, #tpu.memory_space<vmem>>, vector<1x1x64xf32>
    %450 = vector.shape_cast %449 : vector<1x1x64xf32> to vector<1x64xf32>
    %cst_189 = arith.constant dense<0.000000e+00> : vector<10xf32>
    %451 = vector.multi_reduction <add>, %446, %cst_189 [1] : vector<10x64xf32> to vector<10xf32>
    %452 = vector.shape_cast %451 : vector<10xf32> to vector<10x1xf32>
    %cst_190 = arith.constant 6.400000e+01 : f32
    %453 = vector.broadcast %cst_190 : f32 to vector<10x1xf32>
    %454 = arith.divf %452, %453 : vector<10x1xf32>
    %455 = vector.broadcast %454 : vector<10x1xf32> to vector<10x64xf32>
    %456 = arith.subf %446, %455 : vector<10x64xf32>
    %457 = arith.mulf %456, %456 : vector<10x64xf32>
    %cst_191 = arith.constant dense<0.000000e+00> : vector<10xf32>
    %458 = vector.multi_reduction <add>, %457, %cst_191 [1] : vector<10x64xf32> to vector<10xf32>
    %459 = vector.shape_cast %458 : vector<10xf32> to vector<10x1xf32>
    %cst_192 = arith.constant 6.400000e+01 : f32
    %460 = vector.broadcast %cst_192 : f32 to vector<10x1xf32>
    %461 = arith.divf %459, %460 : vector<10x1xf32>
    %cst_193 = arith.constant 9.99999997E-7 : f32
    %462 = vector.broadcast %cst_193 : f32 to vector<10x1xf32>
    %463 = arith.addf %461, %462 : vector<10x1xf32>
    %464 = math.rsqrt %463 : vector<10x1xf32>
    %465 = vector.broadcast %464 : vector<10x1xf32> to vector<10x64xf32>
    %466 = arith.mulf %456, %465 : vector<10x64xf32>
    %467 = vector.broadcast %448 : vector<1x64xf32> to vector<10x64xf32>
    %468 = arith.mulf %466, %467 : vector<10x64xf32>
    %469 = vector.broadcast %450 : vector<1x64xf32> to vector<10x64xf32>
    %470 = arith.addf %468, %469 : vector<10x64xf32>
    %471 = arith.truncf %470 : vector<10x64xf32> to vector<10x64xbf16>
    %c1_194 = arith.constant 1 : index
    %c0_195 = arith.constant 0 : index
    %c0_196 = arith.constant 0 : index
    %472 = vector.load %arg12[%c1_194, %c0_195, %c0_196] : memref<2x64x256xbf16, #tpu.memory_space<vmem>>, vector<1x64x256xbf16>
    %473 = vector.shape_cast %472 : vector<1x64x256xbf16> to vector<64x256xbf16>
    %cst_197 = arith.constant dense<0.000000e+00> : vector<10x256xf32>
    %474 = tpu.matmul %471, %473, %cst_197 {dimension_numbers = #tpu.dot_dimension_numbers<[1], [0], [0], [1], [0, 0, 1, 1], [], []>} : vector<10x64xbf16>, vector<64x256xbf16>, vector<10x256xf32> -> vector<10x256xf32>
    %c1_198 = arith.constant 1 : index
    %c0_199 = arith.constant 0 : index
    %c0_200 = arith.constant 0 : index
    %475 = vector.load %arg13[%c1_198, %c0_199, %c0_200] : memref<2x1x256xf32, #tpu.memory_space<vmem>>, vector<1x1x256xf32>
    %476 = vector.shape_cast %475 : vector<1x1x256xf32> to vector<1x256xf32>
    %477 = vector.broadcast %476 : vector<1x256xf32> to vector<10x256xf32>
    %478 = arith.addf %474, %477 : vector<10x256xf32>
    %479 = arith.mulf %478, %478 : vector<10x256xf32>
    %480 = arith.mulf %478, %479 : vector<10x256xf32>
    %cst_201 = arith.constant 4.471500e-02 : f32
    %481 = vector.broadcast %cst_201 : f32 to vector<10x256xf32>
    %482 = arith.mulf %481, %480 : vector<10x256xf32>
    %483 = arith.addf %478, %482 : vector<10x256xf32>
    %cst_202 = arith.constant 0.797884583 : f32
    %484 = vector.broadcast %cst_202 : f32 to vector<10x256xf32>
    %485 = arith.mulf %484, %483 : vector<10x256xf32>
    %486 = math.tanh %485 : vector<10x256xf32>
    %cst_203 = arith.constant 1.000000e+00 : f32
    %487 = vector.broadcast %cst_203 : f32 to vector<10x256xf32>
    %488 = arith.addf %487, %486 : vector<10x256xf32>
    %cst_204 = arith.constant 5.000000e-01 : f32
    %489 = vector.broadcast %cst_204 : f32 to vector<10x256xf32>
    %490 = arith.mulf %489, %488 : vector<10x256xf32>
    %491 = arith.mulf %478, %490 : vector<10x256xf32>
    %492 = arith.truncf %491 : vector<10x256xf32> to vector<10x256xbf16>
    %c1_205 = arith.constant 1 : index
    %c0_206 = arith.constant 0 : index
    %c0_207 = arith.constant 0 : index
    %493 = vector.load %arg14[%c1_205, %c0_206, %c0_207] : memref<2x256x64xbf16, #tpu.memory_space<vmem>>, vector<1x256x64xbf16>
    %494 = vector.shape_cast %493 : vector<1x256x64xbf16> to vector<256x64xbf16>
    %cst_208 = arith.constant dense<0.000000e+00> : vector<10x64xf32>
    %495 = tpu.matmul %492, %494, %cst_208 {dimension_numbers = #tpu.dot_dimension_numbers<[1], [0], [0], [1], [0, 0, 1, 1], [], []>} : vector<10x256xbf16>, vector<256x64xbf16>, vector<10x64xf32> -> vector<10x64xf32>
    %c1_209 = arith.constant 1 : index
    %c0_210 = arith.constant 0 : index
    %c0_211 = arith.constant 0 : index
    %496 = vector.load %arg15[%c1_209, %c0_210, %c0_211] : memref<2x1x64xf32, #tpu.memory_space<vmem>>, vector<1x1x64xf32>
    %497 = vector.shape_cast %496 : vector<1x1x64xf32> to vector<1x64xf32>
    %498 = vector.broadcast %497 : vector<1x64xf32> to vector<10x64xf32>
    %499 = arith.addf %495, %498 : vector<10x64xf32>
    %500 = arith.addf %446, %499 : vector<10x64xf32>
    %501 = vector.extract_strided_slice %500 {offsets = [0, 0], sizes = [1, 64], strides = [1, 1]} : vector<10x64xf32> to vector<1x64xf32>
    %c0_212 = arith.constant 0 : index
    %c0_213 = arith.constant 0 : index
    %502 = vector.load %arg16[%c0_212, %c0_213] : memref<1x64xf32, #tpu.memory_space<vmem>>, vector<1x64xf32>
    %c0_214 = arith.constant 0 : index
    %c0_215 = arith.constant 0 : index
    %503 = vector.load %arg17[%c0_214, %c0_215] : memref<1x64xf32, #tpu.memory_space<vmem>>, vector<1x64xf32>
    %cst_216 = arith.constant dense<0.000000e+00> : vector<1xf32>
    %504 = vector.multi_reduction <add>, %501, %cst_216 [1] : vector<1x64xf32> to vector<1xf32>
    %505 = vector.shape_cast %504 : vector<1xf32> to vector<1x1xf32>
    %cst_217 = arith.constant 6.400000e+01 : f32
    %506 = vector.broadcast %cst_217 : f32 to vector<1x1xf32>
    %507 = arith.divf %505, %506 : vector<1x1xf32>
    %508 = vector.broadcast %507 : vector<1x1xf32> to vector<1x64xf32>
    %509 = arith.subf %501, %508 : vector<1x64xf32>
    %510 = arith.mulf %509, %509 : vector<1x64xf32>
    %cst_218 = arith.constant dense<0.000000e+00> : vector<1xf32>
    %511 = vector.multi_reduction <add>, %510, %cst_218 [1] : vector<1x64xf32> to vector<1xf32>
    %512 = vector.shape_cast %511 : vector<1xf32> to vector<1x1xf32>
    %cst_219 = arith.constant 6.400000e+01 : f32
    %513 = vector.broadcast %cst_219 : f32 to vector<1x1xf32>
    %514 = arith.divf %512, %513 : vector<1x1xf32>
    %cst_220 = arith.constant 9.99999997E-7 : f32
    %515 = vector.broadcast %cst_220 : f32 to vector<1x1xf32>
    %516 = arith.addf %514, %515 : vector<1x1xf32>
    %517 = math.rsqrt %516 : vector<1x1xf32>
    %518 = vector.broadcast %517 : vector<1x1xf32> to vector<1x64xf32>
    %519 = arith.mulf %509, %518 : vector<1x64xf32>
    %520 = arith.mulf %519, %502 : vector<1x64xf32>
    %521 = arith.addf %520, %503 : vector<1x64xf32>
    %c0_221 = arith.constant 0 : index
    %c0_222 = arith.constant 0 : index
    %522 = vector.load %arg20[%c0_221, %c0_222] : memref<2x64xf32, #tpu.memory_space<vmem>>, vector<1x64xf32>
    tpu.vector_store %arg20[%c0_221, %c0_222], %521 {strides = array<i32>} : memref<2x64xf32, #tpu.memory_space<vmem>>, vector<1x64xf32>,
    %c0_223 = arith.constant 0 : index
    %c0_224 = arith.constant 0 : index
    %523 = vector.load %arg18[%c0_223, %c0_224] : memref<64x128xf32, #tpu.memory_space<vmem>>, vector<64x128xf32>
    %cst_225 = arith.constant dense<0.000000e+00> : vector<1x128xf32>
    %524 = tpu.matmul %521, %523, %cst_225 {dimension_numbers = #tpu.dot_dimension_numbers<[1], [0], [0], [1], [0, 0, 1, 1], [], []>} : vector<1x64xf32>, vector<64x128xf32>, vector<1x128xf32> -> vector<1x128xf32>
    %c0_226 = arith.constant 0 : index
    %c0_227 = arith.constant 0 : index
    %525 = vector.load %arg19[%c0_226, %c0_227] : memref<1x128xf32, #tpu.memory_space<vmem>>, vector<1x128xf32>
    %526 = arith.addf %524, %525 : vector<1x128xf32>
    %c0_228 = arith.constant 0 : index
    %c0_229 = arith.constant 0 : index
    %527 = vector.load %arg21[%c0_228, %c0_229] : memref<2x128xf32, #tpu.memory_space<vmem>>, vector<1x128xf32>
    tpu.vector_store %arg21[%c0_228, %c0_229], %526 {strides = array<i32>} : memref<2x128xf32, #tpu.memory_space<vmem>>, vector<1x128xf32>,
    %528 = vector.extract_strided_slice %500 {offsets = [5, 0], sizes = [1, 64], strides = [1, 1]} : vector<10x64xf32> to vector<1x64xf32>
    %c0_230 = arith.constant 0 : index
    %c0_231 = arith.constant 0 : index
    %529 = vector.load %arg16[%c0_230, %c0_231] : memref<1x64xf32, #tpu.memory_space<vmem>>, vector<1x64xf32>
    %c0_232 = arith.constant 0 : index
    %c0_233 = arith.constant 0 : index
    %530 = vector.load %arg17[%c0_232, %c0_233] : memref<1x64xf32, #tpu.memory_space<vmem>>, vector<1x64xf32>
    %cst_234 = arith.constant dense<0.000000e+00> : vector<1xf32>
    %531 = vector.multi_reduction <add>, %528, %cst_234 [1] : vector<1x64xf32> to vector<1xf32>
    %532 = vector.shape_cast %531 : vector<1xf32> to vector<1x1xf32>
    %cst_235 = arith.constant 6.400000e+01 : f32
    %533 = vector.broadcast %cst_235 : f32 to vector<1x1xf32>
    %534 = arith.divf %532, %533 : vector<1x1xf32>
    %535 = vector.broadcast %534 : vector<1x1xf32> to vector<1x64xf32>
    %536 = arith.subf %528, %535 : vector<1x64xf32>
    %537 = arith.mulf %536, %536 : vector<1x64xf32>
    %cst_236 = arith.constant dense<0.000000e+00> : vector<1xf32>
    %538 = vector.multi_reduction <add>, %537, %cst_236 [1] : vector<1x64xf32> to vector<1xf32>
    %539 = vector.shape_cast %538 : vector<1xf32> to vector<1x1xf32>
    %cst_237 = arith.constant 6.400000e+01 : f32
    %540 = vector.broadcast %cst_237 : f32 to vector<1x1xf32>
    %541 = arith.divf %539, %540 : vector<1x1xf32>
    %cst_238 = arith.constant 9.99999997E-7 : f32
    %542 = vector.broadcast %cst_238 : f32 to vector<1x1xf32>
    %543 = arith.addf %541, %542 : vector<1x1xf32>
    %544 = math.rsqrt %543 : vector<1x1xf32>
    %545 = vector.broadcast %544 : vector<1x1xf32> to vector<1x64xf32>
    %546 = arith.mulf %536, %545 : vector<1x64xf32>
    %547 = arith.mulf %546, %529 : vector<1x64xf32>
    %548 = arith.addf %547, %530 : vector<1x64xf32>
    %c1_239 = arith.constant 1 : index
    %c0_240 = arith.constant 0 : index
    %549 = vector.load %arg20[%c1_239, %c0_240] : memref<2x64xf32, #tpu.memory_space<vmem>>, vector<1x64xf32>
    tpu.vector_store %arg20[%c1_239, %c0_240], %548 {strides = array<i32>} : memref<2x64xf32, #tpu.memory_space<vmem>>, vector<1x64xf32>,
    %c0_241 = arith.constant 0 : index
    %c0_242 = arith.constant 0 : index
    %550 = vector.load %arg18[%c0_241, %c0_242] : memref<64x128xf32, #tpu.memory_space<vmem>>, vector<64x128xf32>
    %cst_243 = arith.constant dense<0.000000e+00> : vector<1x128xf32>
    %551 = tpu.matmul %548, %550, %cst_243 {dimension_numbers = #tpu.dot_dimension_numbers<[1], [0], [0], [1], [0, 0, 1, 1], [], []>} : vector<1x64xf32>, vector<64x128xf32>, vector<1x128xf32> -> vector<1x128xf32>
    %c0_244 = arith.constant 0 : index
    %c0_245 = arith.constant 0 : index
    %552 = vector.load %arg19[%c0_244, %c0_245] : memref<1x128xf32, #tpu.memory_space<vmem>>, vector<1x128xf32>
    %553 = arith.addf %551, %552 : vector<1x128xf32>
    %c1_246 = arith.constant 1 : index
    %c0_247 = arith.constant 0 : index
    %554 = vector.load %arg21[%c1_246, %c0_247] : memref<2x128xf32, #tpu.memory_space<vmem>>, vector<1x128xf32>
    tpu.vector_store %arg21[%c1_246, %c0_247], %553 {strides = array<i32>} : memref<2x128xf32, #tpu.memory_space<vmem>>, vector<1x128xf32>,
    return
  }
  func.func @transform_0(%arg0: i32) -> (i32, i32) {
    %c0_i32 = arith.constant 0 : i32
    %c0_i32_0 = arith.constant 0 : i32
    %c0_i32_1 = arith.constant 0 : i32
    return %c0_i32, %c0_i32_0 : i32, i32
  }
  func.func @transform_1(%arg0: i32) -> (i32, i32) {
    %c0_i32 = arith.constant 0 : i32
    %c0_i32_0 = arith.constant 0 : i32
    %c0_i32_1 = arith.constant 0 : i32
    return %c0_i32, %c0_i32_0 : i32, i32
  }
  func.func @transform_2(%arg0: i32) -> (i32, i32) {
    %c0_i32 = arith.constant 0 : i32
    %c0_i32_0 = arith.constant 0 : i32
    %c0_i32_1 = arith.constant 0 : i32
    return %c0_i32, %c0_i32_0 : i32, i32
  }
  func.func @transform_3(%arg0: i32) -> (i32, i32, i32) {
    %c0_i32 = arith.constant 0 : i32
    %c0_i32_0 = arith.constant 0 : i32
    %c0_i32_1 = arith.constant 0 : i32
    %c0_i32_2 = arith.constant 0 : i32
    return %c0_i32, %c0_i32_0, %c0_i32_1 : i32, i32, i32
  }
  func.func @transform_4(%arg0: i32) -> (i32, i32, i32) {
    %c0_i32 = arith.constant 0 : i32
    %c0_i32_0 = arith.constant 0 : i32
    %c0_i32_1 = arith.constant 0 : i32
    %c0_i32_2 = arith.constant 0 : i32
    return %c0_i32, %c0_i32_0, %c0_i32_1 : i32, i32, i32
  }
  func.func @transform_5(%arg0: i32) -> (i32, i32, i32) {
    %c0_i32 = arith.constant 0 : i32
    %c0_i32_0 = arith.constant 0 : i32
    %c0_i32_1 = arith.constant 0 : i32
    %c0_i32_2 = arith.constant 0 : i32
    return %c0_i32, %c0_i32_0, %c0_i32_1 : i32, i32, i32
  }
  func.func @transform_6(%arg0: i32) -> (i32, i32, i32) {
    %c0_i32 = arith.constant 0 : i32
    %c0_i32_0 = arith.constant 0 : i32
    %c0_i32_1 = arith.constant 0 : i32
    %c0_i32_2 = arith.constant 0 : i32
    return %c0_i32, %c0_i32_0, %c0_i32_1 : i32, i32, i32
  }
  func.func @transform_7(%arg0: i32) -> (i32, i32, i32) {
    %c0_i32 = arith.constant 0 : i32
    %c0_i32_0 = arith.constant 0 : i32
    %c0_i32_1 = arith.constant 0 : i32
    %c0_i32_2 = arith.constant 0 : i32
    return %c0_i32, %c0_i32_0, %c0_i32_1 : i32, i32, i32
  }
  func.func @transform_8(%arg0: i32) -> (i32, i32, i32) {
    %c0_i32 = arith.constant 0 : i32
    %c0_i32_0 = arith.constant 0 : i32
    %c0_i32_1 = arith.constant 0 : i32
    %c0_i32_2 = arith.constant 0 : i32
    return %c0_i32, %c0_i32_0, %c0_i32_1 : i32, i32, i32
  }
  func.func @transform_9(%arg0: i32) -> (i32, i32, i32) {
    %c0_i32 = arith.constant 0 : i32
    %c0_i32_0 = arith.constant 0 : i32
    %c0_i32_1 = arith.constant 0 : i32
    %c0_i32_2 = arith.constant 0 : i32
    return %c0_i32, %c0_i32_0, %c0_i32_1 : i32, i32, i32
  }
  func.func @transform_10(%arg0: i32) -> (i32, i32, i32) {
    %c0_i32 = arith.constant 0 : i32
    %c0_i32_0 = arith.constant 0 : i32
    %c0_i32_1 = arith.constant 0 : i32
    %c0_i32_2 = arith.constant 0 : i32
    return %c0_i32, %c0_i32_0, %c0_i32_1 : i32, i32, i32
  }
  func.func @transform_11(%arg0: i32) -> (i32, i32, i32) {
    %c0_i32 = arith.constant 0 : i32
    %c0_i32_0 = arith.constant 0 : i32
    %c0_i32_1 = arith.constant 0 : i32
    %c0_i32_2 = arith.constant 0 : i32
    return %c0_i32, %c0_i32_0, %c0_i32_1 : i32, i32, i32
  }
  func.func @transform_12(%arg0: i32) -> (i32, i32, i32) {
    %c0_i32 = arith.constant 0 : i32
    %c0_i32_0 = arith.constant 0 : i32
    %c0_i32_1 = arith.constant 0 : i32
    %c0_i32_2 = arith.constant 0 : i32
    return %c0_i32, %c0_i32_0, %c0_i32_1 : i32, i32, i32
  }
  func.func @transform_13(%arg0: i32) -> (i32, i32, i32) {
    %c0_i32 = arith.constant 0 : i32
    %c0_i32_0 = arith.constant 0 : i32
    %c0_i32_1 = arith.constant 0 : i32
    %c0_i32_2 = arith.constant 0 : i32
    return %c0_i32, %c0_i32_0, %c0_i32_1 : i32, i32, i32
  }
  func.func @transform_14(%arg0: i32) -> (i32, i32, i32) {
    %c0_i32 = arith.constant 0 : i32
    %c0_i32_0 = arith.constant 0 : i32
    %c0_i32_1 = arith.constant 0 : i32
    %c0_i32_2 = arith.constant 0 : i32
    return %c0_i32, %c0_i32_0, %c0_i32_1 : i32, i32, i32
  }
  func.func @transform_15(%arg0: i32) -> (i32, i32) {
    %c0_i32 = arith.constant 0 : i32
    %c0_i32_0 = arith.constant 0 : i32
    %c0_i32_1 = arith.constant 0 : i32
    return %c0_i32, %c0_i32_0 : i32, i32
  }
  func.func @transform_16(%arg0: i32) -> (i32, i32) {
    %c0_i32 = arith.constant 0 : i32
    %c0_i32_0 = arith.constant 0 : i32
    %c0_i32_1 = arith.constant 0 : i32
    return %c0_i32, %c0_i32_0 : i32, i32
  }
  func.func @transform_17(%arg0: i32) -> (i32, i32) {
    %c0_i32 = arith.constant 0 : i32
    %c0_i32_0 = arith.constant 0 : i32
    %c0_i32_1 = arith.constant 0 : i32
    return %c0_i32, %c0_i32_0 : i32, i32
  }
  func.func @transform_18(%arg0: i32) -> (i32, i32) {
    %c0_i32 = arith.constant 0 : i32
    %c0_i32_0 = arith.constant 0 : i32
    %c0_i32_1 = arith.constant 0 : i32
    return %c0_i32, %c0_i32_0 : i32, i32
  }
  func.func @transform_19(%arg0: i32) -> (i32, i32) {
    %c0_i32 = arith.constant 0 : i32
    %c0_i32_0 = arith.constant 0 : i32
    %c0_i32_1 = arith.constant 0 : i32
    return %c0_i32, %c0_i32_0 : i32, i32
  }
  func.func @transform_20(%arg0: i32) -> (i32, i32) {
    %c0_i32 = arith.constant 0 : i32
    %c0_i32_0 = arith.constant 0 : i32
    %c0_i32_1 = arith.constant 0 : i32
    return %c0_i32, %c0_i32_0 : i32, i32
  }
}

</mosaic_0001>

<llo_original>
// kernel: deit_forward.1
$region0: #{deit_forward.1}
  #allocation0 [shape = 'u32[]', space=smem, size = 0x4, offset = 0x4, fixed_abs, tag = 'smem constant byte address 0x4 - core index']
  #allocation1 [shape = 'u32[144,128]{1,0:T(1,128)}', space=vmem, size = 0x12000, scoped, tag = 'internal scratch']
  #allocation2 [shape = 'f32[10,64]{1,0:T(8,128)}', space=vmem, size = 0x2000, scoped, tag = 'scratch operand']
  %s0 = inlined_call_operand.vmem [shape: bf16[10,768], index: 0, kind: input, shape index: {}]
  %s1 = inlined_call_operand.vmem [shape: f32[10,64], index: 1, kind: input, shape index: {}]
  %s2 = inlined_call_operand.vmem [shape: bf16[768,64], index: 2, kind: input, shape index: {}]
  %s3 = inlined_call_operand.vmem [shape: f32[2,1,64], index: 3, kind: input, shape index: {}]
  %s4 = inlined_call_operand.vmem [shape: f32[2,1,64], index: 4, kind: input, shape index: {}]
  %s5 = inlined_call_operand.vmem [shape: bf16[2,64,192], index: 5, kind: input, shape index: {}]
  %s6 = inlined_call_operand.vmem [shape: f32[2,1,192], index: 6, kind: input, shape index: {}]
  %s7 = inlined_call_operand.vmem [shape: bf16[2,64,64], index: 7, kind: input, shape index: {}]
  %s8 = inlined_call_operand.vmem [shape: f32[2,1,64], index: 8, kind: input, shape index: {}]
  %s9 = inlined_call_operand.vmem [shape: f32[2,1,64], index: 9, kind: input, shape index: {}]
  %s10 = inlined_call_operand.vmem [shape: f32[2,1,64], index: 10, kind: input, shape index: {}]
  %s11 = inlined_call_operand.vmem [shape: bf16[2,64,256], index: 11, kind: input, shape index: {}]
  %s12 = inlined_call_operand.vmem [shape: f32[2,1,256], index: 12, kind: input, shape index: {}]
  %s13 = inlined_call_operand.vmem [shape: bf16[2,256,64], index: 13, kind: input, shape index: {}]
  %s14 = inlined_call_operand.vmem [shape: f32[2,1,64], index: 14, kind: input, shape index: {}]
  %s15 = inlined_call_operand.vmem [shape: f32[1,64], index: 15, kind: input, shape index: {}]
  %s16 = inlined_call_operand.vmem [shape: f32[1,64], index: 16, kind: input, shape index: {}]
  %s17 = inlined_call_operand.vmem [shape: f32[64,128], index: 17, kind: input, shape index: {}]
  %s18 = inlined_call_operand.vmem [shape: f32[1,128], index: 18, kind: input, shape index: {}]
  %s19 = inlined_call_operand.hbm [shape: f32[2,64], index: 19, kind: output, shape index: {0}]
  %s20 = inlined_call_operand.vmem [shape: f32[2,128], index: 20, kind: output, shape index: {1}]
  %21 = xla_tuple %s19, %s20
  %s22 = sld [smem:[#allocation0]]
  $region94: #{deit_forward.1} parent=0
    _
  %s24 = ssub.s32 1, %s22
  %s25 = scalar_select 0, %s24, %s22
  $region1: #{deit_forward.1} parent=0
    #allocation3 [shape = 'u8[1024]{0}', space=vmem, size = 0x400, scoped, tag = 'output window, operand 0, single buffered']
    #allocation4 [shape = 's32[1]{0}', space=sflag, size = 0x4, scoped, tag = 'scoped memory for deit_forward.1']
    %26 = vsyncpa [#allocation4], 0
    // Predicated region
    $region2: #{deit_forward.1} parent=1 // pred_check
      _
    $region3: #{deit_forward.1} parent=1 // pred_check_branch
      %28 = sbr.rel (0) target = $region5
    $region4: #{deit_forward.1} parent=1 // pred_region
      _
    $region5: #{deit_forward.1} parent=1 // pred_fallthru
      _
    // Predicated region
    $region6: #{deit_forward.1} parent=1 // pred_check
      _
    $region7: #{deit_forward.1} parent=1 // pred_check_branch
      %30 = sbr.rel (0) target = $region9
    $region8: #{deit_forward.1} parent=1 // pred_region
      _
    $region9: #{deit_forward.1} parent=1 // pred_fallthru
      _
    // Predicated region
    $region10: #{deit_forward.1} parent=1 // pred_check
      _
    $region11: #{deit_forward.1} parent=1 // pred_check_branch
      %32 = sbr.rel (0) target = $region13
    $region12: #{deit_forward.1} parent=1 // pred_region
      _
    $region13: #{deit_forward.1} parent=1 // pred_fallthru
      _
    // Predicated region
    $region14: #{deit_forward.1} parent=1 // pred_check
      _
    $region15: #{deit_forward.1} parent=1 // pred_check_branch
      %34 = sbr.rel (0) target = $region17
    $region16: #{deit_forward.1} parent=1 // pred_region
      _
    $region17: #{deit_forward.1} parent=1 // pred_fallthru
      _
    // Predicated region
    $region18: #{deit_forward.1} parent=1 // pred_check
      _
    $region19: #{deit_forward.1} parent=1 // pred_check_branch
      %36 = sbr.rel (0) target = $region21
    $region20: #{deit_forward.1} parent=1 // pred_region
      _
    $region21: #{deit_forward.1} parent=1 // pred_fallthru
      _
    // Predicated region
    $region22: #{deit_forward.1} parent=1 // pred_check
      _
    $region23: #{deit_forward.1} parent=1 // pred_check_branch
      %38 = sbr.rel (0) target = $region25
    $region24: #{deit_forward.1} parent=1 // pred_region
      _
    $region25: #{deit_forward.1} parent=1 // pred_fallthru
      _
    // Predicated region
    $region26: #{deit_forward.1} parent=1 // pred_check
      _
    $region27: #{deit_forward.1} parent=1 // pred_check_branch
      %40 = sbr.rel (0) target = $region29
    $region28: #{deit_forward.1} parent=1 // pred_region
      _
    $region29: #{deit_forward.1} parent=1 // pred_fallthru
      _
    // Predicated region
    $region30: #{deit_forward.1} parent=1 // pred_check
      _
    $region31: #{deit_forward.1} parent=1 // pred_check_branch
      %42 = sbr.rel (0) target = $region33
    $region32: #{deit_forward.1} parent=1 // pred_region
      _
    $region33: #{deit_forward.1} parent=1 // pred_fallthru
      _
    // Predicated region
    $region34: #{deit_forward.1} parent=1 // pred_check
      _
    $region35: #{deit_forward.1} parent=1 // pred_check_branch
      %44 = sbr.rel (0) target = $region37
    $region36: #{deit_forward.1} parent=1 // pred_region
      _
    $region37: #{deit_forward.1} parent=1 // pred_fallthru
      _
    // Predicated region
    $region38: #{deit_forward.1} parent=1 // pred_check
      _
    $region39: #{deit_forward.1} parent=1 // pred_check_branch
      %46 = sbr.rel (0) target = $region41
    $region40: #{deit_forward.1} parent=1 // pred_region
      _
    $region41: #{deit_forward.1} parent=1 // pred_fallthru
      _
    // Predicated region
    $region42: #{deit_forward.1} parent=1 // pred_check
      _
    $region43: #{deit_forward.1} parent=1 // pred_check_branch
      %48 = sbr.rel (0) target = $region45
    $region44: #{deit_forward.1} parent=1 // pred_region
      _
    $region45: #{deit_forward.1} parent=1 // pred_fallthru
      _
    // Predicated region
    $region46: #{deit_forward.1} parent=1 // pred_check
      _
    $region47: #{deit_forward.1} parent=1 // pred_check_branch
      %50 = sbr.rel (0) target = $region49
    $region48: #{deit_forward.1} parent=1 // pred_region
      _
    $region49: #{deit_forward.1} parent=1 // pred_fallthru
      _
    // Predicated region
    $region50: #{deit_forward.1} parent=1 // pred_check
      _
    $region51: #{deit_forward.1} parent=1 // pred_check_branch
      %52 = sbr.rel (0) target = $region53
    $region52: #{deit_forward.1} parent=1 // pred_region
      _
    $region53: #{deit_forward.1} parent=1 // pred_fallthru
      _
    // Predicated region
    $region54: #{deit_forward.1} parent=1 // pred_check
      _
    $region55: #{deit_forward.1} parent=1 // pred_check_branch
      %54 = sbr.rel (0) target = $region57
    $region56: #{deit_forward.1} parent=1 // pred_region
      _
    $region57: #{deit_forward.1} parent=1 // pred_fallthru
      _
    // Predicated region
    $region58: #{deit_forward.1} parent=1 // pred_check
      _
    $region59: #{deit_forward.1} parent=1 // pred_check_branch
      %56 = sbr.rel (0) target = $region61
    $region60: #{deit_forward.1} parent=1 // pred_region
      _
    $region61: #{deit_forward.1} parent=1 // pred_fallthru
      _
    // Predicated region
    $region62: #{deit_forward.1} parent=1 // pred_check
      _
    $region63: #{deit_forward.1} parent=1 // pred_check_branch
      %58 = sbr.rel (0) target = $region65
    $region64: #{deit_forward.1} parent=1 // pred_region
      _
    $region65: #{deit_forward.1} parent=1 // pred_fallthru
      _
    // Predicated region
    $region66: #{deit_forward.1} parent=1 // pred_check
      _
    $region67: #{deit_forward.1} parent=1 // pred_check_branch
      %60 = sbr.rel (0) target = $region69
    $region68: #{deit_forward.1} parent=1 // pred_region
      _
    $region69: #{deit_forward.1} parent=1 // pred_fallthru
      _
    // Predicated region
    $region70: #{deit_forward.1} parent=1 // pred_check
      _
    $region71: #{deit_forward.1} parent=1 // pred_check_branch
      %62 = sbr.rel (0) target = $region73
    $region72: #{deit_forward.1} parent=1 // pred_region
      _
    $region73: #{deit_forward.1} parent=1 // pred_fallthru
      _
    // Predicated region
    $region74: #{deit_forward.1} parent=1 // pred_check
      _
    $region75: #{deit_forward.1} parent=1 // pred_check_branch
      %64 = sbr.rel (0) target = $region77
    $region76: #{deit_forward.1} parent=1 // pred_region
      _
    $region77: #{deit_forward.1} parent=1 // pred_fallthru
      _
    %v66 = vld [vmem:[%s0] sm:$0xff]
    %v67 = vld [vmem:[%s0 + $0x8] sm:$0xff]
    %v68 = vld [vmem:[%s0 + $0x10] sm:$0xff]
    %v69 = vld [vmem:[%s0 + $0x18] sm:$0x11]
    %v70 = vld [vmem:[%s0 + $0x20] sm:$0x11]
    %v71 = vld [vmem:[%s0 + $0x28] sm:$0x11]
    %v72 = vld [vmem:[%s2] sm:$0xf]
    %v73 = vld [vmem:[%s2 + $0x4] sm:$0xf]
    %v74 = vld [vmem:[%s2 + $0x8] sm:$0xf]
    %v75 = vld [vmem:[%s2 + $0xc] sm:$0xf]
    %v76 = vld [vmem:[%s2 + $0x10] sm:$0xf]
    %v77 = vld [vmem:[%s2 + $0x14] sm:$0xf]
    %v78 = vld [vmem:[%s2 + $0x18] sm:$0xf]
    %v79 = vld [vmem:[%s2 + $0x1c] sm:$0xf]
    %v80 = vld [vmem:[%s2 + $0x20] sm:$0xf]
    %v81 = vld [vmem:[%s2 + $0x24] sm:$0xf]
    %v82 = vld [vmem:[%s2 + $0x28] sm:$0xf]
    %v83 = vld [vmem:[%s2 + $0x2c] sm:$0xf]
    %v84 = vld [vmem:[%s2 + $0x30] sm:$0xf]
    %v85 = vld [vmem:[%s2 + $0x34] sm:$0xf]
    %v86 = vld [vmem:[%s2 + $0x38] sm:$0xf]
    %v87 = vld [vmem:[%s2 + $0x3c] sm:$0xf]
    %v88 = vld [vmem:[%s2 + $0x40] sm:$0xf]
    %v89 = vld [vmem:[%s2 + $0x44] sm:$0xf]
    %v90 = vld [vmem:[%s2 + $0x48] sm:$0xf]
    %v91 = vld [vmem:[%s2 + $0x4c] sm:$0xf]
    %v92 = vld [vmem:[%s2 + $0x50] sm:$0xf]
    %v93 = vld [vmem:[%s2 + $0x54] sm:$0xf]
    %v94 = vld [vmem:[%s2 + $0x58] sm:$0xf]
    %v95 = vld [vmem:[%s2 + $0x5c] sm:$0xf]
    %v96 = vld [vmem:[%s2 + $0x60] sm:$0xf]
    %v97 = vld [vmem:[%s2 + $0x64] sm:$0xf]
    %v98 = vld [vmem:[%s2 + $0x68] sm:$0xf]
    %v99 = vld [vmem:[%s2 + $0x6c] sm:$0xf]
    %v100 = vld [vmem:[%s2 + $0x70] sm:$0xf]
    %v101 = vld [vmem:[%s2 + $0x74] sm:$0xf]
    %v102 = vld [vmem:[%s2 + $0x78] sm:$0xf]
    %v103 = vld [vmem:[%s2 + $0x7c] sm:$0xf]
    %v104 = vld [vmem:[%s2 + $0x80] sm:$0xf]
    %v105 = vld [vmem:[%s2 + $0x84] sm:$0xf]
    %v106 = vld [vmem:[%s2 + $0x88] sm:$0xf]
    %v107 = vld [vmem:[%s2 + $0x8c] sm:$0xf]
    %v108 = vld [vmem:[%s2 + $0x90] sm:$0xf]
    %v109 = vld [vmem:[%s2 + $0x94] sm:$0xf]
    %v110 = vld [vmem:[%s2 + $0x98] sm:$0xf]
    %v111 = vld [vmem:[%s2 + $0x9c] sm:$0xf]
    %v112 = vld [vmem:[%s2 + $0xa0] sm:$0xf]
    %v113 = vld [vmem:[%s2 + $0xa4] sm:$0xf]
    %v114 = vld [vmem:[%s2 + $0xa8] sm:$0xf]
    %v115 = vld [vmem:[%s2 + $0xac] sm:$0xf]
    %v116 = vld [vmem:[%s2 + $0xb0] sm:$0xf]
    %v117 = vld [vmem:[%s2 + $0xb4] sm:$0xf]
    %v118 = vld [vmem:[%s2 + $0xb8] sm:$0xf]
    %v119 = vld [vmem:[%s2 + $0xbc] sm:$0xf]
    %v120 = vld [vmem:[%s2 + $0xc0] sm:$0xf]
    %v121 = vld [vmem:[%s2 + $0xc4] sm:$0xf]
    %v122 = vld [vmem:[%s2 + $0xc8] sm:$0xf]
    %v123 = vld [vmem:[%s2 + $0xcc] sm:$0xf]
    %v124 = vld [vmem:[%s2 + $0xd0] sm:$0xf]
    %v125 = vld [vmem:[%s2 + $0xd4] sm:$0xf]
    %v126 = vld [vmem:[%s2 + $0xd8] sm:$0xf]
    %v127 = vld [vmem:[%s2 + $0xdc] sm:$0xf]
    %v128 = vld [vmem:[%s2 + $0xe0] sm:$0xf]
    %v129 = vld [vmem:[%s2 + $0xe4] sm:$0xf]
    %v130 = vld [vmem:[%s2 + $0xe8] sm:$0xf]
    %v131 = vld [vmem:[%s2 + $0xec] sm:$0xf]
    %v132 = vld [vmem:[%s2 + $0xf0] sm:$0xf]
    %v133 = vld [vmem:[%s2 + $0xf4] sm:$0xf]
    %v134 = vld [vmem:[%s2 + $0xf8] sm:$0xf]
    %v135 = vld [vmem:[%s2 + $0xfc] sm:$0xf]
    %v136 = vld [vmem:[%s2 + $0x100] sm:$0xf]
    %v137 = vld [vmem:[%s2 + $0x104] sm:$0xf]
    %v138 = vld [vmem:[%s2 + $0x108] sm:$0xf]
    %v139 = vld [vmem:[%s2 + $0x10c] sm:$0xf]
    %v140 = vld [vmem:[%s2 + $0x110] sm:$0xf]
    %v141 = vld [vmem:[%s2 + $0x114] sm:$0xf]
    %v142 = vld [vmem:[%s2 + $0x118] sm:$0xf]
    %v143 = vld [vmem:[%s2 + $0x11c] sm:$0xf]
    %v144 = vld [vmem:[%s2 + $0x120] sm:$0xf]
    %v145 = vld [vmem:[%s2 + $0x124] sm:$0xf]
    %v146 = vld [vmem:[%s2 + $0x128] sm:$0xf]
    %v147 = vld [vmem:[%s2 + $0x12c] sm:$0xf]
    %v148 = vld [vmem:[%s2 + $0x130] sm:$0xf]
    %v149 = vld [vmem:[%s2 + $0x134] sm:$0xf]
    %v150 = vld [vmem:[%s2 + $0x138] sm:$0xf]
    %v151 = vld [vmem:[%s2 + $0x13c] sm:$0xf]
    %v152 = vld [vmem:[%s2 + $0x140] sm:$0xf]
    %v153 = vld [vmem:[%s2 + $0x144] sm:$0xf]
    %v154 = vld [vmem:[%s2 + $0x148] sm:$0xf]
    %v155 = vld [vmem:[%s2 + $0x14c] sm:$0xf]
    %v156 = vld [vmem:[%s2 + $0x150] sm:$0xf]
    %v157 = vld [vmem:[%s2 + $0x154] sm:$0xf]
    %v158 = vld [vmem:[%s2 + $0x158] sm:$0xf]
    %v159 = vld [vmem:[%s2 + $0x15c] sm:$0xf]
    %v160 = vld [vmem:[%s2 + $0x160] sm:$0xf]
    %v161 = vld [vmem:[%s2 + $0x164] sm:$0xf]
    %v162 = vld [vmem:[%s2 + $0x168] sm:$0xf]
    %v163 = vld [vmem:[%s2 + $0x16c] sm:$0xf]
    %v164 = vld [vmem:[%s2 + $0x170] sm:$0xf]
    %v165 = vld [vmem:[%s2 + $0x174] sm:$0xf]
    %v166 = vld [vmem:[%s2 + $0x178] sm:$0xf]
    %v167 = vld [vmem:[%s2 + $0x17c] sm:$0xf]
    %v168 = vld [vmem:[%s1] sm:$0xff]
    %v169 = vld [vmem:[%s1 + $0x8] sm:$0x3]
    %v176 = vunpack.c.l.b16 %v66
    %v177 = vunpack.c.h.b16 %v66
    %v178 = vunpack.c.l.b16 %v67
    %v179 = vunpack.c.h.b16 %v67
    %v180 = vunpack.c.l.b16 %v68
    %v181 = vunpack.c.h.b16 %v68
    %v182 = vunpack.c.l.b16 %v69
    %v183 = vunpack.c.h.b16 %v69
    %v184 = vunpack.c.l.b16 %v70
    %v185 = vunpack.c.h.b16 %v70
    %v186 = vunpack.c.l.b16 %v71
    %v187 = vunpack.c.h.b16 %v71
    %v188 = vpack.c.b16 %v182, %v176
    %v189 = vpack.c.b16 %v183, %v177
    %v190 = vpack.c.b16 %v184, %v178
    %v191 = vpack.c.b16 %v185, %v179
    %v192 = vpack.c.b16 %v186, %v180
    %v193 = vpack.c.b16 %v187, %v181
    %v296 = vunpack.c.l.b16 %v72
    %v297 = vunpack.c.l.b16 %v73
    %v298 = vunpack.c.l.b16 %v74
    %v299 = vunpack.c.l.b16 %v75
    %v300 = vunpack.c.l.b16 %v76
    %v301 = vunpack.c.l.b16 %v77
    %v302 = vunpack.c.l.b16 %v78
    %v303 = vunpack.c.l.b16 %v79
    %v304 = vunpack.c.l.b16 %v80
    %v305 = vunpack.c.l.b16 %v81
    %v306 = vunpack.c.l.b16 %v82
    %v307 = vunpack.c.l.b16 %v83
    %v308 = vunpack.c.l.b16 %v84
    %v309 = vunpack.c.l.b16 %v85
    %v310 = vunpack.c.l.b16 %v86
    %v311 = vunpack.c.l.b16 %v87
    %v312 = vunpack.c.l.b16 %v88
    %v313 = vunpack.c.l.b16 %v89
    %v314 = vunpack.c.l.b16 %v90
    %v315 = vunpack.c.l.b16 %v91
    %v316 = vunpack.c.l.b16 %v92
    %v317 = vunpack.c.l.b16 %v93
    %v318 = vunpack.c.l.b16 %v94
    %v319 = vunpack.c.l.b16 %v95
    %v320 = vunpack.c.l.b16 %v96
    %v321 = vunpack.c.l.b16 %v97
    %v322 = vunpack.c.l.b16 %v98
    %v323 = vunpack.c.l.b16 %v99
    %v324 = vunpack.c.l.b16 %v100
    %v325 = vunpack.c.l.b16 %v101
    %v326 = vunpack.c.l.b16 %v102
    %v327 = vunpack.c.l.b16 %v103
    %v328 = vunpack.c.l.b16 %v104
    %v329 = vunpack.c.l.b16 %v105
    %v330 = vunpack.c.l.b16 %v106
    %v331 = vunpack.c.l.b16 %v107
    %v332 = vunpack.c.l.b16 %v108
    %v333 = vunpack.c.l.b16 %v109
    %v334 = vunpack.c.l.b16 %v110
    %v335 = vunpack.c.l.b16 %v111
    %v336 = vunpack.c.l.b16 %v112
    %v337 = vunpack.c.l.b16 %v113
    %v338 = vunpack.c.l.b16 %v114
    %v339 = vunpack.c.l.b16 %v115
    %v340 = vunpack.c.l.b16 %v116
    %v341 = vunpack.c.l.b16 %v117
    %v342 = vunpack.c.l.b16 %v118
    %v343 = vunpack.c.l.b16 %v119
    %v344 = vunpack.c.l.b16 %v120
    %v345 = vunpack.c.l.b16 %v121
    %v346 = vunpack.c.l.b16 %v122
    %v347 = vunpack.c.l.b16 %v123
    %v348 = vunpack.c.l.b16 %v124
    %v349 = vunpack.c.l.b16 %v125
    %v350 = vunpack.c.l.b16 %v126
    %v351 = vunpack.c.l.b16 %v127
    %v352 = vunpack.c.l.b16 %v128
    %v353 = vunpack.c.l.b16 %v129
    %v354 = vunpack.c.l.b16 %v130
    %v355 = vunpack.c.l.b16 %v131
    %v356 = vunpack.c.l.b16 %v132
    %v357 = vunpack.c.l.b16 %v133
    %v358 = vunpack.c.l.b16 %v134
    %v359 = vunpack.c.l.b16 %v135
    %v360 = vunpack.c.l.b16 %v136
    %v361 = vunpack.c.l.b16 %v137
    %v362 = vunpack.c.l.b16 %v138
    %v363 = vunpack.c.l.b16 %v139
    %v364 = vunpack.c.l.b16 %v140
    %v365 = vunpack.c.l.b16 %v141
    %v366 = vunpack.c.l.b16 %v142
    %v367 = vunpack.c.l.b16 %v143
    %v368 = vunpack.c.l.b16 %v144
    %v369 = vunpack.c.l.b16 %v145
    %v370 = vunpack.c.l.b16 %v146
    %v371 = vunpack.c.l.b16 %v147
    %v372 = vunpack.c.l.b16 %v148
    %v373 = vunpack.c.l.b16 %v149
    %v374 = vunpack.c.l.b16 %v150
    %v375 = vunpack.c.l.b16 %v151
    %v376 = vunpack.c.l.b16 %v152
    %v377 = vunpack.c.l.b16 %v153
    %v378 = vunpack.c.l.b16 %v154
    %v379 = vunpack.c.l.b16 %v155
    %v380 = vunpack.c.l.b16 %v156
    %v381 = vunpack.c.l.b16 %v157
    %v382 = vunpack.c.l.b16 %v158
    %v383 = vunpack.c.l.b16 %v159
    %v384 = vunpack.c.l.b16 %v160
    %v385 = vunpack.c.l.b16 %v161
    %v386 = vunpack.c.l.b16 %v162
    %v387 = vunpack.c.l.b16 %v163
    %v388 = vunpack.c.l.b16 %v164
    %v389 = vunpack.c.l.b16 %v165
    %v390 = vunpack.c.l.b16 %v166
    %v391 = vunpack.c.l.b16 %v167
    %v392 = vpack.c.b16 %v297, %v296
    %v393 = vpack.c.b16 %v299, %v298
    %v394 = vpack.c.b16 %v301, %v300
    %v395 = vpack.c.b16 %v303, %v302
    %v396 = vpack.c.b16 %v305, %v304
    %v397 = vpack.c.b16 %v307, %v306
    %v398 = vpack.c.b16 %v309, %v308
    %v399 = vpack.c.b16 %v311, %v310
    %v400 = vpack.c.b16 %v313, %v312
    %v401 = vpack.c.b16 %v315, %v314
    %v402 = vpack.c.b16 %v317, %v316
    %v403 = vpack.c.b16 %v319, %v318
    %v404 = vpack.c.b16 %v321, %v320
    %v405 = vpack.c.b16 %v323, %v322
    %v406 = vpack.c.b16 %v325, %v324
    %v407 = vpack.c.b16 %v327, %v326
    %v408 = vpack.c.b16 %v329, %v328
    %v409 = vpack.c.b16 %v331, %v330
    %v410 = vpack.c.b16 %v333, %v332
    %v411 = vpack.c.b16 %v335, %v334
    %v412 = vpack.c.b16 %v337, %v336
    %v413 = vpack.c.b16 %v339, %v338
    %v414 = vpack.c.b16 %v341, %v340
    %v415 = vpack.c.b16 %v343, %v342
    %v416 = vpack.c.b16 %v345, %v344
    %v417 = vpack.c.b16 %v347, %v346
    %v418 = vpack.c.b16 %v349, %v348
    %v419 = vpack.c.b16 %v351, %v350
    %v420 = vpack.c.b16 %v353, %v352
    %v421 = vpack.c.b16 %v355, %v354
    %v422 = vpack.c.b16 %v357, %v356
    %v423 = vpack.c.b16 %v359, %v358
    %v424 = vpack.c.b16 %v361, %v360
    %v425 = vpack.c.b16 %v363, %v362
    %v426 = vpack.c.b16 %v365, %v364
    %v427 = vpack.c.b16 %v367, %v366
    %v428 = vpack.c.b16 %v369, %v368
    %v429 = vpack.c.b16 %v371, %v370
    %v430 = vpack.c.b16 %v373, %v372
    %v431 = vpack.c.b16 %v375, %v374
    %v432 = vpack.c.b16 %v377, %v376
    %v433 = vpack.c.b16 %v379, %v378
    %v434 = vpack.c.b16 %v381, %v380
    %v435 = vpack.c.b16 %v383, %v382
    %v436 = vpack.c.b16 %v385, %v384
    %v437 = vpack.c.b16 %v387, %v386
    %v438 = vpack.c.b16 %v389, %v388
    %v439 = vpack.c.b16 %v391, %v390
    %488 = vmatprep.subr.bf16.mxu0 0
    %489 = vmatpush1.bf16.msra.mxu0 %v392
    %490 = vmatprep.subr.bf16.mxu0 0
    %491 = vmatpush1.bf16.msra.mxu0 %v393
    %492 = vmatprep.subr.bf16.mxu0 0
    %493 = vmatpush1.bf16.msra.mxu0 %v394
    %494 = vmatprep.subr.bf16.mxu0 0
    %495 = vmatpush1.bf16.msra.mxu0 %v395
    %496 = vmatprep.subr.bf16.mxu0 0
    %497 = vmatpush1.bf16.msra.mxu0 %v396
    %498 = vmatprep.subr.bf16.mxu0 0
    %499 = vmatpush1.bf16.msra.mxu0 %v397
    %500 = vmatprep.subr.bf16.mxu0 0
    %501 = vmatpush1.bf16.msra.mxu0 %v398
    %502 = vmatprep.subr.bf16.mxu0 0
    %503 = vmatpush1.bf16.msra.mxu0 %v399
    %504 = vmatprep.subr.bf16.mxu0 0
    %505 = vmatpush1.bf16.msra.mxu0 %v400
    %506 = vmatprep.subr.bf16.mxu0 0
    %507 = vmatpush1.bf16.msra.mxu0 %v401
    %508 = vmatprep.subr.bf16.mxu0 0
    %509 = vmatpush1.bf16.msra.mxu0 %v402
    %510 = vmatprep.subr.bf16.mxu0 0
    %511 = vmatpush1.bf16.msra.mxu0 %v403
    %512 = vmatprep.subr.bf16.mxu0 0
    %513 = vmatpush1.bf16.msra.mxu0 %v404
    %514 = vmatprep.subr.bf16.mxu0 0
    %515 = vmatpush1.bf16.msra.mxu0 %v405
    %516 = vmatprep.subr.bf16.mxu0 0
    %517 = vmatpush1.bf16.msra.mxu0 %v406
    %518 = vmatprep.subr.bf16.mxu0 0
    %519 = vmatpush1.bf16.msra.mxu0 %v407
    %520 = vmatprep.mubr.bf16.mxu0 %v189
    %521 = vmatmul.mubr.bf16.gmra.mrb[0].mxu0 %v188
    %v522 = vpop.f32.mrb[0].mxu0
    %v523 = vadd.f32 %v168, %v522
    %v524 = vpop.f32.mrb[0].mxu0
    %v525 = vpop.f32.mrb[0].mxu0
    %v526 = vadd.f32 %v169, %v525
    %v527 = vpop.f32.mrb[0].mxu0
    %528 = vdwg.mxu0
    %529 = vmatprep.subr.bf16.mxu0 0
    %530 = vmatpush1.bf16.msra.mxu0 %v408
    %531 = vmatprep.subr.bf16.mxu0 0
    %532 = vmatpush1.bf16.msra.mxu0 %v409
    %533 = vmatprep.subr.bf16.mxu0 0
    %534 = vmatpush1.bf16.msra.mxu0 %v410
    %535 = vmatprep.subr.bf16.mxu0 0
    %536 = vmatpush1.bf16.msra.mxu0 %v411
    %537 = vmatprep.subr.bf16.mxu0 0
    %538 = vmatpush1.bf16.msra.mxu0 %v412
    %539 = vmatprep.subr.bf16.mxu0 0
    %540 = vmatpush1.bf16.msra.mxu0 %v413
    %541 = vmatprep.subr.bf16.mxu0 0
    %542 = vmatpush1.bf16.msra.mxu0 %v414
    %543 = vmatprep.subr.bf16.mxu0 0
    %544 = vmatpush1.bf16.msra.mxu0 %v415
    %545 = vmatprep.subr.bf16.mxu0 0
    %546 = vmatpush1.bf16.msra.mxu0 %v416
    %547 = vmatprep.subr.bf16.mxu0 0
    %548 = vmatpush1.bf16.msra.mxu0 %v417
    %549 = vmatprep.subr.bf16.mxu0 0
    %550 = vmatpush1.bf16.msra.mxu0 %v418
    %551 = vmatprep.subr.bf16.mxu0 0
    %552 = vmatpush1.bf16.msra.mxu0 %v419
    %553 = vmatprep.subr.bf16.mxu0 0
    %554 = vmatpush1.bf16.msra.mxu0 %v420
    %555 = vmatprep.subr.bf16.mxu0 0
    %556 = vmatpush1.bf16.msra.mxu0 %v421
    %557 = vmatprep.subr.bf16.mxu0 0
    %558 = vmatpush1.bf16.msra.mxu0 %v422
    %559 = vmatprep.subr.bf16.mxu0 0
    %560 = vmatpush1.bf16.msra.mxu0 %v423
    %561 = vmatprep.mubr.bf16.mxu0 %v191
    %562 = vmatmul.mubr.bf16.gmra.mrb[0].mxu0 %v190
    %v563 = vpop.f32.mrb[0].mxu0
    %v564 = vadd.f32 %v523, %v563
    %v565 = vpop.f32.mrb[0].mxu0
    %v566 = vpop.f32.mrb[0].mxu0
    %v567 = vadd.f32 %v526, %v566
    %v568 = vpop.f32.mrb[0].mxu0
    %569 = vdwg.mxu0
    %570 = vmatprep.subr.bf16.mxu0 0
    %571 = vmatpush1.bf16.msra.mxu0 %v424
    %572 = vmatprep.subr.bf16.mxu0 0
    %573 = vmatpush1.bf16.msra.mxu0 %v425
    %574 = vmatprep.subr.bf16.mxu0 0
    %575 = vmatpush1.bf16.msra.mxu0 %v426
    %576 = vmatprep.subr.bf16.mxu0 0
    %577 = vmatpush1.bf16.msra.mxu0 %v427
    %578 = vmatprep.subr.bf16.mxu0 0
    %579 = vmatpush1.bf16.msra.mxu0 %v428
    %580 = vmatprep.subr.bf16.mxu0 0
    %581 = vmatpush1.bf16.msra.mxu0 %v429
    %582 = vmatprep.subr.bf16.mxu0 0
    %583 = vmatpush1.bf16.msra.mxu0 %v430
    %584 = vmatprep.subr.bf16.mxu0 0
    %585 = vmatpush1.bf16.msra.mxu0 %v431
    %586 = vmatprep.subr.bf16.mxu0 0
    %587 = vmatpush1.bf16.msra.mxu0 %v432
    %588 = vmatprep.subr.bf16.mxu0 0
    %589 = vmatpush1.bf16.msra.mxu0 %v433
    %590 = vmatprep.subr.bf16.mxu0 0
    %591 = vmatpush1.bf16.msra.mxu0 %v434
    %592 = vmatprep.subr.bf16.mxu0 0
    %593 = vmatpush1.bf16.msra.mxu0 %v435
    %594 = vmatprep.subr.bf16.mxu0 0
    %595 = vmatpush1.bf16.msra.mxu0 %v436
    %596 = vmatprep.subr.bf16.mxu0 0
    %597 = vmatpush1.bf16.msra.mxu0 %v437
    %598 = vmatprep.subr.bf16.mxu0 0
    %599 = vmatpush1.bf16.msra.mxu0 %v438
    %600 = vmatprep.subr.bf16.mxu0 0
    %601 = vmatpush1.bf16.msra.mxu0 %v439
    %602 = vmatprep.mubr.bf16.mxu0 %v193
    %603 = vmatmul.mubr.bf16.gmra.mrb[0].mxu0 %v192
    %v604 = vpop.f32.mrb[0].mxu0
    %v605 = vadd.f32 %v564, %v604
    %v606 = vpop.f32.mrb[0].mxu0
    %v607 = vpop.f32.mrb[0].mxu0
    %v608 = vadd.f32 %v567, %v607
    %v609 = vpop.f32.mrb[0].mxu0
    %610 = vdwg.mxu0
    %v611 = vld [vmem:[%s3] sm:$0x1]
    %v612 = vld [vmem:[%s4] sm:$0x1]
    %vm613 = vcmask 523264
    %v614 = vsel %vm613, %v605, 0.0
    %615 = vadd.xlane.f32.xlu0 %v614
    %v616 = vpop.xlane.xlu0 %615
    %vm617 = vcmask 517120
    %v618 = vsel %vm617, %v608, 0.0
    %619 = vadd.xlane.f32.xlu0 %v618
    %v620 = vpop.xlane.xlu0 %619
    %v621 = vrcp.pop 64.0
    %v622 = vmul.f32 %v616, %v621
    %v623 = vmul.f32 %v620, %v621
    %v624 = vsub.f32 %v605, %v622
    %v625 = vsub.f32 %v608, %v623
    %v626 = vmul.f32 %v624, %v624
    %v627 = vmul.f32 %v625, %v625
    %v628 = vsel %vm613, %v626, 0.0
    %629 = vadd.xlane.f32.xlu0 %v628
    %v630 = vpop.xlane.xlu0 %629
    %v631 = vsel %vm617, %v627, 0.0
    %632 = vadd.xlane.f32.xlu0 %v631
    %v633 = vpop.xlane.xlu0 %632
    %v634 = vmul.f32 %v630, %v621
    %v635 = vmul.f32 %v633, %v621
    %v636 = vadd.f32 %v634, 1e-06
    %v637 = vadd.f32 %v635, 1e-06
    %v638 = vrsqrt.pop %v636
    %v639 = vrsqrt.pop %v637
    %v640 = vmul.f32 %v624, %v638
    %v641 = vmul.f32 %v625, %v639
    %v643 = vlaneseq
    %v644 = vshrl.u32 %v643, 7
    %v645 = vsub.s32 0, %v644
    %v646 = vrot.slane %v611, %v645
    %v648 = vmul.f32 %v640, %v646
    %v649 = vmul.f32 %v641, %v646
    %v651 = vlaneseq
    %v652 = vshrl.u32 %v651, 7
    %v653 = vsub.s32 0, %v652
    %v654 = vrot.slane %v612, %v653
    %v656 = vadd.f32 %v648, %v654
    %v657 = vadd.f32 %v649, %v654
    %v658 = vpack.c.bf16 %v657, %v656
    %v659 = vld [vmem:[%s5] sm:$0xff]
    %v660 = vld [vmem:[%s5 + $0x8] sm:$0xff]
    %v661 = vld [vmem:[%s5 + $0x10] sm:$0xff]
    %v662 = vld [vmem:[%s5 + $0x18] sm:$0xff]
    %v663 = vld [vmem:[%s5 + $0x20] sm:$0xff]
    %v664 = vld [vmem:[%s5 + $0x28] sm:$0xff]
    %v665 = vld [vmem:[%s5 + $0x30] sm:$0xff]
    %v666 = vld [vmem:[%s5 + $0x38] sm:$0xff]
    %v667 = vld [vmem:[%s6] sm:$0x3]
    %v669 = vlaneseq
    %v670 = vshrl.u32 %v669, 7
    %v671 = vsub.s32 0, %v670
    %v672 = vrot.slane %v667, %v671
    %v673 = vlaneseq
    %v674 = vshrl.u32 %v673, 7
    %v675 = vsub.s32 1, %v674
    %v676 = vrot.slane %v667, %v675
    %v687 = vunpack.c.l.b16 %v659
    %v688 = vunpack.c.h.b16 %v659
    %v689 = vunpack.c.l.b16 %v660
    %v690 = vunpack.c.h.b16 %v660
    %v691 = vunpack.c.l.b16 %v661
    %v692 = vunpack.c.h.b16 %v661
    %v693 = vunpack.c.l.b16 %v662
    %v694 = vunpack.c.h.b16 %v662
    %v695 = vunpack.c.l.b16 %v663
    %v696 = vunpack.c.h.b16 %v663
    %v697 = vunpack.c.l.b16 %v664
    %v698 = vunpack.c.h.b16 %v664
    %v699 = vunpack.c.l.b16 %v665
    %v700 = vunpack.c.h.b16 %v665
    %v701 = vunpack.c.l.b16 %v666
    %v702 = vunpack.c.h.b16 %v666
    %v703 = vpack.c.b16 %v689, %v687
    %v704 = vpack.c.b16 %v690, %v688
    %v705 = vpack.c.b16 %v693, %v691
    %v706 = vpack.c.b16 %v694, %v692
    %v707 = vpack.c.b16 %v697, %v695
    %v708 = vpack.c.b16 %v698, %v696
    %v709 = vpack.c.b16 %v701, %v699
    %v710 = vpack.c.b16 %v702, %v700
    %v720 = vsel %vm613, %v658, 0
    %722 = vmatprep.subr.bf16.mxu0 %v704
    %723 = vmatpush1.bf16.msra.mxu0 %v703
    %724 = vmatprep.subr.bf16.mxu0 %v706
    %725 = vmatpush1.bf16.msra.mxu0 %v705
    %726 = vmatprep.subr.bf16.mxu0 %v708
    %727 = vmatpush1.bf16.msra.mxu0 %v707
    %728 = vmatprep.subr.bf16.mxu0 %v710
    %729 = vmatpush1.bf16.msra.mxu0 %v709
    %730 = vmatprep.subr.bf16.mxu0 0
    %731 = vmatpush1.bf16.msra.mxu0 0
    %732 = vmatprep.subr.bf16.mxu0 0
    %733 = vmatpush1.bf16.msra.mxu0 0
    %734 = vmatprep.subr.bf16.mxu0 0
    %735 = vmatpush1.bf16.msra.mxu0 0
    %736 = vmatprep.subr.bf16.mxu0 0
    %737 = vmatpush1.bf16.msra.mxu0 0
    %738 = vmatprep.subr.bf16.mxu0 0
    %739 = vmatpush1.bf16.msra.mxu0 0
    %740 = vmatprep.subr.bf16.mxu0 0
    %741 = vmatpush1.bf16.msra.mxu0 0
    %742 = vmatprep.subr.bf16.mxu0 0
    %743 = vmatpush1.bf16.msra.mxu0 0
    %744 = vmatprep.subr.bf16.mxu0 0
    %745 = vmatpush1.bf16.msra.mxu0 0
    %746 = vmatprep.subr.bf16.mxu0 0
    %747 = vmatpush1.bf16.msra.mxu0 0
    %748 = vmatprep.subr.bf16.mxu0 0
    %749 = vmatpush1.bf16.msra.mxu0 0
    %750 = vmatprep.subr.bf16.mxu0 0
    %751 = vmatpush1.bf16.msra.mxu0 0
    %752 = vmatprep.subr.bf16.mxu0 0
    %753 = vmatpush1.bf16.msra.mxu0 0
    %754 = vmatprep.mubr.bf16.mxu0 0
    %755 = vmatmul.mubr.bf16.gmra.mrb[0].mxu0 %v720
    %v756 = vpop.f32.mrb[0].mxu0
    %v757 = vadd.f32 %v672, %v756
    %v758 = vpop.f32.mrb[0].mxu0
    %v759 = vadd.f32 %v676, %v758
    %v760 = vpop.f32.mrb[0].mxu0
    %v761 = vadd.f32 %v672, %v760
    %v762 = vpop.f32.mrb[0].mxu0
    %v763 = vadd.f32 %v676, %v762
    %764 = vdwg.mxu0
    %v765 = vmul.f32 %v757, 0.25
    %v766 = vpack.c.bf16 %v765, %v765
    %v767 = vpack.c.bf16 %v757, %v757
    %v768 = vpack.c.bf16 %v759, %v759
    %770 = vrot.lane.b32.xlu0 %v767, 64
    %v771 = vpop.permute.xlu0 %770
    %vm772 = vcmask 130048
    %v774 = vsel %vm772, %v766, 0
    %v777 = vsel %vm772, %v771, 0
    %779 = vmatprep.subr.bf16.mxu0 0
    %780 = vmatpush1.bf16.xpose.msra.mxu0 %v777
    %781 = vmatprep.subr.bf16.mxu0 0
    %782 = vmatpush1.bf16.xpose.msra.mxu0 0
    %783 = vmatprep.subr.bf16.mxu0 0
    %784 = vmatpush1.bf16.xpose.msra.mxu0 0
    %785 = vmatprep.subr.bf16.mxu0 0
    %786 = vmatpush1.bf16.xpose.msra.mxu0 0
    %787 = vmatprep.subr.bf16.mxu0 0
    %788 = vmatpush1.bf16.xpose.msra.mxu0 0
    %789 = vmatprep.subr.bf16.mxu0 0
    %790 = vmatpush1.bf16.xpose.msra.mxu0 0
    %791 = vmatprep.subr.bf16.mxu0 0
    %792 = vmatpush1.bf16.xpose.msra.mxu0 0
    %793 = vmatprep.subr.bf16.mxu0 0
    %794 = vmatpush1.bf16.xpose.msra.mxu0 0
    %795 = vmatprep.subr.bf16.mxu0 0
    %796 = vmatpush1.bf16.xpose.msra.mxu0 0
    %797 = vmatprep.subr.bf16.mxu0 0
    %798 = vmatpush1.bf16.xpose.msra.mxu0 0
    %799 = vmatprep.subr.bf16.mxu0 0
    %800 = vmatpush1.bf16.xpose.msra.mxu0 0
    %801 = vmatprep.subr.bf16.mxu0 0
    %802 = vmatpush1.bf16.xpose.msra.mxu0 0
    %803 = vmatprep.subr.bf16.mxu0 0
    %804 = vmatpush1.bf16.xpose.msra.mxu0 0
    %805 = vmatprep.subr.bf16.mxu0 0
    %806 = vmatpush1.bf16.xpose.msra.mxu0 0
    %807 = vmatprep.subr.bf16.mxu0 0
    %808 = vmatpush1.bf16.xpose.msra.mxu0 0
    %809 = vmatprep.subr.bf16.mxu0 0
    %810 = vmatpush1.bf16.xpose.msra.mxu0 0
    %811 = vmatprep.mubr.bf16.mxu0 0
    %812 = vmatmul.mubr.bf16.gmra.mrb[0].mxu0 %v774
    %v813 = vpop.f32.mrb[0].mxu0
    %v814 = vadd.f32 0.0, %v813
    %v815 = vpop.f32.mrb[0].mxu0
    %v816 = vpop.f32.mrb[0].mxu0
    %v817 = vpop.f32.mrb[0].mxu0
    %818 = vdwg.mxu0
    %vm819 = vcmask 36864
    %v820 = vsel %vm819, %v814, -inf
    %821 = vmax.xlane.f32.xlu0 %v820
    %v822 = vpop.xlane.xlu0 %821
    %v823 = vsub.f32 %v814, %v822
    %v824 = vmul.f32 %v823, 1.442695
    %v825 = vpow.pop %v824
    %v826 = vsel %vm819, %v825, 0.0
    %827 = vadd.xlane.f32.xlu0 %v826
    %v828 = vpop.xlane.xlu0 %827
    %v829 = vrcp.pop %v828
    %v830 = vmul.f32 %v825, %v829
    %v831 = vpack.c.bf16 %v830, %v830
    %vm832 = vcmask 39936
    %v834 = vsel %vm832, %v831, 0
    %vm836 = vcmask 1041408
    %vm837 = vcmask 1042432
    %v838 = vsel %vm836, 4294967295, 65535
    %v839 = vsel %vm837, %v838, 0
    %v841 = vand.u32 %v768, %v839
    %843 = vmatprep.subr.bf16.mxu0 0
    %844 = vmatpush1.bf16.msra.mxu0 %v841
    %845 = vmatprep.subr.bf16.mxu0 0
    %846 = vmatpush1.bf16.msra.mxu0 0
    %847 = vmatprep.subr.bf16.mxu0 0
    %848 = vmatpush1.bf16.msra.mxu0 0
    %849 = vmatprep.subr.bf16.mxu0 0
    %850 = vmatpush1.bf16.msra.mxu0 0
    %851 = vmatprep.subr.bf16.mxu0 0
    %852 = vmatpush1.bf16.msra.mxu0 0
    %853 = vmatprep.subr.bf16.mxu0 0
    %854 = vmatpush1.bf16.msra.mxu0 0
    %855 = vmatprep.subr.bf16.mxu0 0
    %856 = vmatpush1.bf16.msra.mxu0 0
    %857 = vmatprep.subr.bf16.mxu0 0
    %858 = vmatpush1.bf16.msra.mxu0 0
    %859 = vmatprep.subr.bf16.mxu0 0
    %860 = vmatpush1.bf16.msra.mxu0 0
    %861 = vmatprep.subr.bf16.mxu0 0
    %862 = vmatpush1.bf16.msra.mxu0 0
    %863 = vmatprep.subr.bf16.mxu0 0
    %864 = vmatpush1.bf16.msra.mxu0 0
    %865 = vmatprep.subr.bf16.mxu0 0
    %866 = vmatpush1.bf16.msra.mxu0 0
    %867 = vmatprep.subr.bf16.mxu0 0
    %868 = vmatpush1.bf16.msra.mxu0 0
    %869 = vmatprep.subr.bf16.mxu0 0
    %870 = vmatpush1.bf16.msra.mxu0 0
    %871 = vmatprep.subr.bf16.mxu0 0
    %872 = vmatpush1.bf16.msra.mxu0 0
    %873 = vmatprep.subr.bf16.mxu0 0
    %874 = vmatpush1.bf16.msra.mxu0 0
    %875 = vmatprep.mubr.bf16.mxu0 0
    %876 = vmatmul.mubr.bf16.gmra.mrb[0].mxu0 %v834
    %v877 = vpop.f32.mrb[0].mxu0
    %v878 = vadd.f32 0.0, %v877
    %v879 = vpop.f32.mrb[0].mxu0
    %v880 = vpop.f32.mrb[0].mxu0
    %v881 = vpop.f32.mrb[0].mxu0
    %882 = vdwg.mxu0
    %vm883 = vcmask 126976
    %884 = vst.msk [vmem:[#allocation2] sm:$0x1f] %vm883, %v878
    %886 = vrot.lane.b32.xlu0 %v766, 112
    %v887 = vpop.permute.xlu0 %886
    %888 = vrot.lane.b32.xlu0 %v767, 48
    %v889 = vpop.permute.xlu0 %888
    %v891 = vsel %vm772, %v887, 0
    %v894 = vsel %vm772, %v889, 0
    %896 = vmatprep.subr.bf16.mxu0 0
    %897 = vmatpush1.bf16.xpose.msra.mxu0 %v894
    %898 = vmatprep.subr.bf16.mxu0 0
    %899 = vmatpush1.bf16.xpose.msra.mxu0 0
    %900 = vmatprep.subr.bf16.mxu0 0
    %901 = vmatpush1.bf16.xpose.msra.mxu0 0
    %902 = vmatprep.subr.bf16.mxu0 0
    %903 = vmatpush1.bf16.xpose.msra.mxu0 0
    %904 = vmatprep.subr.bf16.mxu0 0
    %905 = vmatpush1.bf16.xpose.msra.mxu0 0
    %906 = vmatprep.subr.bf16.mxu0 0
    %907 = vmatpush1.bf16.xpose.msra.mxu0 0
    %908 = vmatprep.subr.bf16.mxu0 0
    %909 = vmatpush1.bf16.xpose.msra.mxu0 0
    %910 = vmatprep.subr.bf16.mxu0 0
    %911 = vmatpush1.bf16.xpose.msra.mxu0 0
    %912 = vmatprep.subr.bf16.mxu0 0
    %913 = vmatpush1.bf16.xpose.msra.mxu0 0
    %914 = vmatprep.subr.bf16.mxu0 0
    %915 = vmatpush1.bf16.xpose.msra.mxu0 0
    %916 = vmatprep.subr.bf16.mxu0 0
    %917 = vmatpush1.bf16.xpose.msra.mxu0 0
    %918 = vmatprep.subr.bf16.mxu0 0
    %919 = vmatpush1.bf16.xpose.msra.mxu0 0
    %920 = vmatprep.subr.bf16.mxu0 0
    %921 = vmatpush1.bf16.xpose.msra.mxu0 0
    %922 = vmatprep.subr.bf16.mxu0 0
    %923 = vmatpush1.bf16.xpose.msra.mxu0 0
    %924 = vmatprep.subr.bf16.mxu0 0
    %925 = vmatpush1.bf16.xpose.msra.mxu0 0
    %926 = vmatprep.subr.bf16.mxu0 0
    %927 = vmatpush1.bf16.xpose.msra.mxu0 0
    %928 = vmatprep.mubr.bf16.mxu0 0
    %929 = vmatmul.mubr.bf16.gmra.mrb[0].mxu0 %v891
    %v930 = vpop.f32.mrb[0].mxu0
    %v931 = vadd.f32 0.0, %v930
    %v932 = vpop.f32.mrb[0].mxu0
    %v933 = vpop.f32.mrb[0].mxu0
    %v934 = vpop.f32.mrb[0].mxu0
    %935 = vdwg.mxu0
    %v936 = vsel %vm819, %v931, -inf
    %937 = vmax.xlane.f32.xlu0 %v936
    %v938 = vpop.xlane.xlu0 %937
    %v939 = vsub.f32 %v931, %v938
    %v940 = vmul.f32 %v939, 1.442695
    %v941 = vpow.pop %v940
    %v942 = vsel %vm819, %v941, 0.0
    %943 = vadd.xlane.f32.xlu0 %v942
    %v944 = vpop.xlane.xlu0 %943
    %v945 = vrcp.pop %v944
    %v946 = vmul.f32 %v941, %v945
    %v947 = vpack.c.bf16 %v946, %v946
    %949 = vrot.lane.b32.xlu0 %v768, 112
    %v950 = vpop.permute.xlu0 %949
    %v952 = vsel %vm832, %v947, 0
    %v955 = vand.u32 %v950, %v839
    %957 = vmatprep.subr.bf16.mxu0 0
    %958 = vmatpush1.bf16.msra.mxu0 %v955
    %959 = vmatprep.subr.bf16.mxu0 0
    %960 = vmatpush1.bf16.msra.mxu0 0
    %961 = vmatprep.subr.bf16.mxu0 0
    %962 = vmatpush1.bf16.msra.mxu0 0
    %963 = vmatprep.subr.bf16.mxu0 0
    %964 = vmatpush1.bf16.msra.mxu0 0
    %965 = vmatprep.subr.bf16.mxu0 0
    %966 = vmatpush1.bf16.msra.mxu0 0
    %967 = vmatprep.subr.bf16.mxu0 0
    %968 = vmatpush1.bf16.msra.mxu0 0
    %969 = vmatprep.subr.bf16.mxu0 0
    %970 = vmatpush1.bf16.msra.mxu0 0
    %971 = vmatprep.subr.bf16.mxu0 0
    %972 = vmatpush1.bf16.msra.mxu0 0
    %973 = vmatprep.subr.bf16.mxu0 0
    %974 = vmatpush1.bf16.msra.mxu0 0
    %975 = vmatprep.subr.bf16.mxu0 0
    %976 = vmatpush1.bf16.msra.mxu0 0
    %977 = vmatprep.subr.bf16.mxu0 0
    %978 = vmatpush1.bf16.msra.mxu0 0
    %979 = vmatprep.subr.bf16.mxu0 0
    %980 = vmatpush1.bf16.msra.mxu0 0
    %981 = vmatprep.subr.bf16.mxu0 0
    %982 = vmatpush1.bf16.msra.mxu0 0
    %983 = vmatprep.subr.bf16.mxu0 0
    %984 = vmatpush1.bf16.msra.mxu0 0
    %985 = vmatprep.subr.bf16.mxu0 0
    %986 = vmatpush1.bf16.msra.mxu0 0
    %987 = vmatprep.subr.bf16.mxu0 0
    %988 = vmatpush1.bf16.msra.mxu0 0
    %989 = vmatprep.mubr.bf16.mxu0 0
    %990 = vmatmul.mubr.bf16.gmra.mrb[0].mxu0 %v952
    %v991 = vpop.f32.mrb[0].mxu0
    %v992 = vadd.f32 0.0, %v991
    %v993 = vpop.f32.mrb[0].mxu0
    %v994 = vpop.f32.mrb[0].mxu0
    %v995 = vpop.f32.mrb[0].mxu0
    %996 = vdwg.mxu0
    %998 = vrot.lane.b32.xlu0 %v992, 16
    %v999 = vpop.permute.xlu0 %998
    %vm1001 = vcmask 258176
    %1002 = vst.msk [vmem:[#allocation2] sm:$0x1f] %vm1001, %v999
    %1003 = vrot.lane.b32.xlu0 %v766, 96
    %v1004 = vpop.permute.xlu0 %1003
    %1005 = vrot.lane.b32.xlu0 %v767, 32
    %v1006 = vpop.permute.xlu0 %1005
    %v1008 = vsel %vm772, %v1004, 0
    %v1011 = vsel %vm772, %v1006, 0
    %1013 = vmatprep.subr.bf16.mxu0 0
    %1014 = vmatpush1.bf16.xpose.msra.mxu0 %v1011
    %1015 = vmatprep.subr.bf16.mxu0 0
    %1016 = vmatpush1.bf16.xpose.msra.mxu0 0
    %1017 = vmatprep.subr.bf16.mxu0 0
    %1018 = vmatpush1.bf16.xpose.msra.mxu0 0
    %1019 = vmatprep.subr.bf16.mxu0 0
    %1020 = vmatpush1.bf16.xpose.msra.mxu0 0
    %1021 = vmatprep.subr.bf16.mxu0 0
    %1022 = vmatpush1.bf16.xpose.msra.mxu0 0
    %1023 = vmatprep.subr.bf16.mxu0 0
    %1024 = vmatpush1.bf16.xpose.msra.mxu0 0
    %1025 = vmatprep.subr.bf16.mxu0 0
    %1026 = vmatpush1.bf16.xpose.msra.mxu0 0
    %1027 = vmatprep.subr.bf16.mxu0 0
    %1028 = vmatpush1.bf16.xpose.msra.mxu0 0
    %1029 = vmatprep.subr.bf16.mxu0 0
    %1030 = vmatpush1.bf16.xpose.msra.mxu0 0
    %1031 = vmatprep.subr.bf16.mxu0 0
    %1032 = vmatpush1.bf16.xpose.msra.mxu0 0
    %1033 = vmatprep.subr.bf16.mxu0 0
    %1034 = vmatpush1.bf16.xpose.msra.mxu0 0
    %1035 = vmatprep.subr.bf16.mxu0 0
    %1036 = vmatpush1.bf16.xpose.msra.mxu0 0
    %1037 = vmatprep.subr.bf16.mxu0 0
    %1038 = vmatpush1.bf16.xpose.msra.mxu0 0
    %1039 = vmatprep.subr.bf16.mxu0 0
    %1040 = vmatpush1.bf16.xpose.msra.mxu0 0
    %1041 = vmatprep.subr.bf16.mxu0 0
    %1042 = vmatpush1.bf16.xpose.msra.mxu0 0
    %1043 = vmatprep.subr.bf16.mxu0 0
    %1044 = vmatpush1.bf16.xpose.msra.mxu0 0
    %1045 = vmatprep.mubr.bf16.mxu0 0
    %1046 = vmatmul.mubr.bf16.gmra.mrb[0].mxu0 %v1008
    %v1047 = vpop.f32.mrb[0].mxu0
    %v1048 = vadd.f32 0.0, %v1047
    %v1049 = vpop.f32.mrb[0].mxu0
    %v1050 = vpop.f32.mrb[0].mxu0
    %v1051 = vpop.f32.mrb[0].mxu0
    %1052 = vdwg.mxu0
    %v1053 = vsel %vm819, %v1048, -inf
    %1054 = vmax.xlane.f32.xlu0 %v1053
    %v1055 = vpop.xlane.xlu0 %1054
    %v1056 = vsub.f32 %v1048, %v1055
    %v1057 = vmul.f32 %v1056, 1.442695
    %v1058 = vpow.pop %v1057
    %v1059 = vsel %vm819, %v1058, 0.0
    %1060 = vadd.xlane.f32.xlu0 %v1059
    %v1061 = vpop.xlane.xlu0 %1060
    %v1062 = vrcp.pop %v1061
    %v1063 = vmul.f32 %v1058, %v1062
    %v1064 = vpack.c.bf16 %v1063, %v1063
    %1065 = vrot.lane.b32.xlu0 %v768, 96
    %v1066 = vpop.permute.xlu0 %1065
    %v1068 = vsel %vm832, %v1064, 0
    %v1071 = vand.u32 %v1066, %v839
    %1073 = vmatprep.subr.bf16.mxu0 0
    %1074 = vmatpush1.bf16.msra.mxu0 %v1071
    %1075 = vmatprep.subr.bf16.mxu0 0
    %1076 = vmatpush1.bf16.msra.mxu0 0
    %1077 = vmatprep.subr.bf16.mxu0 0
    %1078 = vmatpush1.bf16.msra.mxu0 0
    %1079 = vmatprep.subr.bf16.mxu0 0
    %1080 = vmatpush1.bf16.msra.mxu0 0
    %1081 = vmatprep.subr.bf16.mxu0 0
    %1082 = vmatpush1.bf16.msra.mxu0 0
    %1083 = vmatprep.subr.bf16.mxu0 0
    %1084 = vmatpush1.bf16.msra.mxu0 0
    %1085 = vmatprep.subr.bf16.mxu0 0
    %1086 = vmatpush1.bf16.msra.mxu0 0
    %1087 = vmatprep.subr.bf16.mxu0 0
    %1088 = vmatpush1.bf16.msra.mxu0 0
    %1089 = vmatprep.subr.bf16.mxu0 0
    %1090 = vmatpush1.bf16.msra.mxu0 0
    %1091 = vmatprep.subr.bf16.mxu0 0
    %1092 = vmatpush1.bf16.msra.mxu0 0
    %1093 = vmatprep.subr.bf16.mxu0 0
    %1094 = vmatpush1.bf16.msra.mxu0 0
    %1095 = vmatprep.subr.bf16.mxu0 0
    %1096 = vmatpush1.bf16.msra.mxu0 0
    %1097 = vmatprep.subr.bf16.mxu0 0
    %1098 = vmatpush1.bf16.msra.mxu0 0
    %1099 = vmatprep.subr.bf16.mxu0 0
    %1100 = vmatpush1.bf16.msra.mxu0 0
    %1101 = vmatprep.subr.bf16.mxu0 0
    %1102 = vmatpush1.bf16.msra.mxu0 0
    %1103 = vmatprep.subr.bf16.mxu0 0
    %1104 = vmatpush1.bf16.msra.mxu0 0
    %1105 = vmatprep.mubr.bf16.mxu0 0
    %1106 = vmatmul.mubr.bf16.gmra.mrb[0].mxu0 %v1068
    %v1107 = vpop.f32.mrb[0].mxu0
    %v1108 = vadd.f32 0.0, %v1107
    %v1109 = vpop.f32.mrb[0].mxu0
    %v1110 = vpop.f32.mrb[0].mxu0
    %v1111 = vpop.f32.mrb[0].mxu0
    %1112 = vdwg.mxu0
    %1114 = vrot.lane.b32.xlu0 %v1108, 32
    %v1115 = vpop.permute.xlu0 %1114
    %vm1117 = vcmask 389376
    %1118 = vst.msk [vmem:[#allocation2] sm:$0x1f] %vm1117, %v1115
    %1119 = vrot.lane.b32.xlu0 %v766, 80
    %v1120 = vpop.permute.xlu0 %1119
    %1121 = vrot.lane.b32.xlu0 %v767, 16
    %v1122 = vpop.permute.xlu0 %1121
    %v1124 = vsel %vm772, %v1120, 0
    %v1127 = vsel %vm772, %v1122, 0
    %1129 = vmatprep.subr.bf16.mxu0 0
    %1130 = vmatpush1.bf16.xpose.msra.mxu0 %v1127
    %1131 = vmatprep.subr.bf16.mxu0 0
    %1132 = vmatpush1.bf16.xpose.msra.mxu0 0
    %1133 = vmatprep.subr.bf16.mxu0 0
    %1134 = vmatpush1.bf16.xpose.msra.mxu0 0
    %1135 = vmatprep.subr.bf16.mxu0 0
    %1136 = vmatpush1.bf16.xpose.msra.mxu0 0
    %1137 = vmatprep.subr.bf16.mxu0 0
    %1138 = vmatpush1.bf16.xpose.msra.mxu0 0
    %1139 = vmatprep.subr.bf16.mxu0 0
    %1140 = vmatpush1.bf16.xpose.msra.mxu0 0
    %1141 = vmatprep.subr.bf16.mxu0 0
    %1142 = vmatpush1.bf16.xpose.msra.mxu0 0
    %1143 = vmatprep.subr.bf16.mxu0 0
    %1144 = vmatpush1.bf16.xpose.msra.mxu0 0
    %1145 = vmatprep.subr.bf16.mxu0 0
    %1146 = vmatpush1.bf16.xpose.msra.mxu0 0
    %1147 = vmatprep.subr.bf16.mxu0 0
    %1148 = vmatpush1.bf16.xpose.msra.mxu0 0
    %1149 = vmatprep.subr.bf16.mxu0 0
    %1150 = vmatpush1.bf16.xpose.msra.mxu0 0
    %1151 = vmatprep.subr.bf16.mxu0 0
    %1152 = vmatpush1.bf16.xpose.msra.mxu0 0
    %1153 = vmatprep.subr.bf16.mxu0 0
    %1154 = vmatpush1.bf16.xpose.msra.mxu0 0
    %1155 = vmatprep.subr.bf16.mxu0 0
    %1156 = vmatpush1.bf16.xpose.msra.mxu0 0
    %1157 = vmatprep.subr.bf16.mxu0 0
    %1158 = vmatpush1.bf16.xpose.msra.mxu0 0
    %1159 = vmatprep.subr.bf16.mxu0 0
    %1160 = vmatpush1.bf16.xpose.msra.mxu0 0
    %1161 = vmatprep.mubr.bf16.mxu0 0
    %1162 = vmatmul.mubr.bf16.gmra.mrb[0].mxu0 %v1124
    %v1163 = vpop.f32.mrb[0].mxu0
    %v1164 = vadd.f32 0.0, %v1163
    %v1165 = vpop.f32.mrb[0].mxu0
    %v1166 = vpop.f32.mrb[0].mxu0
    %v1167 = vpop.f32.mrb[0].mxu0
    %1168 = vdwg.mxu0
    %v1169 = vsel %vm819, %v1164, -inf
    %1170 = vmax.xlane.f32.xlu0 %v1169
    %v1171 = vpop.xlane.xlu0 %1170
    %v1172 = vsub.f32 %v1164, %v1171
    %v1173 = vmul.f32 %v1172, 1.442695
    %v1174 = vpow.pop %v1173
    %v1175 = vsel %vm819, %v1174, 0.0
    %1176 = vadd.xlane.f32.xlu0 %v1175
    %v1177 = vpop.xlane.xlu0 %1176
    %v1178 = vrcp.pop %v1177
    %v1179 = vmul.f32 %v1174, %v1178
    %v1180 = vpack.c.bf16 %v1179, %v1179
    %1181 = vrot.lane.b32.xlu0 %v768, 80
    %v1182 = vpop.permute.xlu0 %1181
    %v1184 = vsel %vm832, %v1180, 0
    %v1187 = vand.u32 %v1182, %v839
    %1189 = vmatprep.subr.bf16.mxu0 0
    %1190 = vmatpush1.bf16.msra.mxu0 %v1187
    %1191 = vmatprep.subr.bf16.mxu0 0
    %1192 = vmatpush1.bf16.msra.mxu0 0
    %1193 = vmatprep.subr.bf16.mxu0 0
    %1194 = vmatpush1.bf16.msra.mxu0 0
    %1195 = vmatprep.subr.bf16.mxu0 0
    %1196 = vmatpush1.bf16.msra.mxu0 0
    %1197 = vmatprep.subr.bf16.mxu0 0
    %1198 = vmatpush1.bf16.msra.mxu0 0
    %1199 = vmatprep.subr.bf16.mxu0 0
    %1200 = vmatpush1.bf16.msra.mxu0 0
    %1201 = vmatprep.subr.bf16.mxu0 0
    %1202 = vmatpush1.bf16.msra.mxu0 0
    %1203 = vmatprep.subr.bf16.mxu0 0
    %1204 = vmatpush1.bf16.msra.mxu0 0
    %1205 = vmatprep.subr.bf16.mxu0 0
    %1206 = vmatpush1.bf16.msra.mxu0 0
    %1207 = vmatprep.subr.bf16.mxu0 0
    %1208 = vmatpush1.bf16.msra.mxu0 0
    %1209 = vmatprep.subr.bf16.mxu0 0
    %1210 = vmatpush1.bf16.msra.mxu0 0
    %1211 = vmatprep.subr.bf16.mxu0 0
    %1212 = vmatpush1.bf16.msra.mxu0 0
    %1213 = vmatprep.subr.bf16.mxu0 0
    %1214 = vmatpush1.bf16.msra.mxu0 0
    %1215 = vmatprep.subr.bf16.mxu0 0
    %1216 = vmatpush1.bf16.msra.mxu0 0
    %1217 = vmatprep.subr.bf16.mxu0 0
    %1218 = vmatpush1.bf16.msra.mxu0 0
    %1219 = vmatprep.subr.bf16.mxu0 0
    %1220 = vmatpush1.bf16.msra.mxu0 0
    %1221 = vmatprep.mubr.bf16.mxu0 0
    %1222 = vmatmul.mubr.bf16.gmra.mrb[0].mxu0 %v1184
    %v1223 = vpop.f32.mrb[0].mxu0
    %v1224 = vadd.f32 0.0, %v1223
    %v1225 = vpop.f32.mrb[0].mxu0
    %v1226 = vpop.f32.mrb[0].mxu0
    %v1227 = vpop.f32.mrb[0].mxu0
    %1228 = vdwg.mxu0
    %1230 = vrot.lane.b32.xlu0 %v1224, 48
    %v1231 = vpop.permute.xlu0 %1230
    %vm1233 = vcmask 520576
    %1234 = vst.msk [vmem:[#allocation2] sm:$0x1f] %vm1233, %v1231
    %v1235 = vmul.f32 %v761, 0.25
    %v1236 = vpack.c.bf16 %v1235, %v765
    %v1237 = vpack.c.bf16 %v761, %v757
    %v1238 = vpack.c.bf16 %v763, %v759
    %v1240 = vshrl.u32 %v1236, 16
    %v1242 = vrot.slane %v1240, 2
    %v1243 = vshll.u32 %v1236, 16
    %v1245 = vrot.slane %v1243, 3
    %v1246 = vor.u32 %v1242, %v1245
    %v1248 = vshrl.u32 %v1237, 16
    %v1250 = vrot.slane %v1248, 2
    %v1251 = vshll.u32 %v1237, 16
    %v1253 = vrot.slane %v1251, 3
    %v1254 = vor.u32 %v1250, %v1253
    %1255 = vrot.lane.b32.xlu0 %v1254, 64
    %v1256 = vpop.permute.xlu0 %1255
    %v1258 = vsel %vm772, %v1246, 0
    %v1261 = vsel %vm772, %v1256, 0
    %1263 = vmatprep.subr.bf16.mxu0 0
    %1264 = vmatpush1.bf16.xpose.msra.mxu0 %v1261
    %1265 = vmatprep.subr.bf16.mxu0 0
    %1266 = vmatpush1.bf16.xpose.msra.mxu0 0
    %1267 = vmatprep.subr.bf16.mxu0 0
    %1268 = vmatpush1.bf16.xpose.msra.mxu0 0
    %1269 = vmatprep.subr.bf16.mxu0 0
    %1270 = vmatpush1.bf16.xpose.msra.mxu0 0
    %1271 = vmatprep.subr.bf16.mxu0 0
    %1272 = vmatpush1.bf16.xpose.msra.mxu0 0
    %1273 = vmatprep.subr.bf16.mxu0 0
    %1274 = vmatpush1.bf16.xpose.msra.mxu0 0
    %1275 = vmatprep.subr.bf16.mxu0 0
    %1276 = vmatpush1.bf16.xpose.msra.mxu0 0
    %1277 = vmatprep.subr.bf16.mxu0 0
    %1278 = vmatpush1.bf16.xpose.msra.mxu0 0
    %1279 = vmatprep.subr.bf16.mxu0 0
    %1280 = vmatpush1.bf16.xpose.msra.mxu0 0
    %1281 = vmatprep.subr.bf16.mxu0 0
    %1282 = vmatpush1.bf16.xpose.msra.mxu0 0
    %1283 = vmatprep.subr.bf16.mxu0 0
    %1284 = vmatpush1.bf16.xpose.msra.mxu0 0
    %1285 = vmatprep.subr.bf16.mxu0 0
    %1286 = vmatpush1.bf16.xpose.msra.mxu0 0
    %1287 = vmatprep.subr.bf16.mxu0 0
    %1288 = vmatpush1.bf16.xpose.msra.mxu0 0
    %1289 = vmatprep.subr.bf16.mxu0 0
    %1290 = vmatpush1.bf16.xpose.msra.mxu0 0
    %1291 = vmatprep.subr.bf16.mxu0 0
    %1292 = vmatpush1.bf16.xpose.msra.mxu0 0
    %1293 = vmatprep.subr.bf16.mxu0 0
    %1294 = vmatpush1.bf16.xpose.msra.mxu0 0
    %1295 = vmatprep.mubr.bf16.mxu0 0
    %1296 = vmatmul.mubr.bf16.gmra.mrb[0].mxu0 %v1258
    %v1297 = vpop.f32.mrb[0].mxu0
    %v1298 = vadd.f32 0.0, %v1297
    %v1299 = vpop.f32.mrb[0].mxu0
    %v1300 = vpop.f32.mrb[0].mxu0
    %v1301 = vpop.f32.mrb[0].mxu0
    %1302 = vdwg.mxu0
    %v1303 = vsel %vm819, %v1298, -inf
    %1304 = vmax.xlane.f32.xlu0 %v1303
    %v1305 = vpop.xlane.xlu0 %1304
    %v1306 = vsub.f32 %v1298, %v1305
    %v1307 = vmul.f32 %v1306, 1.442695
    %v1308 = vpow.pop %v1307
    %v1309 = vsel %vm819, %v1308, 0.0
    %1310 = vadd.xlane.f32.xlu0 %v1309
    %v1311 = vpop.xlane.xlu0 %1310
    %v1312 = vrcp.pop %v1311
    %v1313 = vmul.f32 %v1308, %v1312
    %v1314 = vpack.c.bf16 %v1313, %v1313
    %v1316 = vshrl.u32 %v1238, 16
    %v1318 = vrot.slane %v1316, 2
    %v1319 = vshll.u32 %v1238, 16
    %v1321 = vrot.slane %v1319, 3
    %v1322 = vor.u32 %v1318, %v1321
    %v1324 = vsel %vm832, %v1314, 0
    %v1327 = vand.u32 %v1322, %v839
    %1329 = vmatprep.subr.bf16.mxu0 0
    %1330 = vmatpush1.bf16.msra.mxu0 %v1327
    %1331 = vmatprep.subr.bf16.mxu0 0
    %1332 = vmatpush1.bf16.msra.mxu0 0
    %1333 = vmatprep.subr.bf16.mxu0 0
    %1334 = vmatpush1.bf16.msra.mxu0 0
    %1335 = vmatprep.subr.bf16.mxu0 0
    %1336 = vmatpush1.bf16.msra.mxu0 0
    %1337 = vmatprep.subr.bf16.mxu0 0
    %1338 = vmatpush1.bf16.msra.mxu0 0
    %1339 = vmatprep.subr.bf16.mxu0 0
    %1340 = vmatpush1.bf16.msra.mxu0 0
    %1341 = vmatprep.subr.bf16.mxu0 0
    %1342 = vmatpush1.bf16.msra.mxu0 0
    %1343 = vmatprep.subr.bf16.mxu0 0
    %1344 = vmatpush1.bf16.msra.mxu0 0
    %1345 = vmatprep.subr.bf16.mxu0 0
    %1346 = vmatpush1.bf16.msra.mxu0 0
    %1347 = vmatprep.subr.bf16.mxu0 0
    %1348 = vmatpush1.bf16.msra.mxu0 0
    %1349 = vmatprep.subr.bf16.mxu0 0
    %1350 = vmatpush1.bf16.msra.mxu0 0
    %1351 = vmatprep.subr.bf16.mxu0 0
    %1352 = vmatpush1.bf16.msra.mxu0 0
    %1353 = vmatprep.subr.bf16.mxu0 0
    %1354 = vmatpush1.bf16.msra.mxu0 0
    %1355 = vmatprep.subr.bf16.mxu0 0
    %1356 = vmatpush1.bf16.msra.mxu0 0
    %1357 = vmatprep.subr.bf16.mxu0 0
    %1358 = vmatpush1.bf16.msra.mxu0 0
    %1359 = vmatprep.subr.bf16.mxu0 0
    %1360 = vmatpush1.bf16.msra.mxu0 0
    %1361 = vmatprep.mubr.bf16.mxu0 0
    %1362 = vmatmul.mubr.bf16.gmra.mrb[0].mxu0 %v1324
    %v1363 = vpop.f32.mrb[0].mxu0
    %v1364 = vadd.f32 0.0, %v1363
    %v1365 = vpop.f32.mrb[0].mxu0
    %v1366 = vpop.f32.mrb[0].mxu0
    %v1367 = vpop.f32.mrb[0].mxu0
    %1368 = vdwg.mxu0
    %1369 = vst.msk [vmem:[#allocation2 + $0x5] sm:$0x1f] %vm883, %v1364
    %1370 = vrot.lane.b32.xlu0 %v1246, 112
    %v1371 = vpop.permute.xlu0 %1370
    %1372 = vrot.lane.b32.xlu0 %v1254, 48
    %v1373 = vpop.permute.xlu0 %1372
    %v1375 = vsel %vm772, %v1371, 0
    %v1378 = vsel %vm772, %v1373, 0
    %1380 = vmatprep.subr.bf16.mxu0 0
    %1381 = vmatpush1.bf16.xpose.msra.mxu0 %v1378
    %1382 = vmatprep.subr.bf16.mxu0 0
    %1383 = vmatpush1.bf16.xpose.msra.mxu0 0
    %1384 = vmatprep.subr.bf16.mxu0 0
    %1385 = vmatpush1.bf16.xpose.msra.mxu0 0
    %1386 = vmatprep.subr.bf16.mxu0 0
    %1387 = vmatpush1.bf16.xpose.msra.mxu0 0
    %1388 = vmatprep.subr.bf16.mxu0 0
    %1389 = vmatpush1.bf16.xpose.msra.mxu0 0
    %1390 = vmatprep.subr.bf16.mxu0 0
    %1391 = vmatpush1.bf16.xpose.msra.mxu0 0
    %1392 = vmatprep.subr.bf16.mxu0 0
    %1393 = vmatpush1.bf16.xpose.msra.mxu0 0
    %1394 = vmatprep.subr.bf16.mxu0 0
    %1395 = vmatpush1.bf16.xpose.msra.mxu0 0
    %1396 = vmatprep.subr.bf16.mxu0 0
    %1397 = vmatpush1.bf16.xpose.msra.mxu0 0
    %1398 = vmatprep.subr.bf16.mxu0 0
    %1399 = vmatpush1.bf16.xpose.msra.mxu0 0
    %1400 = vmatprep.subr.bf16.mxu0 0
    %1401 = vmatpush1.bf16.xpose.msra.mxu0 0
    %1402 = vmatprep.subr.bf16.mxu0 0
    %1403 = vmatpush1.bf16.xpose.msra.mxu0 0
    %1404 = vmatprep.subr.bf16.mxu0 0
    %1405 = vmatpush1.bf16.xpose.msra.mxu0 0
    %1406 = vmatprep.subr.bf16.mxu0 0
    %1407 = vmatpush1.bf16.xpose.msra.mxu0 0
    %1408 = vmatprep.subr.bf16.mxu0 0
    %1409 = vmatpush1.bf16.xpose.msra.mxu0 0
    %1410 = vmatprep.subr.bf16.mxu0 0
    %1411 = vmatpush1.bf16.xpose.msra.mxu0 0
    %1412 = vmatprep.mubr.bf16.mxu0 0
    %1413 = vmatmul.mubr.bf16.gmra.mrb[0].mxu0 %v1375
    %v1414 = vpop.f32.mrb[0].mxu0
    %v1415 = vadd.f32 0.0, %v1414
    %v1416 = vpop.f32.mrb[0].mxu0
    %v1417 = vpop.f32.mrb[0].mxu0
    %v1418 = vpop.f32.mrb[0].mxu0
    %1419 = vdwg.mxu0
    %v1420 = vsel %vm819, %v1415, -inf
    %1421 = vmax.xlane.f32.xlu0 %v1420
    %v1422 = vpop.xlane.xlu0 %1421
    %v1423 = vsub.f32 %v1415, %v1422
    %v1424 = vmul.f32 %v1423, 1.442695
    %v1425 = vpow.pop %v1424
    %v1426 = vsel %vm819, %v1425, 0.0
    %1427 = vadd.xlane.f32.xlu0 %v1426
    %v1428 = vpop.xlane.xlu0 %1427
    %v1429 = vrcp.pop %v1428
    %v1430 = vmul.f32 %v1425, %v1429
    %v1431 = vpack.c.bf16 %v1430, %v1430
    %1432 = vrot.lane.b32.xlu0 %v1322, 112
    %v1433 = vpop.permute.xlu0 %1432
    %v1435 = vsel %vm832, %v1431, 0
    %v1438 = vand.u32 %v1433, %v839
    %1440 = vmatprep.subr.bf16.mxu0 0
    %1441 = vmatpush1.bf16.msra.mxu0 %v1438
    %1442 = vmatprep.subr.bf16.mxu0 0
    %1443 = vmatpush1.bf16.msra.mxu0 0
    %1444 = vmatprep.subr.bf16.mxu0 0
    %1445 = vmatpush1.bf16.msra.mxu0 0
    %1446 = vmatprep.subr.bf16.mxu0 0
    %1447 = vmatpush1.bf16.msra.mxu0 0
    %1448 = vmatprep.subr.bf16.mxu0 0
    %1449 = vmatpush1.bf16.msra.mxu0 0
    %1450 = vmatprep.subr.bf16.mxu0 0
    %1451 = vmatpush1.bf16.msra.mxu0 0
    %1452 = vmatprep.subr.bf16.mxu0 0
    %1453 = vmatpush1.bf16.msra.mxu0 0
    %1454 = vmatprep.subr.bf16.mxu0 0
    %1455 = vmatpush1.bf16.msra.mxu0 0
    %1456 = vmatprep.subr.bf16.mxu0 0
    %1457 = vmatpush1.bf16.msra.mxu0 0
    %1458 = vmatprep.subr.bf16.mxu0 0
    %1459 = vmatpush1.bf16.msra.mxu0 0
    %1460 = vmatprep.subr.bf16.mxu0 0
    %1461 = vmatpush1.bf16.msra.mxu0 0
    %1462 = vmatprep.subr.bf16.mxu0 0
    %1463 = vmatpush1.bf16.msra.mxu0 0
    %1464 = vmatprep.subr.bf16.mxu0 0
    %1465 = vmatpush1.bf16.msra.mxu0 0
    %1466 = vmatprep.subr.bf16.mxu0 0
    %1467 = vmatpush1.bf16.msra.mxu0 0
    %1468 = vmatprep.subr.bf16.mxu0 0
    %1469 = vmatpush1.bf16.msra.mxu0 0
    %1470 = vmatprep.subr.bf16.mxu0 0
    %1471 = vmatpush1.bf16.msra.mxu0 0
    %1472 = vmatprep.mubr.bf16.mxu0 0
    %1473 = vmatmul.mubr.bf16.gmra.mrb[0].mxu0 %v1435
    %v1474 = vpop.f32.mrb[0].mxu0
    %v1475 = vadd.f32 0.0, %v1474
    %v1476 = vpop.f32.mrb[0].mxu0
    %v1477 = vpop.f32.mrb[0].mxu0
    %v1478 = vpop.f32.mrb[0].mxu0
    %1479 = vdwg.mxu0
    %1481 = vrot.lane.b32.xlu0 %v1475, 16
    %v1482 = vpop.permute.xlu0 %1481
    %1484 = vst.msk [vmem:[#allocation2 + $0x5] sm:$0x1f] %vm1001, %v1482
    %1485 = vrot.lane.b32.xlu0 %v1246, 96
    %v1486 = vpop.permute.xlu0 %1485
    %1487 = vrot.lane.b32.xlu0 %v1254, 32
    %v1488 = vpop.permute.xlu0 %1487
    %v1490 = vsel %vm772, %v1486, 0
    %v1493 = vsel %vm772, %v1488, 0
    %1495 = vmatprep.subr.bf16.mxu0 0
    %1496 = vmatpush1.bf16.xpose.msra.mxu0 %v1493
    %1497 = vmatprep.subr.bf16.mxu0 0
    %1498 = vmatpush1.bf16.xpose.msra.mxu0 0
    %1499 = vmatprep.subr.bf16.mxu0 0
    %1500 = vmatpush1.bf16.xpose.msra.mxu0 0
    %1501 = vmatprep.subr.bf16.mxu0 0
    %1502 = vmatpush1.bf16.xpose.msra.mxu0 0
    %1503 = vmatprep.subr.bf16.mxu0 0
    %1504 = vmatpush1.bf16.xpose.msra.mxu0 0
    %1505 = vmatprep.subr.bf16.mxu0 0
    %1506 = vmatpush1.bf16.xpose.msra.mxu0 0
    %1507 = vmatprep.subr.bf16.mxu0 0
    %1508 = vmatpush1.bf16.xpose.msra.mxu0 0
    %1509 = vmatprep.subr.bf16.mxu0 0
    %1510 = vmatpush1.bf16.xpose.msra.mxu0 0
    %1511 = vmatprep.subr.bf16.mxu0 0
    %1512 = vmatpush1.bf16.xpose.msra.mxu0 0
    %1513 = vmatprep.subr.bf16.mxu0 0
    %1514 = vmatpush1.bf16.xpose.msra.mxu0 0
    %1515 = vmatprep.subr.bf16.mxu0 0
    %1516 = vmatpush1.bf16.xpose.msra.mxu0 0
    %1517 = vmatprep.subr.bf16.mxu0 0
    %1518 = vmatpush1.bf16.xpose.msra.mxu0 0
    %1519 = vmatprep.subr.bf16.mxu0 0
    %1520 = vmatpush1.bf16.xpose.msra.mxu0 0
    %1521 = vmatprep.subr.bf16.mxu0 0
    %1522 = vmatpush1.bf16.xpose.msra.mxu0 0
    %1523 = vmatprep.subr.bf16.mxu0 0
    %1524 = vmatpush1.bf16.xpose.msra.mxu0 0
    %1525 = vmatprep.subr.bf16.mxu0 0
    %1526 = vmatpush1.bf16.xpose.msra.mxu0 0
    %1527 = vmatprep.mubr.bf16.mxu0 0
    %1528 = vmatmul.mubr.bf16.gmra.mrb[0].mxu0 %v1490
    %v1529 = vpop.f32.mrb[0].mxu0
    %v1530 = vadd.f32 0.0, %v1529
    %v1531 = vpop.f32.mrb[0].mxu0
    %v1532 = vpop.f32.mrb[0].mxu0
    %v1533 = vpop.f32.mrb[0].mxu0
    %1534 = vdwg.mxu0
    %v1535 = vsel %vm819, %v1530, -inf
    %1536 = vmax.xlane.f32.xlu0 %v1535
    %v1537 = vpop.xlane.xlu0 %1536
    %v1538 = vsub.f32 %v1530, %v1537
    %v1539 = vmul.f32 %v1538, 1.442695
    %v1540 = vpow.pop %v1539
    %v1541 = vsel %vm819, %v1540, 0.0
    %1542 = vadd.xlane.f32.xlu0 %v1541
    %v1543 = vpop.xlane.xlu0 %1542
    %v1544 = vrcp.pop %v1543
    %v1545 = vmul.f32 %v1540, %v1544
    %v1546 = vpack.c.bf16 %v1545, %v1545
    %1547 = vrot.lane.b32.xlu0 %v1322, 96
    %v1548 = vpop.permute.xlu0 %1547
    %v1550 = vsel %vm832, %v1546, 0
    %v1553 = vand.u32 %v1548, %v839
    %1555 = vmatprep.subr.bf16.mxu0 0
    %1556 = vmatpush1.bf16.msra.mxu0 %v1553
    %1557 = vmatprep.subr.bf16.mxu0 0
    %1558 = vmatpush1.bf16.msra.mxu0 0
    %1559 = vmatprep.subr.bf16.mxu0 0
    %1560 = vmatpush1.bf16.msra.mxu0 0
    %1561 = vmatprep.subr.bf16.mxu0 0
    %1562 = vmatpush1.bf16.msra.mxu0 0
    %1563 = vmatprep.subr.bf16.mxu0 0
    %1564 = vmatpush1.bf16.msra.mxu0 0
    %1565 = vmatprep.subr.bf16.mxu0 0
    %1566 = vmatpush1.bf16.msra.mxu0 0
    %1567 = vmatprep.subr.bf16.mxu0 0
    %1568 = vmatpush1.bf16.msra.mxu0 0
    %1569 = vmatprep.subr.bf16.mxu0 0
    %1570 = vmatpush1.bf16.msra.mxu0 0
    %1571 = vmatprep.subr.bf16.mxu0 0
    %1572 = vmatpush1.bf16.msra.mxu0 0
    %1573 = vmatprep.subr.bf16.mxu0 0
    %1574 = vmatpush1.bf16.msra.mxu0 0
    %1575 = vmatprep.subr.bf16.mxu0 0
    %1576 = vmatpush1.bf16.msra.mxu0 0
    %1577 = vmatprep.subr.bf16.mxu0 0
    %1578 = vmatpush1.bf16.msra.mxu0 0
    %1579 = vmatprep.subr.bf16.mxu0 0
    %1580 = vmatpush1.bf16.msra.mxu0 0
    %1581 = vmatprep.subr.bf16.mxu0 0
    %1582 = vmatpush1.bf16.msra.mxu0 0
    %1583 = vmatprep.subr.bf16.mxu0 0
    %1584 = vmatpush1.bf16.msra.mxu0 0
    %1585 = vmatprep.subr.bf16.mxu0 0
    %1586 = vmatpush1.bf16.msra.mxu0 0
    %1587 = vmatprep.mubr.bf16.mxu0 0
    %1588 = vmatmul.mubr.bf16.gmra.mrb[0].mxu0 %v1550
    %v1589 = vpop.f32.mrb[0].mxu0
    %v1590 = vadd.f32 0.0, %v1589
    %v1591 = vpop.f32.mrb[0].mxu0
    %v1592 = vpop.f32.mrb[0].mxu0
    %v1593 = vpop.f32.mrb[0].mxu0
    %1594 = vdwg.mxu0
    %1596 = vrot.lane.b32.xlu0 %v1590, 32
    %v1597 = vpop.permute.xlu0 %1596
    %1599 = vst.msk [vmem:[#allocation2 + $0x5] sm:$0x1f] %vm1117, %v1597
    %1600 = vrot.lane.b32.xlu0 %v1246, 80
    %v1601 = vpop.permute.xlu0 %1600
    %1602 = vrot.lane.b32.xlu0 %v1254, 16
    %v1603 = vpop.permute.xlu0 %1602
    %v1605 = vsel %vm772, %v1601, 0
    %v1608 = vsel %vm772, %v1603, 0
    %1610 = vmatprep.subr.bf16.mxu0 0
    %1611 = vmatpush1.bf16.xpose.msra.mxu0 %v1608
    %1612 = vmatprep.subr.bf16.mxu0 0
    %1613 = vmatpush1.bf16.xpose.msra.mxu0 0
    %1614 = vmatprep.subr.bf16.mxu0 0
    %1615 = vmatpush1.bf16.xpose.msra.mxu0 0
    %1616 = vmatprep.subr.bf16.mxu0 0
    %1617 = vmatpush1.bf16.xpose.msra.mxu0 0
    %1618 = vmatprep.subr.bf16.mxu0 0
    %1619 = vmatpush1.bf16.xpose.msra.mxu0 0
    %1620 = vmatprep.subr.bf16.mxu0 0
    %1621 = vmatpush1.bf16.xpose.msra.mxu0 0
    %1622 = vmatprep.subr.bf16.mxu0 0
    %1623 = vmatpush1.bf16.xpose.msra.mxu0 0
    %1624 = vmatprep.subr.bf16.mxu0 0
    %1625 = vmatpush1.bf16.xpose.msra.mxu0 0
    %1626 = vmatprep.subr.bf16.mxu0 0
    %1627 = vmatpush1.bf16.xpose.msra.mxu0 0
    %1628 = vmatprep.subr.bf16.mxu0 0
    %1629 = vmatpush1.bf16.xpose.msra.mxu0 0
    %1630 = vmatprep.subr.bf16.mxu0 0
    %1631 = vmatpush1.bf16.xpose.msra.mxu0 0
    %1632 = vmatprep.subr.bf16.mxu0 0
    %1633 = vmatpush1.bf16.xpose.msra.mxu0 0
    %1634 = vmatprep.subr.bf16.mxu0 0
    %1635 = vmatpush1.bf16.xpose.msra.mxu0 0
    %1636 = vmatprep.subr.bf16.mxu0 0
    %1637 = vmatpush1.bf16.xpose.msra.mxu0 0
    %1638 = vmatprep.subr.bf16.mxu0 0
    %1639 = vmatpush1.bf16.xpose.msra.mxu0 0
    %1640 = vmatprep.subr.bf16.mxu0 0
    %1641 = vmatpush1.bf16.xpose.msra.mxu0 0
    %1642 = vmatprep.mubr.bf16.mxu0 0
    %1643 = vmatmul.mubr.bf16.gmra.mrb[0].mxu0 %v1605
    %v1644 = vpop.f32.mrb[0].mxu0
    %v1645 = vadd.f32 0.0, %v1644
    %v1646 = vpop.f32.mrb[0].mxu0
    %v1647 = vpop.f32.mrb[0].mxu0
    %v1648 = vpop.f32.mrb[0].mxu0
    %1649 = vdwg.mxu0
    %v1650 = vsel %vm819, %v1645, -inf
    %1651 = vmax.xlane.f32.xlu0 %v1650
    %v1652 = vpop.xlane.xlu0 %1651
    %v1653 = vsub.f32 %v1645, %v1652
    %v1654 = vmul.f32 %v1653, 1.442695
    %v1655 = vpow.pop %v1654
    %v1656 = vsel %vm819, %v1655, 0.0
    %1657 = vadd.xlane.f32.xlu0 %v1656
    %v1658 = vpop.xlane.xlu0 %1657
    %v1659 = vrcp.pop %v1658
    %v1660 = vmul.f32 %v1655, %v1659
    %v1661 = vpack.c.bf16 %v1660, %v1660
    %1662 = vrot.lane.b32.xlu0 %v1322, 80
    %v1663 = vpop.permute.xlu0 %1662
    %v1665 = vsel %vm832, %v1661, 0
    %v1668 = vand.u32 %v1663, %v839
    %1670 = vmatprep.subr.bf16.mxu0 0
    %1671 = vmatpush1.bf16.msra.mxu0 %v1668
    %1672 = vmatprep.subr.bf16.mxu0 0
    %1673 = vmatpush1.bf16.msra.mxu0 0
    %1674 = vmatprep.subr.bf16.mxu0 0
    %1675 = vmatpush1.bf16.msra.mxu0 0
    %1676 = vmatprep.subr.bf16.mxu0 0
    %1677 = vmatpush1.bf16.msra.mxu0 0
    %1678 = vmatprep.subr.bf16.mxu0 0
    %1679 = vmatpush1.bf16.msra.mxu0 0
    %1680 = vmatprep.subr.bf16.mxu0 0
    %1681 = vmatpush1.bf16.msra.mxu0 0
    %1682 = vmatprep.subr.bf16.mxu0 0
    %1683 = vmatpush1.bf16.msra.mxu0 0
    %1684 = vmatprep.subr.bf16.mxu0 0
    %1685 = vmatpush1.bf16.msra.mxu0 0
    %1686 = vmatprep.subr.bf16.mxu0 0
    %1687 = vmatpush1.bf16.msra.mxu0 0
    %1688 = vmatprep.subr.bf16.mxu0 0
    %1689 = vmatpush1.bf16.msra.mxu0 0
    %1690 = vmatprep.subr.bf16.mxu0 0
    %1691 = vmatpush1.bf16.msra.mxu0 0
    %1692 = vmatprep.subr.bf16.mxu0 0
    %1693 = vmatpush1.bf16.msra.mxu0 0
    %1694 = vmatprep.subr.bf16.mxu0 0
    %1695 = vmatpush1.bf16.msra.mxu0 0
    %1696 = vmatprep.subr.bf16.mxu0 0
    %1697 = vmatpush1.bf16.msra.mxu0 0
    %1698 = vmatprep.subr.bf16.mxu0 0
    %1699 = vmatpush1.bf16.msra.mxu0 0
    %1700 = vmatprep.subr.bf16.mxu0 0
    %1701 = vmatpush1.bf16.msra.mxu0 0
    %1702 = vmatprep.mubr.bf16.mxu0 0
    %1703 = vmatmul.mubr.bf16.gmra.mrb[0].mxu0 %v1665
    %v1704 = vpop.f32.mrb[0].mxu0
    %v1705 = vadd.f32 0.0, %v1704
    %v1706 = vpop.f32.mrb[0].mxu0
    %v1707 = vpop.f32.mrb[0].mxu0
    %v1708 = vpop.f32.mrb[0].mxu0
    %1709 = vdwg.mxu0
    %1711 = vrot.lane.b32.xlu0 %v1705, 48
    %v1712 = vpop.permute.xlu0 %1711
    %1714 = vst.msk [vmem:[#allocation2 + $0x5] sm:$0x1f] %vm1233, %v1712
    %v1715 = vld [vmem:[#allocation2] sm:$0xff]
    %v1716 = vld [vmem:[#allocation2 + $0x8] sm:$0x3]
    %v1717 = vpack.c.bf16 %v1716, %v1715
    %v1718 = vld [vmem:[%s7] sm:$0xf]
    %v1719 = vld [vmem:[%s7 + $0x4] sm:$0xf]
    %v1720 = vld [vmem:[%s7 + $0x8] sm:$0xf]
    %v1721 = vld [vmem:[%s7 + $0xc] sm:$0xf]
    %v1722 = vld [vmem:[%s7 + $0x10] sm:$0xf]
    %v1723 = vld [vmem:[%s7 + $0x14] sm:$0xf]
    %v1724 = vld [vmem:[%s7 + $0x18] sm:$0xf]
    %v1725 = vld [vmem:[%s7 + $0x1c] sm:$0xf]
    %v1726 = vld [vmem:[%s8] sm:$0x1]
    %v1728 = vlaneseq
    %v1729 = vshrl.u32 %v1728, 7
    %v1730 = vsub.s32 0, %v1729
    %v1731 = vrot.slane %v1726, %v1730
    %v1741 = vunpack.c.l.b16 %v1718
    %v1742 = vunpack.c.l.b16 %v1719
    %v1743 = vunpack.c.l.b16 %v1720
    %v1744 = vunpack.c.l.b16 %v1721
    %v1745 = vunpack.c.l.b16 %v1722
    %v1746 = vunpack.c.l.b16 %v1723
    %v1747 = vunpack.c.l.b16 %v1724
    %v1748 = vunpack.c.l.b16 %v1725
    %v1749 = vpack.c.b16 %v1742, %v1741
    %v1750 = vpack.c.b16 %v1744, %v1743
    %v1751 = vpack.c.b16 %v1746, %v1745
    %v1752 = vpack.c.b16 %v1748, %v1747
    %v1758 = vsel %vm613, %v1717, 0
    %1760 = vmatprep.subr.bf16.mxu0 0
    %1761 = vmatpush1.bf16.msra.mxu0 %v1749
    %1762 = vmatprep.subr.bf16.mxu0 0
    %1763 = vmatpush1.bf16.msra.mxu0 %v1750
    %1764 = vmatprep.subr.bf16.mxu0 0
    %1765 = vmatpush1.bf16.msra.mxu0 %v1751
    %1766 = vmatprep.subr.bf16.mxu0 0
    %1767 = vmatpush1.bf16.msra.mxu0 %v1752
    %1768 = vmatprep.subr.bf16.mxu0 0
    %1769 = vmatpush1.bf16.msra.mxu0 0
    %1770 = vmatprep.subr.bf16.mxu0 0
    %1771 = vmatpush1.bf16.msra.mxu0 0
    %1772 = vmatprep.subr.bf16.mxu0 0
    %1773 = vmatpush1.bf16.msra.mxu0 0
    %1774 = vmatprep.subr.bf16.mxu0 0
    %1775 = vmatpush1.bf16.msra.mxu0 0
    %1776 = vmatprep.subr.bf16.mxu0 0
    %1777 = vmatpush1.bf16.msra.mxu0 0
    %1778 = vmatprep.subr.bf16.mxu0 0
    %1779 = vmatpush1.bf16.msra.mxu0 0
    %1780 = vmatprep.subr.bf16.mxu0 0
    %1781 = vmatpush1.bf16.msra.mxu0 0
    %1782 = vmatprep.subr.bf16.mxu0 0
    %1783 = vmatpush1.bf16.msra.mxu0 0
    %1784 = vmatprep.subr.bf16.mxu0 0
    %1785 = vmatpush1.bf16.msra.mxu0 0
    %1786 = vmatprep.subr.bf16.mxu0 0
    %1787 = vmatpush1.bf16.msra.mxu0 0
    %1788 = vmatprep.subr.bf16.mxu0 0
    %1789 = vmatpush1.bf16.msra.mxu0 0
    %1790 = vmatprep.subr.bf16.mxu0 0
    %1791 = vmatpush1.bf16.msra.mxu0 0
    %1792 = vmatprep.mubr.bf16.mxu0 0
    %1793 = vmatmul.mubr.bf16.gmra.mrb[0].mxu0 %v1758
    %v1794 = vpop.f32.mrb[0].mxu0
    %v1795 = vadd.f32 %v1731, %v1794
    %v1796 = vpop.f32.mrb[0].mxu0
    %v1797 = vpop.f32.mrb[0].mxu0
    %v1798 = vadd.f32 %v1731, %v1797
    %v1799 = vpop.f32.mrb[0].mxu0
    %1800 = vdwg.mxu0
    %v1801 = vadd.f32 %v605, %v1795
    %v1802 = vadd.f32 %v608, %v1798
    %v1803 = vld [vmem:[%s9] sm:$0x1]
    %v1804 = vld [vmem:[%s10] sm:$0x1]
    %v1805 = vsel %vm613, %v1801, 0.0
    %1806 = vadd.xlane.f32.xlu0 %v1805
    %v1807 = vpop.xlane.xlu0 %1806
    %v1808 = vsel %vm617, %v1802, 0.0
    %1809 = vadd.xlane.f32.xlu0 %v1808
    %v1810 = vpop.xlane.xlu0 %1809
    %v1811 = vmul.f32 %v1807, %v621
    %v1812 = vmul.f32 %v1810, %v621
    %v1813 = vsub.f32 %v1801, %v1811
    %v1814 = vsub.f32 %v1802, %v1812
    %v1815 = vmul.f32 %v1813, %v1813
    %v1816 = vmul.f32 %v1814, %v1814
    %v1817 = vsel %vm613, %v1815, 0.0
    %1818 = vadd.xlane.f32.xlu0 %v1817
    %v1819 = vpop.xlane.xlu0 %1818
    %v1820 = vsel %vm617, %v1816, 0.0
    %1821 = vadd.xlane.f32.xlu0 %v1820
    %v1822 = vpop.xlane.xlu0 %1821
    %v1823 = vmul.f32 %v1819, %v621
    %v1824 = vmul.f32 %v1822, %v621
    %v1825 = vadd.f32 %v1823, 1e-06
    %v1826 = vadd.f32 %v1824, 1e-06
    %v1827 = vrsqrt.pop %v1825
    %v1828 = vrsqrt.pop %v1826
    %v1829 = vmul.f32 %v1813, %v1827
    %v1830 = vmul.f32 %v1814, %v1828
    %v1832 = vlaneseq
    %v1833 = vshrl.u32 %v1832, 7
    %v1834 = vsub.s32 0, %v1833
    %v1835 = vrot.slane %v1803, %v1834
    %v1837 = vmul.f32 %v1829, %v1835
    %v1838 = vmul.f32 %v1830, %v1835
    %v1840 = vlaneseq
    %v1841 = vshrl.u32 %v1840, 7
    %v1842 = vsub.s32 0, %v1841
    %v1843 = vrot.slane %v1804, %v1842
    %v1845 = vadd.f32 %v1837, %v1843
    %v1846 = vadd.f32 %v1838, %v1843
    %v1847 = vpack.c.bf16 %v1846, %v1845
    %v1848 = vld [vmem:[%s11] sm:$0xff]
    %v1849 = vld [vmem:[%s11 + $0x8] sm:$0xff]
    %v1850 = vld [vmem:[%s11 + $0x10] sm:$0xff]
    %v1851 = vld [vmem:[%s11 + $0x18] sm:$0xff]
    %v1852 = vld [vmem:[%s11 + $0x20] sm:$0xff]
    %v1853 = vld [vmem:[%s11 + $0x28] sm:$0xff]
    %v1854 = vld [vmem:[%s11 + $0x30] sm:$0xff]
    %v1855 = vld [vmem:[%s11 + $0x38] sm:$0xff]
    %v1856 = vld [vmem:[%s12] sm:$0x3]
    %v1858 = vlaneseq
    %v1859 = vshrl.u32 %v1858, 7
    %v1860 = vsub.s32 0, %v1859
    %v1861 = vrot.slane %v1856, %v1860
    %v1862 = vlaneseq
    %v1863 = vshrl.u32 %v1862, 7
    %v1864 = vsub.s32 1, %v1863
    %v1865 = vrot.slane %v1856, %v1864
    %v1876 = vunpack.c.l.b16 %v1848
    %v1877 = vunpack.c.h.b16 %v1848
    %v1878 = vunpack.c.l.b16 %v1849
    %v1879 = vunpack.c.h.b16 %v1849
    %v1880 = vunpack.c.l.b16 %v1850
    %v1881 = vunpack.c.h.b16 %v1850
    %v1882 = vunpack.c.l.b16 %v1851
    %v1883 = vunpack.c.h.b16 %v1851
    %v1884 = vunpack.c.l.b16 %v1852
    %v1885 = vunpack.c.h.b16 %v1852
    %v1886 = vunpack.c.l.b16 %v1853
    %v1887 = vunpack.c.h.b16 %v1853
    %v1888 = vunpack.c.l.b16 %v1854
    %v1889 = vunpack.c.h.b16 %v1854
    %v1890 = vunpack.c.l.b16 %v1855
    %v1891 = vunpack.c.h.b16 %v1855
    %v1892 = vpack.c.b16 %v1878, %v1876
    %v1893 = vpack.c.b16 %v1879, %v1877
    %v1894 = vpack.c.b16 %v1882, %v1880
    %v1895 = vpack.c.b16 %v1883, %v1881
    %v1896 = vpack.c.b16 %v1886, %v1884
    %v1897 = vpack.c.b16 %v1887, %v1885
    %v1898 = vpack.c.b16 %v1890, %v1888
    %v1899 = vpack.c.b16 %v1891, %v1889
    %v1909 = vsel %vm613, %v1847, 0
    %1911 = vmatprep.subr.bf16.mxu0 %v1893
    %1912 = vmatpush1.bf16.msra.mxu0 %v1892
    %1913 = vmatprep.subr.bf16.mxu0 %v1895
    %1914 = vmatpush1.bf16.msra.mxu0 %v1894
    %1915 = vmatprep.subr.bf16.mxu0 %v1897
    %1916 = vmatpush1.bf16.msra.mxu0 %v1896
    %1917 = vmatprep.subr.bf16.mxu0 %v1899
    %1918 = vmatpush1.bf16.msra.mxu0 %v1898
    %1919 = vmatprep.subr.bf16.mxu0 0
    %1920 = vmatpush1.bf16.msra.mxu0 0
    %1921 = vmatprep.subr.bf16.mxu0 0
    %1922 = vmatpush1.bf16.msra.mxu0 0
    %1923 = vmatprep.subr.bf16.mxu0 0
    %1924 = vmatpush1.bf16.msra.mxu0 0
    %1925 = vmatprep.subr.bf16.mxu0 0
    %1926 = vmatpush1.bf16.msra.mxu0 0
    %1927 = vmatprep.subr.bf16.mxu0 0
    %1928 = vmatpush1.bf16.msra.mxu0 0
    %1929 = vmatprep.subr.bf16.mxu0 0
    %1930 = vmatpush1.bf16.msra.mxu0 0
    %1931 = vmatprep.subr.bf16.mxu0 0
    %1932 = vmatpush1.bf16.msra.mxu0 0
    %1933 = vmatprep.subr.bf16.mxu0 0
    %1934 = vmatpush1.bf16.msra.mxu0 0
    %1935 = vmatprep.subr.bf16.mxu0 0
    %1936 = vmatpush1.bf16.msra.mxu0 0
    %1937 = vmatprep.subr.bf16.mxu0 0
    %1938 = vmatpush1.bf16.msra.mxu0 0
    %1939 = vmatprep.subr.bf16.mxu0 0
    %1940 = vmatpush1.bf16.msra.mxu0 0
    %1941 = vmatprep.subr.bf16.mxu0 0
    %1942 = vmatpush1.bf16.msra.mxu0 0
    %1943 = vmatprep.mubr.bf16.mxu0 0
    %1944 = vmatmul.mubr.bf16.gmra.mrb[0].mxu0 %v1909
    %v1945 = vpop.f32.mrb[0].mxu0
    %v1946 = vadd.f32 %v1861, %v1945
    %v1947 = vpop.f32.mrb[0].mxu0
    %v1948 = vadd.f32 %v1865, %v1947
    %v1949 = vpop.f32.mrb[0].mxu0
    %v1950 = vadd.f32 %v1861, %v1949
    %v1951 = vpop.f32.mrb[0].mxu0
    %v1952 = vadd.f32 %v1865, %v1951
    %1953 = vdwg.mxu0
    %v1954 = vmul.f32 %v1946, %v1946
    %v1955 = vmul.f32 %v1948, %v1948
    %v1956 = vmul.f32 %v1950, %v1950
    %v1957 = vmul.f32 %v1952, %v1952
    %v1958 = vmul.f32 %v1946, %v1954
    %v1959 = vmul.f32 %v1948, %v1955
    %v1960 = vmul.f32 %v1950, %v1956
    %v1961 = vmul.f32 %v1952, %v1957
    %v1962 = vmul.f32 %v1958, 0.044715
    %v1963 = vmul.f32 %v1959, 0.044715
    %v1964 = vmul.f32 %v1960, 0.044715
    %v1965 = vmul.f32 %v1961, 0.044715
    %v1966 = vadd.f32 %v1946, %v1962
    %v1967 = vadd.f32 %v1948, %v1963
    %v1968 = vadd.f32 %v1950, %v1964
    %v1969 = vadd.f32 %v1952, %v1965
    %v1970 = vmul.f32 %v1966, 0.7978846
    %v1971 = vmul.f32 %v1967, 0.7978846
    %v1972 = vmul.f32 %v1968, 0.7978846
    %v1973 = vmul.f32 %v1969, 0.7978846
    %v1974 = vtanh.pop %v1970
    %v1975 = vtanh.pop %v1971
    %v1976 = vtanh.pop %v1972
    %v1977 = vtanh.pop %v1973
    %v1978 = vadd.f32 %v1974, 1.0
    %v1979 = vadd.f32 %v1975, 1.0
    %v1980 = vadd.f32 %v1976, 1.0
    %v1981 = vadd.f32 %v1977, 1.0
    %v1982 = vmul.f32 %v1978, 0.5
    %v1983 = vmul.f32 %v1979, 0.5
    %v1984 = vmul.f32 %v1980, 0.5
    %v1985 = vmul.f32 %v1981, 0.5
    %v1986 = vmul.f32 %v1946, %v1982
    %v1987 = vmul.f32 %v1948, %v1983
    %v1988 = vmul.f32 %v1950, %v1984
    %v1989 = vmul.f32 %v1952, %v1985
    %v1990 = vpack.c.bf16 %v1988, %v1986
    %v1991 = vpack.c.bf16 %v1989, %v1987
    %v1992 = vld [vmem:[%s13] sm:$0xf]
    %v1993 = vld [vmem:[%s13 + $0x4] sm:$0xf]
    %v1994 = vld [vmem:[%s13 + $0x8] sm:$0xf]
    %v1995 = vld [vmem:[%s13 + $0xc] sm:$0xf]
    %v1996 = vld [vmem:[%s13 + $0x10] sm:$0xf]
    %v1997 = vld [vmem:[%s13 + $0x14] sm:$0xf]
    %v1998 = vld [vmem:[%s13 + $0x18] sm:$0xf]
    %v1999 = vld [vmem:[%s13 + $0x1c] sm:$0xf]
    %v2000 = vld [vmem:[%s13 + $0x20] sm:$0xf]
    %v2001 = vld [vmem:[%s13 + $0x24] sm:$0xf]
    %v2002 = vld [vmem:[%s13 + $0x28] sm:$0xf]
    %v2003 = vld [vmem:[%s13 + $0x2c] sm:$0xf]
    %v2004 = vld [vmem:[%s13 + $0x30] sm:$0xf]
    %v2005 = vld [vmem:[%s13 + $0x34] sm:$0xf]
    %v2006 = vld [vmem:[%s13 + $0x38] sm:$0xf]
    %v2007 = vld [vmem:[%s13 + $0x3c] sm:$0xf]
    %v2008 = vld [vmem:[%s13 + $0x40] sm:$0xf]
    %v2009 = vld [vmem:[%s13 + $0x44] sm:$0xf]
    %v2010 = vld [vmem:[%s13 + $0x48] sm:$0xf]
    %v2011 = vld [vmem:[%s13 + $0x4c] sm:$0xf]
    %v2012 = vld [vmem:[%s13 + $0x50] sm:$0xf]
    %v2013 = vld [vmem:[%s13 + $0x54] sm:$0xf]
    %v2014 = vld [vmem:[%s13 + $0x58] sm:$0xf]
    %v2015 = vld [vmem:[%s13 + $0x5c] sm:$0xf]
    %v2016 = vld [vmem:[%s13 + $0x60] sm:$0xf]
    %v2017 = vld [vmem:[%s13 + $0x64] sm:$0xf]
    %v2018 = vld [vmem:[%s13 + $0x68] sm:$0xf]
    %v2019 = vld [vmem:[%s13 + $0x6c] sm:$0xf]
    %v2020 = vld [vmem:[%s13 + $0x70] sm:$0xf]
    %v2021 = vld [vmem:[%s13 + $0x74] sm:$0xf]
    %v2022 = vld [vmem:[%s13 + $0x78] sm:$0xf]
    %v2023 = vld [vmem:[%s13 + $0x7c] sm:$0xf]
    %v2024 = vld [vmem:[%s14] sm:$0x1]
    %v2026 = vlaneseq
    %v2027 = vshrl.u32 %v2026, 7
    %v2028 = vsub.s32 0, %v2027
    %v2029 = vrot.slane %v2024, %v2028
    %v2063 = vunpack.c.l.b16 %v1992
    %v2064 = vunpack.c.l.b16 %v1993
    %v2065 = vunpack.c.l.b16 %v1994
    %v2066 = vunpack.c.l.b16 %v1995
    %v2067 = vunpack.c.l.b16 %v1996
    %v2068 = vunpack.c.l.b16 %v1997
    %v2069 = vunpack.c.l.b16 %v1998
    %v2070 = vunpack.c.l.b16 %v1999
    %v2071 = vunpack.c.l.b16 %v2000
    %v2072 = vunpack.c.l.b16 %v2001
    %v2073 = vunpack.c.l.b16 %v2002
    %v2074 = vunpack.c.l.b16 %v2003
    %v2075 = vunpack.c.l.b16 %v2004
    %v2076 = vunpack.c.l.b16 %v2005
    %v2077 = vunpack.c.l.b16 %v2006
    %v2078 = vunpack.c.l.b16 %v2007
    %v2079 = vunpack.c.l.b16 %v2008
    %v2080 = vunpack.c.l.b16 %v2009
    %v2081 = vunpack.c.l.b16 %v2010
    %v2082 = vunpack.c.l.b16 %v2011
    %v2083 = vunpack.c.l.b16 %v2012
    %v2084 = vunpack.c.l.b16 %v2013
    %v2085 = vunpack.c.l.b16 %v2014
    %v2086 = vunpack.c.l.b16 %v2015
    %v2087 = vunpack.c.l.b16 %v2016
    %v2088 = vunpack.c.l.b16 %v2017
    %v2089 = vunpack.c.l.b16 %v2018
    %v2090 = vunpack.c.l.b16 %v2019
    %v2091 = vunpack.c.l.b16 %v2020
    %v2092 = vunpack.c.l.b16 %v2021
    %v2093 = vunpack.c.l.b16 %v2022
    %v2094 = vunpack.c.l.b16 %v2023
    %v2095 = vpack.c.b16 %v2064, %v2063
    %v2096 = vpack.c.b16 %v2066, %v2065
    %v2097 = vpack.c.b16 %v2068, %v2067
    %v2098 = vpack.c.b16 %v2070, %v2069
    %v2099 = vpack.c.b16 %v2072, %v2071
    %v2100 = vpack.c.b16 %v2074, %v2073
    %v2101 = vpack.c.b16 %v2076, %v2075
    %v2102 = vpack.c.b16 %v2078, %v2077
    %v2103 = vpack.c.b16 %v2080, %v2079
    %v2104 = vpack.c.b16 %v2082, %v2081
    %v2105 = vpack.c.b16 %v2084, %v2083
    %v2106 = vpack.c.b16 %v2086, %v2085
    %v2107 = vpack.c.b16 %v2088, %v2087
    %v2108 = vpack.c.b16 %v2090, %v2089
    %v2109 = vpack.c.b16 %v2092, %v2091
    %v2110 = vpack.c.b16 %v2094, %v2093
    %2127 = vmatprep.subr.bf16.mxu0 0
    %2128 = vmatpush1.bf16.msra.mxu0 %v2095
    %2129 = vmatprep.subr.bf16.mxu0 0
    %2130 = vmatpush1.bf16.msra.mxu0 %v2096
    %2131 = vmatprep.subr.bf16.mxu0 0
    %2132 = vmatpush1.bf16.msra.mxu0 %v2097
    %2133 = vmatprep.subr.bf16.mxu0 0
    %2134 = vmatpush1.bf16.msra.mxu0 %v2098
    %2135 = vmatprep.subr.bf16.mxu0 0
    %2136 = vmatpush1.bf16.msra.mxu0 %v2099
    %2137 = vmatprep.subr.bf16.mxu0 0
    %2138 = vmatpush1.bf16.msra.mxu0 %v2100
    %2139 = vmatprep.subr.bf16.mxu0 0
    %2140 = vmatpush1.bf16.msra.mxu0 %v2101
    %2141 = vmatprep.subr.bf16.mxu0 0
    %2142 = vmatpush1.bf16.msra.mxu0 %v2102
    %2143 = vmatprep.subr.bf16.mxu0 0
    %2144 = vmatpush1.bf16.msra.mxu0 %v2103
    %2145 = vmatprep.subr.bf16.mxu0 0
    %2146 = vmatpush1.bf16.msra.mxu0 %v2104
    %2147 = vmatprep.subr.bf16.mxu0 0
    %2148 = vmatpush1.bf16.msra.mxu0 %v2105
    %2149 = vmatprep.subr.bf16.mxu0 0
    %2150 = vmatpush1.bf16.msra.mxu0 %v2106
    %2151 = vmatprep.subr.bf16.mxu0 0
    %2152 = vmatpush1.bf16.msra.mxu0 %v2107
    %2153 = vmatprep.subr.bf16.mxu0 0
    %2154 = vmatpush1.bf16.msra.mxu0 %v2108
    %2155 = vmatprep.subr.bf16.mxu0 0
    %2156 = vmatpush1.bf16.msra.mxu0 %v2109
    %2157 = vmatprep.subr.bf16.mxu0 0
    %2158 = vmatpush1.bf16.msra.mxu0 %v2110
    %2159 = vmatprep.mubr.bf16.mxu0 %v1991
    %2160 = vmatmul.mubr.bf16.gmra.mrb[0].mxu0 %v1990
    %v2161 = vpop.f32.mrb[0].mxu0
    %v2162 = vadd.f32 %v2029, %v2161
    %v2163 = vpop.f32.mrb[0].mxu0
    %v2164 = vpop.f32.mrb[0].mxu0
    %v2165 = vadd.f32 %v2029, %v2164
    %v2166 = vpop.f32.mrb[0].mxu0
    %2167 = vdwg.mxu0
    %v2168 = vadd.f32 %v1801, %v2162
    %v2169 = vadd.f32 %v1802, %v2165
    %s2170 = scalar_lea.vmem %s3, 1
    %v2171 = vld [vmem:[%s2170] sm:$0x1]
    %s2172 = scalar_lea.vmem %s4, 1
    %v2173 = vld [vmem:[%s2172] sm:$0x1]
    %v2174 = vsel %vm613, %v2168, 0.0
    %2175 = vadd.xlane.f32.xlu0 %v2174
    %v2176 = vpop.xlane.xlu0 %2175
    %v2177 = vsel %vm617, %v2169, 0.0
    %2178 = vadd.xlane.f32.xlu0 %v2177
    %v2179 = vpop.xlane.xlu0 %2178
    %v2180 = vmul.f32 %v2176, %v621
    %v2181 = vmul.f32 %v2179, %v621
    %v2182 = vsub.f32 %v2168, %v2180
    %v2183 = vsub.f32 %v2169, %v2181
    %v2184 = vmul.f32 %v2182, %v2182
    %v2185 = vmul.f32 %v2183, %v2183
    %v2186 = vsel %vm613, %v2184, 0.0
    %2187 = vadd.xlane.f32.xlu0 %v2186
    %v2188 = vpop.xlane.xlu0 %2187
    %v2189 = vsel %vm617, %v2185, 0.0
    %2190 = vadd.xlane.f32.xlu0 %v2189
    %v2191 = vpop.xlane.xlu0 %2190
    %v2192 = vmul.f32 %v2188, %v621
    %v2193 = vmul.f32 %v2191, %v621
    %v2194 = vadd.f32 %v2192, 1e-06
    %v2195 = vadd.f32 %v2193, 1e-06
    %v2196 = vrsqrt.pop %v2194
    %v2197 = vrsqrt.pop %v2195
    %v2198 = vmul.f32 %v2182, %v2196
    %v2199 = vmul.f32 %v2183, %v2197
    %v2201 = vlaneseq
    %v2202 = vshrl.u32 %v2201, 7
    %v2203 = vsub.s32 0, %v2202
    %v2204 = vrot.slane %v2171, %v2203
    %v2206 = vmul.f32 %v2198, %v2204
    %v2207 = vmul.f32 %v2199, %v2204
    %v2209 = vlaneseq
    %v2210 = vshrl.u32 %v2209, 7
    %v2211 = vsub.s32 0, %v2210
    %v2212 = vrot.slane %v2173, %v2211
    %v2214 = vadd.f32 %v2206, %v2212
    %v2215 = vadd.f32 %v2207, %v2212
    %v2216 = vpack.c.bf16 %v2215, %v2214
    %s2217 = scalar_lea.vmem %s5, 64
    %v2218 = vld [vmem:[%s2217] sm:$0xff]
    %v2219 = vld [vmem:[%s2217 + $0x8] sm:$0xff]
    %v2220 = vld [vmem:[%s2217 + $0x10] sm:$0xff]
    %v2221 = vld [vmem:[%s2217 + $0x18] sm:$0xff]
    %v2222 = vld [vmem:[%s2217 + $0x20] sm:$0xff]
    %v2223 = vld [vmem:[%s2217 + $0x28] sm:$0xff]
    %v2224 = vld [vmem:[%s2217 + $0x30] sm:$0xff]
    %v2225 = vld [vmem:[%s2217 + $0x38] sm:$0xff]
    %s2226 = scalar_lea.vmem %s6, 2
    %v2227 = vld [vmem:[%s2226] sm:$0x3]
    %v2229 = vlaneseq
    %v2230 = vshrl.u32 %v2229, 7
    %v2231 = vsub.s32 0, %v2230
    %v2232 = vrot.slane %v2227, %v2231
    %v2233 = vlaneseq
    %v2234 = vshrl.u32 %v2233, 7
    %v2235 = vsub.s32 1, %v2234
    %v2236 = vrot.slane %v2227, %v2235
    %v2247 = vunpack.c.l.b16 %v2218
    %v2248 = vunpack.c.h.b16 %v2218
    %v2249 = vunpack.c.l.b16 %v2219
    %v2250 = vunpack.c.h.b16 %v2219
    %v2251 = vunpack.c.l.b16 %v2220
    %v2252 = vunpack.c.h.b16 %v2220
    %v2253 = vunpack.c.l.b16 %v2221
    %v2254 = vunpack.c.h.b16 %v2221
    %v2255 = vunpack.c.l.b16 %v2222
    %v2256 = vunpack.c.h.b16 %v2222
    %v2257 = vunpack.c.l.b16 %v2223
    %v2258 = vunpack.c.h.b16 %v2223
    %v2259 = vunpack.c.l.b16 %v2224
    %v2260 = vunpack.c.h.b16 %v2224
    %v2261 = vunpack.c.l.b16 %v2225
    %v2262 = vunpack.c.h.b16 %v2225
    %v2263 = vpack.c.b16 %v2249, %v2247
    %v2264 = vpack.c.b16 %v2250, %v2248
    %v2265 = vpack.c.b16 %v2253, %v2251
    %v2266 = vpack.c.b16 %v2254, %v2252
    %v2267 = vpack.c.b16 %v2257, %v2255
    %v2268 = vpack.c.b16 %v2258, %v2256
    %v2269 = vpack.c.b16 %v2261, %v2259
    %v2270 = vpack.c.b16 %v2262, %v2260
    %v2280 = vsel %vm613, %v2216, 0
    %2282 = vmatprep.subr.bf16.mxu0 %v2264
    %2283 = vmatpush1.bf16.msra.mxu0 %v2263
    %2284 = vmatprep.subr.bf16.mxu0 %v2266
    %2285 = vmatpush1.bf16.msra.mxu0 %v2265
    %2286 = vmatprep.subr.bf16.mxu0 %v2268
    %2287 = vmatpush1.bf16.msra.mxu0 %v2267
    %2288 = vmatprep.subr.bf16.mxu0 %v2270
    %2289 = vmatpush1.bf16.msra.mxu0 %v2269
    %2290 = vmatprep.subr.bf16.mxu0 0
    %2291 = vmatpush1.bf16.msra.mxu0 0
    %2292 = vmatprep.subr.bf16.mxu0 0
    %2293 = vmatpush1.bf16.msra.mxu0 0
    %2294 = vmatprep.subr.bf16.mxu0 0
    %2295 = vmatpush1.bf16.msra.mxu0 0
    %2296 = vmatprep.subr.bf16.mxu0 0
    %2297 = vmatpush1.bf16.msra.mxu0 0
    %2298 = vmatprep.subr.bf16.mxu0 0
    %2299 = vmatpush1.bf16.msra.mxu0 0
    %2300 = vmatprep.subr.bf16.mxu0 0
    %2301 = vmatpush1.bf16.msra.mxu0 0
    %2302 = vmatprep.subr.bf16.mxu0 0
    %2303 = vmatpush1.bf16.msra.mxu0 0
    %2304 = vmatprep.subr.bf16.mxu0 0
    %2305 = vmatpush1.bf16.msra.mxu0 0
    %2306 = vmatprep.subr.bf16.mxu0 0
    %2307 = vmatpush1.bf16.msra.mxu0 0
    %2308 = vmatprep.subr.bf16.mxu0 0
    %2309 = vmatpush1.bf16.msra.mxu0 0
    %2310 = vmatprep.subr.bf16.mxu0 0
    %2311 = vmatpush1.bf16.msra.mxu0 0
    %2312 = vmatprep.subr.bf16.mxu0 0
    %2313 = vmatpush1.bf16.msra.mxu0 0
    %2314 = vmatprep.mubr.bf16.mxu0 0
    %2315 = vmatmul.mubr.bf16.gmra.mrb[0].mxu0 %v2280
    %v2316 = vpop.f32.mrb[0].mxu0
    %v2317 = vadd.f32 %v2232, %v2316
    %v2318 = vpop.f32.mrb[0].mxu0
    %v2319 = vadd.f32 %v2236, %v2318
    %v2320 = vpop.f32.mrb[0].mxu0
    %v2321 = vadd.f32 %v2232, %v2320
    %v2322 = vpop.f32.mrb[0].mxu0
    %v2323 = vadd.f32 %v2236, %v2322
    %2324 = vdwg.mxu0
    %v2325 = vmul.f32 %v2317, 0.25
    %v2326 = vpack.c.bf16 %v2325, %v2325
    %v2327 = vpack.c.bf16 %v2317, %v2317
    %v2328 = vpack.c.bf16 %v2319, %v2319
    %2330 = vrot.lane.b32.xlu0 %v2327, 64
    %v2331 = vpop.permute.xlu0 %2330
    %v2333 = vsel %vm772, %v2326, 0
    %v2336 = vsel %vm772, %v2331, 0
    %2338 = vmatprep.subr.bf16.mxu0 0
    %2339 = vmatpush1.bf16.xpose.msra.mxu0 %v2336
    %2340 = vmatprep.subr.bf16.mxu0 0
    %2341 = vmatpush1.bf16.xpose.msra.mxu0 0
    %2342 = vmatprep.subr.bf16.mxu0 0
    %2343 = vmatpush1.bf16.xpose.msra.mxu0 0
    %2344 = vmatprep.subr.bf16.mxu0 0
    %2345 = vmatpush1.bf16.xpose.msra.mxu0 0
    %2346 = vmatprep.subr.bf16.mxu0 0
    %2347 = vmatpush1.bf16.xpose.msra.mxu0 0
    %2348 = vmatprep.subr.bf16.mxu0 0
    %2349 = vmatpush1.bf16.xpose.msra.mxu0 0
    %2350 = vmatprep.subr.bf16.mxu0 0
    %2351 = vmatpush1.bf16.xpose.msra.mxu0 0
    %2352 = vmatprep.subr.bf16.mxu0 0
    %2353 = vmatpush1.bf16.xpose.msra.mxu0 0
    %2354 = vmatprep.subr.bf16.mxu0 0
    %2355 = vmatpush1.bf16.xpose.msra.mxu0 0
    %2356 = vmatprep.subr.bf16.mxu0 0
    %2357 = vmatpush1.bf16.xpose.msra.mxu0 0
    %2358 = vmatprep.subr.bf16.mxu0 0
    %2359 = vmatpush1.bf16.xpose.msra.mxu0 0
    %2360 = vmatprep.subr.bf16.mxu0 0
    %2361 = vmatpush1.bf16.xpose.msra.mxu0 0
    %2362 = vmatprep.subr.bf16.mxu0 0
    %2363 = vmatpush1.bf16.xpose.msra.mxu0 0
    %2364 = vmatprep.subr.bf16.mxu0 0
    %2365 = vmatpush1.bf16.xpose.msra.mxu0 0
    %2366 = vmatprep.subr.bf16.mxu0 0
    %2367 = vmatpush1.bf16.xpose.msra.mxu0 0
    %2368 = vmatprep.subr.bf16.mxu0 0
    %2369 = vmatpush1.bf16.xpose.msra.mxu0 0
    %2370 = vmatprep.mubr.bf16.mxu0 0
    %2371 = vmatmul.mubr.bf16.gmra.mrb[0].mxu0 %v2333
    %v2372 = vpop.f32.mrb[0].mxu0
    %v2373 = vadd.f32 0.0, %v2372
    %v2374 = vpop.f32.mrb[0].mxu0
    %v2375 = vpop.f32.mrb[0].mxu0
    %v2376 = vpop.f32.mrb[0].mxu0
    %2377 = vdwg.mxu0
    %v2378 = vsel %vm819, %v2373, -inf
    %2379 = vmax.xlane.f32.xlu0 %v2378
    %v2380 = vpop.xlane.xlu0 %2379
    %v2381 = vsub.f32 %v2373, %v2380
    %v2382 = vmul.f32 %v2381, 1.442695
    %v2383 = vpow.pop %v2382
    %v2384 = vsel %vm819, %v2383, 0.0
    %2385 = vadd.xlane.f32.xlu0 %v2384
    %v2386 = vpop.xlane.xlu0 %2385
    %v2387 = vrcp.pop %v2386
    %v2388 = vmul.f32 %v2383, %v2387
    %v2389 = vpack.c.bf16 %v2388, %v2388
    %v2391 = vsel %vm832, %v2389, 0
    %v2394 = vand.u32 %v2328, %v839
    %2396 = vmatprep.subr.bf16.mxu0 0
    %2397 = vmatpush1.bf16.msra.mxu0 %v2394
    %2398 = vmatprep.subr.bf16.mxu0 0
    %2399 = vmatpush1.bf16.msra.mxu0 0
    %2400 = vmatprep.subr.bf16.mxu0 0
    %2401 = vmatpush1.bf16.msra.mxu0 0
    %2402 = vmatprep.subr.bf16.mxu0 0
    %2403 = vmatpush1.bf16.msra.mxu0 0
    %2404 = vmatprep.subr.bf16.mxu0 0
    %2405 = vmatpush1.bf16.msra.mxu0 0
    %2406 = vmatprep.subr.bf16.mxu0 0
    %2407 = vmatpush1.bf16.msra.mxu0 0
    %2408 = vmatprep.subr.bf16.mxu0 0
    %2409 = vmatpush1.bf16.msra.mxu0 0
    %2410 = vmatprep.subr.bf16.mxu0 0
    %2411 = vmatpush1.bf16.msra.mxu0 0
    %2412 = vmatprep.subr.bf16.mxu0 0
    %2413 = vmatpush1.bf16.msra.mxu0 0
    %2414 = vmatprep.subr.bf16.mxu0 0
    %2415 = vmatpush1.bf16.msra.mxu0 0
    %2416 = vmatprep.subr.bf16.mxu0 0
    %2417 = vmatpush1.bf16.msra.mxu0 0
    %2418 = vmatprep.subr.bf16.mxu0 0
    %2419 = vmatpush1.bf16.msra.mxu0 0
    %2420 = vmatprep.subr.bf16.mxu0 0
    %2421 = vmatpush1.bf16.msra.mxu0 0
    %2422 = vmatprep.subr.bf16.mxu0 0
    %2423 = vmatpush1.bf16.msra.mxu0 0
    %2424 = vmatprep.subr.bf16.mxu0 0
    %2425 = vmatpush1.bf16.msra.mxu0 0
    %2426 = vmatprep.subr.bf16.mxu0 0
    %2427 = vmatpush1.bf16.msra.mxu0 0
    %2428 = vmatprep.mubr.bf16.mxu0 0
    %2429 = vmatmul.mubr.bf16.gmra.mrb[0].mxu0 %v2391
    %v2430 = vpop.f32.mrb[0].mxu0
    %v2431 = vadd.f32 0.0, %v2430
    %v2432 = vpop.f32.mrb[0].mxu0
    %v2433 = vpop.f32.mrb[0].mxu0
    %v2434 = vpop.f32.mrb[0].mxu0
    %2435 = vdwg.mxu0
    %2436 = vst.msk [vmem:[#allocation2] sm:$0x1f] %vm883, %v2431
    %2438 = vrot.lane.b32.xlu0 %v2326, 112
    %v2439 = vpop.permute.xlu0 %2438
    %2440 = vrot.lane.b32.xlu0 %v2327, 48
    %v2441 = vpop.permute.xlu0 %2440
    %v2443 = vsel %vm772, %v2439, 0
    %v2446 = vsel %vm772, %v2441, 0
    %2448 = vmatprep.subr.bf16.mxu0 0
    %2449 = vmatpush1.bf16.xpose.msra.mxu0 %v2446
    %2450 = vmatprep.subr.bf16.mxu0 0
    %2451 = vmatpush1.bf16.xpose.msra.mxu0 0
    %2452 = vmatprep.subr.bf16.mxu0 0
    %2453 = vmatpush1.bf16.xpose.msra.mxu0 0
    %2454 = vmatprep.subr.bf16.mxu0 0
    %2455 = vmatpush1.bf16.xpose.msra.mxu0 0
    %2456 = vmatprep.subr.bf16.mxu0 0
    %2457 = vmatpush1.bf16.xpose.msra.mxu0 0
    %2458 = vmatprep.subr.bf16.mxu0 0
    %2459 = vmatpush1.bf16.xpose.msra.mxu0 0
    %2460 = vmatprep.subr.bf16.mxu0 0
    %2461 = vmatpush1.bf16.xpose.msra.mxu0 0
    %2462 = vmatprep.subr.bf16.mxu0 0
    %2463 = vmatpush1.bf16.xpose.msra.mxu0 0
    %2464 = vmatprep.subr.bf16.mxu0 0
    %2465 = vmatpush1.bf16.xpose.msra.mxu0 0
    %2466 = vmatprep.subr.bf16.mxu0 0
    %2467 = vmatpush1.bf16.xpose.msra.mxu0 0
    %2468 = vmatprep.subr.bf16.mxu0 0
    %2469 = vmatpush1.bf16.xpose.msra.mxu0 0
    %2470 = vmatprep.subr.bf16.mxu0 0
    %2471 = vmatpush1.bf16.xpose.msra.mxu0 0
    %2472 = vmatprep.subr.bf16.mxu0 0
    %2473 = vmatpush1.bf16.xpose.msra.mxu0 0
    %2474 = vmatprep.subr.bf16.mxu0 0
    %2475 = vmatpush1.bf16.xpose.msra.mxu0 0
    %2476 = vmatprep.subr.bf16.mxu0 0
    %2477 = vmatpush1.bf16.xpose.msra.mxu0 0
    %2478 = vmatprep.subr.bf16.mxu0 0
    %2479 = vmatpush1.bf16.xpose.msra.mxu0 0
    %2480 = vmatprep.mubr.bf16.mxu0 0
    %2481 = vmatmul.mubr.bf16.gmra.mrb[0].mxu0 %v2443
    %v2482 = vpop.f32.mrb[0].mxu0
    %v2483 = vadd.f32 0.0, %v2482
    %v2484 = vpop.f32.mrb[0].mxu0
    %v2485 = vpop.f32.mrb[0].mxu0
    %v2486 = vpop.f32.mrb[0].mxu0
    %2487 = vdwg.mxu0
    %v2488 = vsel %vm819, %v2483, -inf
    %2489 = vmax.xlane.f32.xlu0 %v2488
    %v2490 = vpop.xlane.xlu0 %2489
    %v2491 = vsub.f32 %v2483, %v2490
    %v2492 = vmul.f32 %v2491, 1.442695
    %v2493 = vpow.pop %v2492
    %v2494 = vsel %vm819, %v2493, 0.0
    %2495 = vadd.xlane.f32.xlu0 %v2494
    %v2496 = vpop.xlane.xlu0 %2495
    %v2497 = vrcp.pop %v2496
    %v2498 = vmul.f32 %v2493, %v2497
    %v2499 = vpack.c.bf16 %v2498, %v2498
    %2501 = vrot.lane.b32.xlu0 %v2328, 112
    %v2502 = vpop.permute.xlu0 %2501
    %v2504 = vsel %vm832, %v2499, 0
    %v2507 = vand.u32 %v2502, %v839
    %2509 = vmatprep.subr.bf16.mxu0 0
    %2510 = vmatpush1.bf16.msra.mxu0 %v2507
    %2511 = vmatprep.subr.bf16.mxu0 0
    %2512 = vmatpush1.bf16.msra.mxu0 0
    %2513 = vmatprep.subr.bf16.mxu0 0
    %2514 = vmatpush1.bf16.msra.mxu0 0
    %2515 = vmatprep.subr.bf16.mxu0 0
    %2516 = vmatpush1.bf16.msra.mxu0 0
    %2517 = vmatprep.subr.bf16.mxu0 0
    %2518 = vmatpush1.bf16.msra.mxu0 0
    %2519 = vmatprep.subr.bf16.mxu0 0
    %2520 = vmatpush1.bf16.msra.mxu0 0
    %2521 = vmatprep.subr.bf16.mxu0 0
    %2522 = vmatpush1.bf16.msra.mxu0 0
    %2523 = vmatprep.subr.bf16.mxu0 0
    %2524 = vmatpush1.bf16.msra.mxu0 0
    %2525 = vmatprep.subr.bf16.mxu0 0
    %2526 = vmatpush1.bf16.msra.mxu0 0
    %2527 = vmatprep.subr.bf16.mxu0 0
    %2528 = vmatpush1.bf16.msra.mxu0 0
    %2529 = vmatprep.subr.bf16.mxu0 0
    %2530 = vmatpush1.bf16.msra.mxu0 0
    %2531 = vmatprep.subr.bf16.mxu0 0
    %2532 = vmatpush1.bf16.msra.mxu0 0
    %2533 = vmatprep.subr.bf16.mxu0 0
    %2534 = vmatpush1.bf16.msra.mxu0 0
    %2535 = vmatprep.subr.bf16.mxu0 0
    %2536 = vmatpush1.bf16.msra.mxu0 0
    %2537 = vmatprep.subr.bf16.mxu0 0
    %2538 = vmatpush1.bf16.msra.mxu0 0
    %2539 = vmatprep.subr.bf16.mxu0 0
    %2540 = vmatpush1.bf16.msra.mxu0 0
    %2541 = vmatprep.mubr.bf16.mxu0 0
    %2542 = vmatmul.mubr.bf16.gmra.mrb[0].mxu0 %v2504
    %v2543 = vpop.f32.mrb[0].mxu0
    %v2544 = vadd.f32 0.0, %v2543
    %v2545 = vpop.f32.mrb[0].mxu0
    %v2546 = vpop.f32.mrb[0].mxu0
    %v2547 = vpop.f32.mrb[0].mxu0
    %2548 = vdwg.mxu0
    %2550 = vrot.lane.b32.xlu0 %v2544, 16
    %v2551 = vpop.permute.xlu0 %2550
    %2553 = vst.msk [vmem:[#allocation2] sm:$0x1f] %vm1001, %v2551
    %2554 = vrot.lane.b32.xlu0 %v2326, 96
    %v2555 = vpop.permute.xlu0 %2554
    %2556 = vrot.lane.b32.xlu0 %v2327, 32
    %v2557 = vpop.permute.xlu0 %2556
    %v2559 = vsel %vm772, %v2555, 0
    %v2562 = vsel %vm772, %v2557, 0
    %2564 = vmatprep.subr.bf16.mxu0 0
    %2565 = vmatpush1.bf16.xpose.msra.mxu0 %v2562
    %2566 = vmatprep.subr.bf16.mxu0 0
    %2567 = vmatpush1.bf16.xpose.msra.mxu0 0
    %2568 = vmatprep.subr.bf16.mxu0 0
    %2569 = vmatpush1.bf16.xpose.msra.mxu0 0
    %2570 = vmatprep.subr.bf16.mxu0 0
    %2571 = vmatpush1.bf16.xpose.msra.mxu0 0
    %2572 = vmatprep.subr.bf16.mxu0 0
    %2573 = vmatpush1.bf16.xpose.msra.mxu0 0
    %2574 = vmatprep.subr.bf16.mxu0 0
    %2575 = vmatpush1.bf16.xpose.msra.mxu0 0
    %2576 = vmatprep.subr.bf16.mxu0 0
    %2577 = vmatpush1.bf16.xpose.msra.mxu0 0
    %2578 = vmatprep.subr.bf16.mxu0 0
    %2579 = vmatpush1.bf16.xpose.msra.mxu0 0
    %2580 = vmatprep.subr.bf16.mxu0 0
    %2581 = vmatpush1.bf16.xpose.msra.mxu0 0
    %2582 = vmatprep.subr.bf16.mxu0 0
    %2583 = vmatpush1.bf16.xpose.msra.mxu0 0
    %2584 = vmatprep.subr.bf16.mxu0 0
    %2585 = vmatpush1.bf16.xpose.msra.mxu0 0
    %2586 = vmatprep.subr.bf16.mxu0 0
    %2587 = vmatpush1.bf16.xpose.msra.mxu0 0
    %2588 = vmatprep.subr.bf16.mxu0 0
    %2589 = vmatpush1.bf16.xpose.msra.mxu0 0
    %2590 = vmatprep.subr.bf16.mxu0 0
    %2591 = vmatpush1.bf16.xpose.msra.mxu0 0
    %2592 = vmatprep.subr.bf16.mxu0 0
    %2593 = vmatpush1.bf16.xpose.msra.mxu0 0
    %2594 = vmatprep.subr.bf16.mxu0 0
    %2595 = vmatpush1.bf16.xpose.msra.mxu0 0
    %2596 = vmatprep.mubr.bf16.mxu0 0
    %2597 = vmatmul.mubr.bf16.gmra.mrb[0].mxu0 %v2559
    %v2598 = vpop.f32.mrb[0].mxu0
    %v2599 = vadd.f32 0.0, %v2598
    %v2600 = vpop.f32.mrb[0].mxu0
    %v2601 = vpop.f32.mrb[0].mxu0
    %v2602 = vpop.f32.mrb[0].mxu0
    %2603 = vdwg.mxu0
    %v2604 = vsel %vm819, %v2599, -inf
    %2605 = vmax.xlane.f32.xlu0 %v2604
    %v2606 = vpop.xlane.xlu0 %2605
    %v2607 = vsub.f32 %v2599, %v2606
    %v2608 = vmul.f32 %v2607, 1.442695
    %v2609 = vpow.pop %v2608
    %v2610 = vsel %vm819, %v2609, 0.0
    %2611 = vadd.xlane.f32.xlu0 %v2610
    %v2612 = vpop.xlane.xlu0 %2611
    %v2613 = vrcp.pop %v2612
    %v2614 = vmul.f32 %v2609, %v2613
    %v2615 = vpack.c.bf16 %v2614, %v2614
    %2616 = vrot.lane.b32.xlu0 %v2328, 96
    %v2617 = vpop.permute.xlu0 %2616
    %v2619 = vsel %vm832, %v2615, 0
    %v2622 = vand.u32 %v2617, %v839
    %2624 = vmatprep.subr.bf16.mxu0 0
    %2625 = vmatpush1.bf16.msra.mxu0 %v2622
    %2626 = vmatprep.subr.bf16.mxu0 0
    %2627 = vmatpush1.bf16.msra.mxu0 0
    %2628 = vmatprep.subr.bf16.mxu0 0
    %2629 = vmatpush1.bf16.msra.mxu0 0
    %2630 = vmatprep.subr.bf16.mxu0 0
    %2631 = vmatpush1.bf16.msra.mxu0 0
    %2632 = vmatprep.subr.bf16.mxu0 0
    %2633 = vmatpush1.bf16.msra.mxu0 0
    %2634 = vmatprep.subr.bf16.mxu0 0
    %2635 = vmatpush1.bf16.msra.mxu0 0
    %2636 = vmatprep.subr.bf16.mxu0 0
    %2637 = vmatpush1.bf16.msra.mxu0 0
    %2638 = vmatprep.subr.bf16.mxu0 0
    %2639 = vmatpush1.bf16.msra.mxu0 0
    %2640 = vmatprep.subr.bf16.mxu0 0
    %2641 = vmatpush1.bf16.msra.mxu0 0
    %2642 = vmatprep.subr.bf16.mxu0 0
    %2643 = vmatpush1.bf16.msra.mxu0 0
    %2644 = vmatprep.subr.bf16.mxu0 0
    %2645 = vmatpush1.bf16.msra.mxu0 0
    %2646 = vmatprep.subr.bf16.mxu0 0
    %2647 = vmatpush1.bf16.msra.mxu0 0
    %2648 = vmatprep.subr.bf16.mxu0 0
    %2649 = vmatpush1.bf16.msra.mxu0 0
    %2650 = vmatprep.subr.bf16.mxu0 0
    %2651 = vmatpush1.bf16.msra.mxu0 0
    %2652 = vmatprep.subr.bf16.mxu0 0
    %2653 = vmatpush1.bf16.msra.mxu0 0
    %2654 = vmatprep.subr.bf16.mxu0 0
    %2655 = vmatpush1.bf16.msra.mxu0 0
    %2656 = vmatprep.mubr.bf16.mxu0 0
    %2657 = vmatmul.mubr.bf16.gmra.mrb[0].mxu0 %v2619
    %v2658 = vpop.f32.mrb[0].mxu0
    %v2659 = vadd.f32 0.0, %v2658
    %v2660 = vpop.f32.mrb[0].mxu0
    %v2661 = vpop.f32.mrb[0].mxu0
    %v2662 = vpop.f32.mrb[0].mxu0
    %2663 = vdwg.mxu0
    %2665 = vrot.lane.b32.xlu0 %v2659, 32
    %v2666 = vpop.permute.xlu0 %2665
    %2668 = vst.msk [vmem:[#allocation2] sm:$0x1f] %vm1117, %v2666
    %2669 = vrot.lane.b32.xlu0 %v2326, 80
    %v2670 = vpop.permute.xlu0 %2669
    %2671 = vrot.lane.b32.xlu0 %v2327, 16
    %v2672 = vpop.permute.xlu0 %2671
    %v2674 = vsel %vm772, %v2670, 0
    %v2677 = vsel %vm772, %v2672, 0
    %2679 = vmatprep.subr.bf16.mxu0 0
    %2680 = vmatpush1.bf16.xpose.msra.mxu0 %v2677
    %2681 = vmatprep.subr.bf16.mxu0 0
    %2682 = vmatpush1.bf16.xpose.msra.mxu0 0
    %2683 = vmatprep.subr.bf16.mxu0 0
    %2684 = vmatpush1.bf16.xpose.msra.mxu0 0
    %2685 = vmatprep.subr.bf16.mxu0 0
    %2686 = vmatpush1.bf16.xpose.msra.mxu0 0
    %2687 = vmatprep.subr.bf16.mxu0 0
    %2688 = vmatpush1.bf16.xpose.msra.mxu0 0
    %2689 = vmatprep.subr.bf16.mxu0 0
    %2690 = vmatpush1.bf16.xpose.msra.mxu0 0
    %2691 = vmatprep.subr.bf16.mxu0 0
    %2692 = vmatpush1.bf16.xpose.msra.mxu0 0
    %2693 = vmatprep.subr.bf16.mxu0 0
    %2694 = vmatpush1.bf16.xpose.msra.mxu0 0
    %2695 = vmatprep.subr.bf16.mxu0 0
    %2696 = vmatpush1.bf16.xpose.msra.mxu0 0
    %2697 = vmatprep.subr.bf16.mxu0 0
    %2698 = vmatpush1.bf16.xpose.msra.mxu0 0
    %2699 = vmatprep.subr.bf16.mxu0 0
    %2700 = vmatpush1.bf16.xpose.msra.mxu0 0
    %2701 = vmatprep.subr.bf16.mxu0 0
    %2702 = vmatpush1.bf16.xpose.msra.mxu0 0
    %2703 = vmatprep.subr.bf16.mxu0 0
    %2704 = vmatpush1.bf16.xpose.msra.mxu0 0
    %2705 = vmatprep.subr.bf16.mxu0 0
    %2706 = vmatpush1.bf16.xpose.msra.mxu0 0
    %2707 = vmatprep.subr.bf16.mxu0 0
    %2708 = vmatpush1.bf16.xpose.msra.mxu0 0
    %2709 = vmatprep.subr.bf16.mxu0 0
    %2710 = vmatpush1.bf16.xpose.msra.mxu0 0
    %2711 = vmatprep.mubr.bf16.mxu0 0
    %2712 = vmatmul.mubr.bf16.gmra.mrb[0].mxu0 %v2674
    %v2713 = vpop.f32.mrb[0].mxu0
    %v2714 = vadd.f32 0.0, %v2713
    %v2715 = vpop.f32.mrb[0].mxu0
    %v2716 = vpop.f32.mrb[0].mxu0
    %v2717 = vpop.f32.mrb[0].mxu0
    %2718 = vdwg.mxu0
    %v2719 = vsel %vm819, %v2714, -inf
    %2720 = vmax.xlane.f32.xlu0 %v2719
    %v2721 = vpop.xlane.xlu0 %2720
    %v2722 = vsub.f32 %v2714, %v2721
    %v2723 = vmul.f32 %v2722, 1.442695
    %v2724 = vpow.pop %v2723
    %v2725 = vsel %vm819, %v2724, 0.0
    %2726 = vadd.xlane.f32.xlu0 %v2725
    %v2727 = vpop.xlane.xlu0 %2726
    %v2728 = vrcp.pop %v2727
    %v2729 = vmul.f32 %v2724, %v2728
    %v2730 = vpack.c.bf16 %v2729, %v2729
    %2731 = vrot.lane.b32.xlu0 %v2328, 80
    %v2732 = vpop.permute.xlu0 %2731
    %v2734 = vsel %vm832, %v2730, 0
    %v2737 = vand.u32 %v2732, %v839
    %2739 = vmatprep.subr.bf16.mxu0 0
    %2740 = vmatpush1.bf16.msra.mxu0 %v2737
    %2741 = vmatprep.subr.bf16.mxu0 0
    %2742 = vmatpush1.bf16.msra.mxu0 0
    %2743 = vmatprep.subr.bf16.mxu0 0
    %2744 = vmatpush1.bf16.msra.mxu0 0
    %2745 = vmatprep.subr.bf16.mxu0 0
    %2746 = vmatpush1.bf16.msra.mxu0 0
    %2747 = vmatprep.subr.bf16.mxu0 0
    %2748 = vmatpush1.bf16.msra.mxu0 0
    %2749 = vmatprep.subr.bf16.mxu0 0
    %2750 = vmatpush1.bf16.msra.mxu0 0
    %2751 = vmatprep.subr.bf16.mxu0 0
    %2752 = vmatpush1.bf16.msra.mxu0 0
    %2753 = vmatprep.subr.bf16.mxu0 0
    %2754 = vmatpush1.bf16.msra.mxu0 0
    %2755 = vmatprep.subr.bf16.mxu0 0
    %2756 = vmatpush1.bf16.msra.mxu0 0
    %2757 = vmatprep.subr.bf16.mxu0 0
    %2758 = vmatpush1.bf16.msra.mxu0 0
    %2759 = vmatprep.subr.bf16.mxu0 0
    %2760 = vmatpush1.bf16.msra.mxu0 0
    %2761 = vmatprep.subr.bf16.mxu0 0
    %2762 = vmatpush1.bf16.msra.mxu0 0
    %2763 = vmatprep.subr.bf16.mxu0 0
    %2764 = vmatpush1.bf16.msra.mxu0 0
    %2765 = vmatprep.subr.bf16.mxu0 0
    %2766 = vmatpush1.bf16.msra.mxu0 0
    %2767 = vmatprep.subr.bf16.mxu0 0
    %2768 = vmatpush1.bf16.msra.mxu0 0
    %2769 = vmatprep.subr.bf16.mxu0 0
    %2770 = vmatpush1.bf16.msra.mxu0 0
    %2771 = vmatprep.mubr.bf16.mxu0 0
    %2772 = vmatmul.mubr.bf16.gmra.mrb[0].mxu0 %v2734
    %v2773 = vpop.f32.mrb[0].mxu0
    %v2774 = vadd.f32 0.0, %v2773
    %v2775 = vpop.f32.mrb[0].mxu0
    %v2776 = vpop.f32.mrb[0].mxu0
    %v2777 = vpop.f32.mrb[0].mxu0
    %2778 = vdwg.mxu0
    %2780 = vrot.lane.b32.xlu0 %v2774, 48
    %v2781 = vpop.permute.xlu0 %2780
    %2783 = vst.msk [vmem:[#allocation2] sm:$0x1f] %vm1233, %v2781
    %v2784 = vmul.f32 %v2321, 0.25
    %v2785 = vpack.c.bf16 %v2784, %v2325
    %v2786 = vpack.c.bf16 %v2321, %v2317
    %v2787 = vpack.c.bf16 %v2323, %v2319
    %v2789 = vshrl.u32 %v2785, 16
    %v2791 = vrot.slane %v2789, 2
    %v2792 = vshll.u32 %v2785, 16
    %v2794 = vrot.slane %v2792, 3
    %v2795 = vor.u32 %v2791, %v2794
    %v2797 = vshrl.u32 %v2786, 16
    %v2799 = vrot.slane %v2797, 2
    %v2800 = vshll.u32 %v2786, 16
    %v2802 = vrot.slane %v2800, 3
    %v2803 = vor.u32 %v2799, %v2802
    %2804 = vrot.lane.b32.xlu0 %v2803, 64
    %v2805 = vpop.permute.xlu0 %2804
    %v2807 = vsel %vm772, %v2795, 0
    %v2810 = vsel %vm772, %v2805, 0
    %2812 = vmatprep.subr.bf16.mxu0 0
    %2813 = vmatpush1.bf16.xpose.msra.mxu0 %v2810
    %2814 = vmatprep.subr.bf16.mxu0 0
    %2815 = vmatpush1.bf16.xpose.msra.mxu0 0
    %2816 = vmatprep.subr.bf16.mxu0 0
    %2817 = vmatpush1.bf16.xpose.msra.mxu0 0
    %2818 = vmatprep.subr.bf16.mxu0 0
    %2819 = vmatpush1.bf16.xpose.msra.mxu0 0
    %2820 = vmatprep.subr.bf16.mxu0 0
    %2821 = vmatpush1.bf16.xpose.msra.mxu0 0
    %2822 = vmatprep.subr.bf16.mxu0 0
    %2823 = vmatpush1.bf16.xpose.msra.mxu0 0
    %2824 = vmatprep.subr.bf16.mxu0 0
    %2825 = vmatpush1.bf16.xpose.msra.mxu0 0
    %2826 = vmatprep.subr.bf16.mxu0 0
    %2827 = vmatpush1.bf16.xpose.msra.mxu0 0
    %2828 = vmatprep.subr.bf16.mxu0 0
    %2829 = vmatpush1.bf16.xpose.msra.mxu0 0
    %2830 = vmatprep.subr.bf16.mxu0 0
    %2831 = vmatpush1.bf16.xpose.msra.mxu0 0
    %2832 = vmatprep.subr.bf16.mxu0 0
    %2833 = vmatpush1.bf16.xpose.msra.mxu0 0
    %2834 = vmatprep.subr.bf16.mxu0 0
    %2835 = vmatpush1.bf16.xpose.msra.mxu0 0
    %2836 = vmatprep.subr.bf16.mxu0 0
    %2837 = vmatpush1.bf16.xpose.msra.mxu0 0
    %2838 = vmatprep.subr.bf16.mxu0 0
    %2839 = vmatpush1.bf16.xpose.msra.mxu0 0
    %2840 = vmatprep.subr.bf16.mxu0 0
    %2841 = vmatpush1.bf16.xpose.msra.mxu0 0
    %2842 = vmatprep.subr.bf16.mxu0 0
    %2843 = vmatpush1.bf16.xpose.msra.mxu0 0
    %2844 = vmatprep.mubr.bf16.mxu0 0
    %2845 = vmatmul.mubr.bf16.gmra.mrb[0].mxu0 %v2807
    %v2846 = vpop.f32.mrb[0].mxu0
    %v2847 = vadd.f32 0.0, %v2846
    %v2848 = vpop.f32.mrb[0].mxu0
    %v2849 = vpop.f32.mrb[0].mxu0
    %v2850 = vpop.f32.mrb[0].mxu0
    %2851 = vdwg.mxu0
    %v2852 = vsel %vm819, %v2847, -inf
    %2853 = vmax.xlane.f32.xlu0 %v2852
    %v2854 = vpop.xlane.xlu0 %2853
    %v2855 = vsub.f32 %v2847, %v2854
    %v2856 = vmul.f32 %v2855, 1.442695
    %v2857 = vpow.pop %v2856
    %v2858 = vsel %vm819, %v2857, 0.0
    %2859 = vadd.xlane.f32.xlu0 %v2858
    %v2860 = vpop.xlane.xlu0 %2859
    %v2861 = vrcp.pop %v2860
    %v2862 = vmul.f32 %v2857, %v2861
    %v2863 = vpack.c.bf16 %v2862, %v2862
    %v2865 = vshrl.u32 %v2787, 16
    %v2867 = vrot.slane %v2865, 2
    %v2868 = vshll.u32 %v2787, 16
    %v2870 = vrot.slane %v2868, 3
    %v2871 = vor.u32 %v2867, %v2870
    %v2873 = vsel %vm832, %v2863, 0
    %v2876 = vand.u32 %v2871, %v839
    %2878 = vmatprep.subr.bf16.mxu0 0
    %2879 = vmatpush1.bf16.msra.mxu0 %v2876
    %2880 = vmatprep.subr.bf16.mxu0 0
    %2881 = vmatpush1.bf16.msra.mxu0 0
    %2882 = vmatprep.subr.bf16.mxu0 0
    %2883 = vmatpush1.bf16.msra.mxu0 0
    %2884 = vmatprep.subr.bf16.mxu0 0
    %2885 = vmatpush1.bf16.msra.mxu0 0
    %2886 = vmatprep.subr.bf16.mxu0 0
    %2887 = vmatpush1.bf16.msra.mxu0 0
    %2888 = vmatprep.subr.bf16.mxu0 0
    %2889 = vmatpush1.bf16.msra.mxu0 0
    %2890 = vmatprep.subr.bf16.mxu0 0
    %2891 = vmatpush1.bf16.msra.mxu0 0
    %2892 = vmatprep.subr.bf16.mxu0 0
    %2893 = vmatpush1.bf16.msra.mxu0 0
    %2894 = vmatprep.subr.bf16.mxu0 0
    %2895 = vmatpush1.bf16.msra.mxu0 0
    %2896 = vmatprep.subr.bf16.mxu0 0
    %2897 = vmatpush1.bf16.msra.mxu0 0
    %2898 = vmatprep.subr.bf16.mxu0 0
    %2899 = vmatpush1.bf16.msra.mxu0 0
    %2900 = vmatprep.subr.bf16.mxu0 0
    %2901 = vmatpush1.bf16.msra.mxu0 0
    %2902 = vmatprep.subr.bf16.mxu0 0
    %2903 = vmatpush1.bf16.msra.mxu0 0
    %2904 = vmatprep.subr.bf16.mxu0 0
    %2905 = vmatpush1.bf16.msra.mxu0 0
    %2906 = vmatprep.subr.bf16.mxu0 0
    %2907 = vmatpush1.bf16.msra.mxu0 0
    %2908 = vmatprep.subr.bf16.mxu0 0
    %2909 = vmatpush1.bf16.msra.mxu0 0
    %2910 = vmatprep.mubr.bf16.mxu0 0
    %2911 = vmatmul.mubr.bf16.gmra.mrb[0].mxu0 %v2873
    %v2912 = vpop.f32.mrb[0].mxu0
    %v2913 = vadd.f32 0.0, %v2912
    %v2914 = vpop.f32.mrb[0].mxu0
    %v2915 = vpop.f32.mrb[0].mxu0
    %v2916 = vpop.f32.mrb[0].mxu0
    %2917 = vdwg.mxu0
    %2918 = vst.msk [vmem:[#allocation2 + $0x5] sm:$0x1f] %vm883, %v2913
    %2919 = vrot.lane.b32.xlu0 %v2795, 112
    %v2920 = vpop.permute.xlu0 %2919
    %2921 = vrot.lane.b32.xlu0 %v2803, 48
    %v2922 = vpop.permute.xlu0 %2921
    %v2924 = vsel %vm772, %v2920, 0
    %v2927 = vsel %vm772, %v2922, 0
    %2929 = vmatprep.subr.bf16.mxu0 0
    %2930 = vmatpush1.bf16.xpose.msra.mxu0 %v2927
    %2931 = vmatprep.subr.bf16.mxu0 0
    %2932 = vmatpush1.bf16.xpose.msra.mxu0 0
    %2933 = vmatprep.subr.bf16.mxu0 0
    %2934 = vmatpush1.bf16.xpose.msra.mxu0 0
    %2935 = vmatprep.subr.bf16.mxu0 0
    %2936 = vmatpush1.bf16.xpose.msra.mxu0 0
    %2937 = vmatprep.subr.bf16.mxu0 0
    %2938 = vmatpush1.bf16.xpose.msra.mxu0 0
    %2939 = vmatprep.subr.bf16.mxu0 0
    %2940 = vmatpush1.bf16.xpose.msra.mxu0 0
    %2941 = vmatprep.subr.bf16.mxu0 0
    %2942 = vmatpush1.bf16.xpose.msra.mxu0 0
    %2943 = vmatprep.subr.bf16.mxu0 0
    %2944 = vmatpush1.bf16.xpose.msra.mxu0 0
    %2945 = vmatprep.subr.bf16.mxu0 0
    %2946 = vmatpush1.bf16.xpose.msra.mxu0 0
    %2947 = vmatprep.subr.bf16.mxu0 0
    %2948 = vmatpush1.bf16.xpose.msra.mxu0 0
    %2949 = vmatprep.subr.bf16.mxu0 0
    %2950 = vmatpush1.bf16.xpose.msra.mxu0 0
    %2951 = vmatprep.subr.bf16.mxu0 0
    %2952 = vmatpush1.bf16.xpose.msra.mxu0 0
    %2953 = vmatprep.subr.bf16.mxu0 0
    %2954 = vmatpush1.bf16.xpose.msra.mxu0 0
    %2955 = vmatprep.subr.bf16.mxu0 0
    %2956 = vmatpush1.bf16.xpose.msra.mxu0 0
    %2957 = vmatprep.subr.bf16.mxu0 0
    %2958 = vmatpush1.bf16.xpose.msra.mxu0 0
    %2959 = vmatprep.subr.bf16.mxu0 0
    %2960 = vmatpush1.bf16.xpose.msra.mxu0 0
    %2961 = vmatprep.mubr.bf16.mxu0 0
    %2962 = vmatmul.mubr.bf16.gmra.mrb[0].mxu0 %v2924
    %v2963 = vpop.f32.mrb[0].mxu0
    %v2964 = vadd.f32 0.0, %v2963
    %v2965 = vpop.f32.mrb[0].mxu0
    %v2966 = vpop.f32.mrb[0].mxu0
    %v2967 = vpop.f32.mrb[0].mxu0
    %2968 = vdwg.mxu0
    %v2969 = vsel %vm819, %v2964, -inf
    %2970 = vmax.xlane.f32.xlu0 %v2969
    %v2971 = vpop.xlane.xlu0 %2970
    %v2972 = vsub.f32 %v2964, %v2971
    %v2973 = vmul.f32 %v2972, 1.442695
    %v2974 = vpow.pop %v2973
    %v2975 = vsel %vm819, %v2974, 0.0
    %2976 = vadd.xlane.f32.xlu0 %v2975
    %v2977 = vpop.xlane.xlu0 %2976
    %v2978 = vrcp.pop %v2977
    %v2979 = vmul.f32 %v2974, %v2978
    %v2980 = vpack.c.bf16 %v2979, %v2979
    %2981 = vrot.lane.b32.xlu0 %v2871, 112
    %v2982 = vpop.permute.xlu0 %2981
    %v2984 = vsel %vm832, %v2980, 0
    %v2987 = vand.u32 %v2982, %v839
    %2989 = vmatprep.subr.bf16.mxu0 0
    %2990 = vmatpush1.bf16.msra.mxu0 %v2987
    %2991 = vmatprep.subr.bf16.mxu0 0
    %2992 = vmatpush1.bf16.msra.mxu0 0
    %2993 = vmatprep.subr.bf16.mxu0 0
    %2994 = vmatpush1.bf16.msra.mxu0 0
    %2995 = vmatprep.subr.bf16.mxu0 0
    %2996 = vmatpush1.bf16.msra.mxu0 0
    %2997 = vmatprep.subr.bf16.mxu0 0
    %2998 = vmatpush1.bf16.msra.mxu0 0
    %2999 = vmatprep.subr.bf16.mxu0 0
    %3000 = vmatpush1.bf16.msra.mxu0 0
    %3001 = vmatprep.subr.bf16.mxu0 0
    %3002 = vmatpush1.bf16.msra.mxu0 0
    %3003 = vmatprep.subr.bf16.mxu0 0
    %3004 = vmatpush1.bf16.msra.mxu0 0
    %3005 = vmatprep.subr.bf16.mxu0 0
    %3006 = vmatpush1.bf16.msra.mxu0 0
    %3007 = vmatprep.subr.bf16.mxu0 0
    %3008 = vmatpush1.bf16.msra.mxu0 0
    %3009 = vmatprep.subr.bf16.mxu0 0
    %3010 = vmatpush1.bf16.msra.mxu0 0
    %3011 = vmatprep.subr.bf16.mxu0 0
    %3012 = vmatpush1.bf16.msra.mxu0 0
    %3013 = vmatprep.subr.bf16.mxu0 0
    %3014 = vmatpush1.bf16.msra.mxu0 0
    %3015 = vmatprep.subr.bf16.mxu0 0
    %3016 = vmatpush1.bf16.msra.mxu0 0
    %3017 = vmatprep.subr.bf16.mxu0 0
    %3018 = vmatpush1.bf16.msra.mxu0 0
    %3019 = vmatprep.subr.bf16.mxu0 0
    %3020 = vmatpush1.bf16.msra.mxu0 0
    %3021 = vmatprep.mubr.bf16.mxu0 0
    %3022 = vmatmul.mubr.bf16.gmra.mrb[0].mxu0 %v2984
    %v3023 = vpop.f32.mrb[0].mxu0
    %v3024 = vadd.f32 0.0, %v3023
    %v3025 = vpop.f32.mrb[0].mxu0
    %v3026 = vpop.f32.mrb[0].mxu0
    %v3027 = vpop.f32.mrb[0].mxu0
    %3028 = vdwg.mxu0
    %3030 = vrot.lane.b32.xlu0 %v3024, 16
    %v3031 = vpop.permute.xlu0 %3030
    %3033 = vst.msk [vmem:[#allocation2 + $0x5] sm:$0x1f] %vm1001, %v3031
    %3034 = vrot.lane.b32.xlu0 %v2795, 96
    %v3035 = vpop.permute.xlu0 %3034
    %3036 = vrot.lane.b32.xlu0 %v2803, 32
    %v3037 = vpop.permute.xlu0 %3036
    %v3039 = vsel %vm772, %v3035, 0
    %v3042 = vsel %vm772, %v3037, 0
    %3044 = vmatprep.subr.bf16.mxu0 0
    %3045 = vmatpush1.bf16.xpose.msra.mxu0 %v3042
    %3046 = vmatprep.subr.bf16.mxu0 0
    %3047 = vmatpush1.bf16.xpose.msra.mxu0 0
    %3048 = vmatprep.subr.bf16.mxu0 0
    %3049 = vmatpush1.bf16.xpose.msra.mxu0 0
    %3050 = vmatprep.subr.bf16.mxu0 0
    %3051 = vmatpush1.bf16.xpose.msra.mxu0 0
    %3052 = vmatprep.subr.bf16.mxu0 0
    %3053 = vmatpush1.bf16.xpose.msra.mxu0 0
    %3054 = vmatprep.subr.bf16.mxu0 0
    %3055 = vmatpush1.bf16.xpose.msra.mxu0 0
    %3056 = vmatprep.subr.bf16.mxu0 0
    %3057 = vmatpush1.bf16.xpose.msra.mxu0 0
    %3058 = vmatprep.subr.bf16.mxu0 0
    %3059 = vmatpush1.bf16.xpose.msra.mxu0 0
    %3060 = vmatprep.subr.bf16.mxu0 0
    %3061 = vmatpush1.bf16.xpose.msra.mxu0 0
    %3062 = vmatprep.subr.bf16.mxu0 0
    %3063 = vmatpush1.bf16.xpose.msra.mxu0 0
    %3064 = vmatprep.subr.bf16.mxu0 0
    %3065 = vmatpush1.bf16.xpose.msra.mxu0 0
    %3066 = vmatprep.subr.bf16.mxu0 0
    %3067 = vmatpush1.bf16.xpose.msra.mxu0 0
    %3068 = vmatprep.subr.bf16.mxu0 0
    %3069 = vmatpush1.bf16.xpose.msra.mxu0 0
    %3070 = vmatprep.subr.bf16.mxu0 0
    %3071 = vmatpush1.bf16.xpose.msra.mxu0 0
    %3072 = vmatprep.subr.bf16.mxu0 0
    %3073 = vmatpush1.bf16.xpose.msra.mxu0 0
    %3074 = vmatprep.subr.bf16.mxu0 0
    %3075 = vmatpush1.bf16.xpose.msra.mxu0 0
    %3076 = vmatprep.mubr.bf16.mxu0 0
    %3077 = vmatmul.mubr.bf16.gmra.mrb[0].mxu0 %v3039
    %v3078 = vpop.f32.mrb[0].mxu0
    %v3079 = vadd.f32 0.0, %v3078
    %v3080 = vpop.f32.mrb[0].mxu0
    %v3081 = vpop.f32.mrb[0].mxu0
    %v3082 = vpop.f32.mrb[0].mxu0
    %3083 = vdwg.mxu0
    %v3084 = vsel %vm819, %v3079, -inf
    %3085 = vmax.xlane.f32.xlu0 %v3084
    %v3086 = vpop.xlane.xlu0 %3085
    %v3087 = vsub.f32 %v3079, %v3086
    %v3088 = vmul.f32 %v3087, 1.442695
    %v3089 = vpow.pop %v3088
    %v3090 = vsel %vm819, %v3089, 0.0
    %3091 = vadd.xlane.f32.xlu0 %v3090
    %v3092 = vpop.xlane.xlu0 %3091
    %v3093 = vrcp.pop %v3092
    %v3094 = vmul.f32 %v3089, %v3093
    %v3095 = vpack.c.bf16 %v3094, %v3094
    %3096 = vrot.lane.b32.xlu0 %v2871, 96
    %v3097 = vpop.permute.xlu0 %3096
    %v3099 = vsel %vm832, %v3095, 0
    %v3102 = vand.u32 %v3097, %v839
    %3104 = vmatprep.subr.bf16.mxu0 0
    %3105 = vmatpush1.bf16.msra.mxu0 %v3102
    %3106 = vmatprep.subr.bf16.mxu0 0
    %3107 = vmatpush1.bf16.msra.mxu0 0
    %3108 = vmatprep.subr.bf16.mxu0 0
    %3109 = vmatpush1.bf16.msra.mxu0 0
    %3110 = vmatprep.subr.bf16.mxu0 0
    %3111 = vmatpush1.bf16.msra.mxu0 0
    %3112 = vmatprep.subr.bf16.mxu0 0
    %3113 = vmatpush1.bf16.msra.mxu0 0
    %3114 = vmatprep.subr.bf16.mxu0 0
    %3115 = vmatpush1.bf16.msra.mxu0 0
    %3116 = vmatprep.subr.bf16.mxu0 0
    %3117 = vmatpush1.bf16.msra.mxu0 0
    %3118 = vmatprep.subr.bf16.mxu0 0
    %3119 = vmatpush1.bf16.msra.mxu0 0
    %3120 = vmatprep.subr.bf16.mxu0 0
    %3121 = vmatpush1.bf16.msra.mxu0 0
    %3122 = vmatprep.subr.bf16.mxu0 0
    %3123 = vmatpush1.bf16.msra.mxu0 0
    %3124 = vmatprep.subr.bf16.mxu0 0
    %3125 = vmatpush1.bf16.msra.mxu0 0
    %3126 = vmatprep.subr.bf16.mxu0 0
    %3127 = vmatpush1.bf16.msra.mxu0 0
    %3128 = vmatprep.subr.bf16.mxu0 0
    %3129 = vmatpush1.bf16.msra.mxu0 0
    %3130 = vmatprep.subr.bf16.mxu0 0
    %3131 = vmatpush1.bf16.msra.mxu0 0
    %3132 = vmatprep.subr.bf16.mxu0 0
    %3133 = vmatpush1.bf16.msra.mxu0 0
    %3134 = vmatprep.subr.bf16.mxu0 0
    %3135 = vmatpush1.bf16.msra.mxu0 0
    %3136 = vmatprep.mubr.bf16.mxu0 0
    %3137 = vmatmul.mubr.bf16.gmra.mrb[0].mxu0 %v3099
    %v3138 = vpop.f32.mrb[0].mxu0
    %v3139 = vadd.f32 0.0, %v3138
    %v3140 = vpop.f32.mrb[0].mxu0
    %v3141 = vpop.f32.mrb[0].mxu0
    %v3142 = vpop.f32.mrb[0].mxu0
    %3143 = vdwg.mxu0
    %3145 = vrot.lane.b32.xlu0 %v3139, 32
    %v3146 = vpop.permute.xlu0 %3145
    %3148 = vst.msk [vmem:[#allocation2 + $0x5] sm:$0x1f] %vm1117, %v3146
    %3149 = vrot.lane.b32.xlu0 %v2795, 80
    %v3150 = vpop.permute.xlu0 %3149
    %3151 = vrot.lane.b32.xlu0 %v2803, 16
    %v3152 = vpop.permute.xlu0 %3151
    %v3154 = vsel %vm772, %v3150, 0
    %v3157 = vsel %vm772, %v3152, 0
    %3159 = vmatprep.subr.bf16.mxu0 0
    %3160 = vmatpush1.bf16.xpose.msra.mxu0 %v3157
    %3161 = vmatprep.subr.bf16.mxu0 0
    %3162 = vmatpush1.bf16.xpose.msra.mxu0 0
    %3163 = vmatprep.subr.bf16.mxu0 0
    %3164 = vmatpush1.bf16.xpose.msra.mxu0 0
    %3165 = vmatprep.subr.bf16.mxu0 0
    %3166 = vmatpush1.bf16.xpose.msra.mxu0 0
    %3167 = vmatprep.subr.bf16.mxu0 0
    %3168 = vmatpush1.bf16.xpose.msra.mxu0 0
    %3169 = vmatprep.subr.bf16.mxu0 0
    %3170 = vmatpush1.bf16.xpose.msra.mxu0 0
    %3171 = vmatprep.subr.bf16.mxu0 0
    %3172 = vmatpush1.bf16.xpose.msra.mxu0 0
    %3173 = vmatprep.subr.bf16.mxu0 0
    %3174 = vmatpush1.bf16.xpose.msra.mxu0 0
    %3175 = vmatprep.subr.bf16.mxu0 0
    %3176 = vmatpush1.bf16.xpose.msra.mxu0 0
    %3177 = vmatprep.subr.bf16.mxu0 0
    %3178 = vmatpush1.bf16.xpose.msra.mxu0 0
    %3179 = vmatprep.subr.bf16.mxu0 0
    %3180 = vmatpush1.bf16.xpose.msra.mxu0 0
    %3181 = vmatprep.subr.bf16.mxu0 0
    %3182 = vmatpush1.bf16.xpose.msra.mxu0 0
    %3183 = vmatprep.subr.bf16.mxu0 0
    %3184 = vmatpush1.bf16.xpose.msra.mxu0 0
    %3185 = vmatprep.subr.bf16.mxu0 0
    %3186 = vmatpush1.bf16.xpose.msra.mxu0 0
    %3187 = vmatprep.subr.bf16.mxu0 0
    %3188 = vmatpush1.bf16.xpose.msra.mxu0 0
    %3189 = vmatprep.subr.bf16.mxu0 0
    %3190 = vmatpush1.bf16.xpose.msra.mxu0 0
    %3191 = vmatprep.mubr.bf16.mxu0 0
    %3192 = vmatmul.mubr.bf16.gmra.mrb[0].mxu0 %v3154
    %v3193 = vpop.f32.mrb[0].mxu0
    %v3194 = vadd.f32 0.0, %v3193
    %v3195 = vpop.f32.mrb[0].mxu0
    %v3196 = vpop.f32.mrb[0].mxu0
    %v3197 = vpop.f32.mrb[0].mxu0
    %3198 = vdwg.mxu0
    %v3199 = vsel %vm819, %v3194, -inf
    %3200 = vmax.xlane.f32.xlu0 %v3199
    %v3201 = vpop.xlane.xlu0 %3200
    %v3202 = vsub.f32 %v3194, %v3201
    %v3203 = vmul.f32 %v3202, 1.442695
    %v3204 = vpow.pop %v3203
    %v3205 = vsel %vm819, %v3204, 0.0
    %3206 = vadd.xlane.f32.xlu0 %v3205
    %v3207 = vpop.xlane.xlu0 %3206
    %v3208 = vrcp.pop %v3207
    %v3209 = vmul.f32 %v3204, %v3208
    %v3210 = vpack.c.bf16 %v3209, %v3209
    %3211 = vrot.lane.b32.xlu0 %v2871, 80
    %v3212 = vpop.permute.xlu0 %3211
    %v3214 = vsel %vm832, %v3210, 0
    %v3217 = vand.u32 %v3212, %v839
    %3219 = vmatprep.subr.bf16.mxu0 0
    %3220 = vmatpush1.bf16.msra.mxu0 %v3217
    %3221 = vmatprep.subr.bf16.mxu0 0
    %3222 = vmatpush1.bf16.msra.mxu0 0
    %3223 = vmatprep.subr.bf16.mxu0 0
    %3224 = vmatpush1.bf16.msra.mxu0 0
    %3225 = vmatprep.subr.bf16.mxu0 0
    %3226 = vmatpush1.bf16.msra.mxu0 0
    %3227 = vmatprep.subr.bf16.mxu0 0
    %3228 = vmatpush1.bf16.msra.mxu0 0
    %3229 = vmatprep.subr.bf16.mxu0 0
    %3230 = vmatpush1.bf16.msra.mxu0 0
    %3231 = vmatprep.subr.bf16.mxu0 0
    %3232 = vmatpush1.bf16.msra.mxu0 0
    %3233 = vmatprep.subr.bf16.mxu0 0
    %3234 = vmatpush1.bf16.msra.mxu0 0
    %3235 = vmatprep.subr.bf16.mxu0 0
    %3236 = vmatpush1.bf16.msra.mxu0 0
    %3237 = vmatprep.subr.bf16.mxu0 0
    %3238 = vmatpush1.bf16.msra.mxu0 0
    %3239 = vmatprep.subr.bf16.mxu0 0
    %3240 = vmatpush1.bf16.msra.mxu0 0
    %3241 = vmatprep.subr.bf16.mxu0 0
    %3242 = vmatpush1.bf16.msra.mxu0 0
    %3243 = vmatprep.subr.bf16.mxu0 0
    %3244 = vmatpush1.bf16.msra.mxu0 0
    %3245 = vmatprep.subr.bf16.mxu0 0
    %3246 = vmatpush1.bf16.msra.mxu0 0
    %3247 = vmatprep.subr.bf16.mxu0 0
    %3248 = vmatpush1.bf16.msra.mxu0 0
    %3249 = vmatprep.subr.bf16.mxu0 0
    %3250 = vmatpush1.bf16.msra.mxu0 0
    %3251 = vmatprep.mubr.bf16.mxu0 0
    %3252 = vmatmul.mubr.bf16.gmra.mrb[0].mxu0 %v3214
    %v3253 = vpop.f32.mrb[0].mxu0
    %v3254 = vadd.f32 0.0, %v3253
    %v3255 = vpop.f32.mrb[0].mxu0
    %v3256 = vpop.f32.mrb[0].mxu0
    %v3257 = vpop.f32.mrb[0].mxu0
    %3258 = vdwg.mxu0
    %3260 = vrot.lane.b32.xlu0 %v3254, 48
    %v3261 = vpop.permute.xlu0 %3260
    %3263 = vst.msk [vmem:[#allocation2 + $0x5] sm:$0x1f] %vm1233, %v3261
    %v3264 = vld [vmem:[#allocation2] sm:$0xff]
    %v3265 = vld [vmem:[#allocation2 + $0x8] sm:$0x3]
    %v3266 = vpack.c.bf16 %v3265, %v3264
    %s3267 = scalar_lea.vmem %s7, 32
    %v3268 = vld [vmem:[%s3267] sm:$0xf]
    %v3269 = vld [vmem:[%s3267 + $0x4] sm:$0xf]
    %v3270 = vld [vmem:[%s3267 + $0x8] sm:$0xf]
    %v3271 = vld [vmem:[%s3267 + $0xc] sm:$0xf]
    %v3272 = vld [vmem:[%s3267 + $0x10] sm:$0xf]
    %v3273 = vld [vmem:[%s3267 + $0x14] sm:$0xf]
    %v3274 = vld [vmem:[%s3267 + $0x18] sm:$0xf]
    %v3275 = vld [vmem:[%s3267 + $0x1c] sm:$0xf]
    %s3276 = scalar_lea.vmem %s8, 1
    %v3277 = vld [vmem:[%s3276] sm:$0x1]
    %v3279 = vlaneseq
    %v3280 = vshrl.u32 %v3279, 7
    %v3281 = vsub.s32 0, %v3280
    %v3282 = vrot.slane %v3277, %v3281
    %v3292 = vunpack.c.l.b16 %v3268
    %v3293 = vunpack.c.l.b16 %v3269
    %v3294 = vunpack.c.l.b16 %v3270
    %v3295 = vunpack.c.l.b16 %v3271
    %v3296 = vunpack.c.l.b16 %v3272
    %v3297 = vunpack.c.l.b16 %v3273
    %v3298 = vunpack.c.l.b16 %v3274
    %v3299 = vunpack.c.l.b16 %v3275
    %v3300 = vpack.c.b16 %v3293, %v3292
    %v3301 = vpack.c.b16 %v3295, %v3294
    %v3302 = vpack.c.b16 %v3297, %v3296
    %v3303 = vpack.c.b16 %v3299, %v3298
    %v3309 = vsel %vm613, %v3266, 0
    %3311 = vmatprep.subr.bf16.mxu0 0
    %3312 = vmatpush1.bf16.msra.mxu0 %v3300
    %3313 = vmatprep.subr.bf16.mxu0 0
    %3314 = vmatpush1.bf16.msra.mxu0 %v3301
    %3315 = vmatprep.subr.bf16.mxu0 0
    %3316 = vmatpush1.bf16.msra.mxu0 %v3302
    %3317 = vmatprep.subr.bf16.mxu0 0
    %3318 = vmatpush1.bf16.msra.mxu0 %v3303
    %3319 = vmatprep.subr.bf16.mxu0 0
    %3320 = vmatpush1.bf16.msra.mxu0 0
    %3321 = vmatprep.subr.bf16.mxu0 0
    %3322 = vmatpush1.bf16.msra.mxu0 0
    %3323 = vmatprep.subr.bf16.mxu0 0
    %3324 = vmatpush1.bf16.msra.mxu0 0
    %3325 = vmatprep.subr.bf16.mxu0 0
    %3326 = vmatpush1.bf16.msra.mxu0 0
    %3327 = vmatprep.subr.bf16.mxu0 0
    %3328 = vmatpush1.bf16.msra.mxu0 0
    %3329 = vmatprep.subr.bf16.mxu0 0
    %3330 = vmatpush1.bf16.msra.mxu0 0
    %3331 = vmatprep.subr.bf16.mxu0 0
    %3332 = vmatpush1.bf16.msra.mxu0 0
    %3333 = vmatprep.subr.bf16.mxu0 0
    %3334 = vmatpush1.bf16.msra.mxu0 0
    %3335 = vmatprep.subr.bf16.mxu0 0
    %3336 = vmatpush1.bf16.msra.mxu0 0
    %3337 = vmatprep.subr.bf16.mxu0 0
    %3338 = vmatpush1.bf16.msra.mxu0 0
    %3339 = vmatprep.subr.bf16.mxu0 0
    %3340 = vmatpush1.bf16.msra.mxu0 0
    %3341 = vmatprep.subr.bf16.mxu0 0
    %3342 = vmatpush1.bf16.msra.mxu0 0
    %3343 = vmatprep.mubr.bf16.mxu0 0
    %3344 = vmatmul.mubr.bf16.gmra.mrb[0].mxu0 %v3309
    %v3345 = vpop.f32.mrb[0].mxu0
    %v3346 = vadd.f32 %v3282, %v3345
    %v3347 = vpop.f32.mrb[0].mxu0
    %v3348 = vpop.f32.mrb[0].mxu0
    %v3349 = vadd.f32 %v3282, %v3348
    %v3350 = vpop.f32.mrb[0].mxu0
    %3351 = vdwg.mxu0
    %v3352 = vadd.f32 %v2168, %v3346
    %v3353 = vadd.f32 %v2169, %v3349
    %s3354 = scalar_lea.vmem %s9, 1
    %v3355 = vld [vmem:[%s3354] sm:$0x1]
    %s3356 = scalar_lea.vmem %s10, 1
    %v3357 = vld [vmem:[%s3356] sm:$0x1]
    %v3358 = vsel %vm613, %v3352, 0.0
    %3359 = vadd.xlane.f32.xlu0 %v3358
    %v3360 = vpop.xlane.xlu0 %3359
    %v3361 = vsel %vm617, %v3353, 0.0
    %3362 = vadd.xlane.f32.xlu0 %v3361
    %v3363 = vpop.xlane.xlu0 %3362
    %v3364 = vmul.f32 %v3360, %v621
    %v3365 = vmul.f32 %v3363, %v621
    %v3366 = vsub.f32 %v3352, %v3364
    %v3367 = vsub.f32 %v3353, %v3365
    %v3368 = vmul.f32 %v3366, %v3366
    %v3369 = vmul.f32 %v3367, %v3367
    %v3370 = vsel %vm613, %v3368, 0.0
    %3371 = vadd.xlane.f32.xlu0 %v3370
    %v3372 = vpop.xlane.xlu0 %3371
    %v3373 = vsel %vm617, %v3369, 0.0
    %3374 = vadd.xlane.f32.xlu0 %v3373
    %v3375 = vpop.xlane.xlu0 %3374
    %v3376 = vmul.f32 %v3372, %v621
    %v3377 = vmul.f32 %v3375, %v621
    %v3378 = vadd.f32 %v3376, 1e-06
    %v3379 = vadd.f32 %v3377, 1e-06
    %v3380 = vrsqrt.pop %v3378
    %v3381 = vrsqrt.pop %v3379
    %v3382 = vmul.f32 %v3366, %v3380
    %v3383 = vmul.f32 %v3367, %v3381
    %v3385 = vlaneseq
    %v3386 = vshrl.u32 %v3385, 7
    %v3387 = vsub.s32 0, %v3386
    %v3388 = vrot.slane %v3355, %v3387
    %v3390 = vmul.f32 %v3382, %v3388
    %v3391 = vmul.f32 %v3383, %v3388
    %v3393 = vlaneseq
    %v3394 = vshrl.u32 %v3393, 7
    %v3395 = vsub.s32 0, %v3394
    %v3396 = vrot.slane %v3357, %v3395
    %v3398 = vadd.f32 %v3390, %v3396
    %v3399 = vadd.f32 %v3391, %v3396
    %v3400 = vpack.c.bf16 %v3399, %v3398
    %s3401 = scalar_lea.vmem %s11, 64
    %v3402 = vld [vmem:[%s3401] sm:$0xff]
    %v3403 = vld [vmem:[%s3401 + $0x8] sm:$0xff]
    %v3404 = vld [vmem:[%s3401 + $0x10] sm:$0xff]
    %v3405 = vld [vmem:[%s3401 + $0x18] sm:$0xff]
    %v3406 = vld [vmem:[%s3401 + $0x20] sm:$0xff]
    %v3407 = vld [vmem:[%s3401 + $0x28] sm:$0xff]
    %v3408 = vld [vmem:[%s3401 + $0x30] sm:$0xff]
    %v3409 = vld [vmem:[%s3401 + $0x38] sm:$0xff]
    %s3410 = scalar_lea.vmem %s12, 2
    %v3411 = vld [vmem:[%s3410] sm:$0x3]
    %v3413 = vlaneseq
    %v3414 = vshrl.u32 %v3413, 7
    %v3415 = vsub.s32 0, %v3414
    %v3416 = vrot.slane %v3411, %v3415
    %v3417 = vlaneseq
    %v3418 = vshrl.u32 %v3417, 7
    %v3419 = vsub.s32 1, %v3418
    %v3420 = vrot.slane %v3411, %v3419
    %v3431 = vunpack.c.l.b16 %v3402
    %v3432 = vunpack.c.h.b16 %v3402
    %v3433 = vunpack.c.l.b16 %v3403
    %v3434 = vunpack.c.h.b16 %v3403
    %v3435 = vunpack.c.l.b16 %v3404
    %v3436 = vunpack.c.h.b16 %v3404
    %v3437 = vunpack.c.l.b16 %v3405
    %v3438 = vunpack.c.h.b16 %v3405
    %v3439 = vunpack.c.l.b16 %v3406
    %v3440 = vunpack.c.h.b16 %v3406
    %v3441 = vunpack.c.l.b16 %v3407
    %v3442 = vunpack.c.h.b16 %v3407
    %v3443 = vunpack.c.l.b16 %v3408
    %v3444 = vunpack.c.h.b16 %v3408
    %v3445 = vunpack.c.l.b16 %v3409
    %v3446 = vunpack.c.h.b16 %v3409
    %v3447 = vpack.c.b16 %v3433, %v3431
    %v3448 = vpack.c.b16 %v3434, %v3432
    %v3449 = vpack.c.b16 %v3437, %v3435
    %v3450 = vpack.c.b16 %v3438, %v3436
    %v3451 = vpack.c.b16 %v3441, %v3439
    %v3452 = vpack.c.b16 %v3442, %v3440
    %v3453 = vpack.c.b16 %v3445, %v3443
    %v3454 = vpack.c.b16 %v3446, %v3444
    %v3464 = vsel %vm613, %v3400, 0
    %3466 = vmatprep.subr.bf16.mxu0 %v3448
    %3467 = vmatpush1.bf16.msra.mxu0 %v3447
    %3468 = vmatprep.subr.bf16.mxu0 %v3450
    %3469 = vmatpush1.bf16.msra.mxu0 %v3449
    %3470 = vmatprep.subr.bf16.mxu0 %v3452
    %3471 = vmatpush1.bf16.msra.mxu0 %v3451
    %3472 = vmatprep.subr.bf16.mxu0 %v3454
    %3473 = vmatpush1.bf16.msra.mxu0 %v3453
    %3474 = vmatprep.subr.bf16.mxu0 0
    %3475 = vmatpush1.bf16.msra.mxu0 0
    %3476 = vmatprep.subr.bf16.mxu0 0
    %3477 = vmatpush1.bf16.msra.mxu0 0
    %3478 = vmatprep.subr.bf16.mxu0 0
    %3479 = vmatpush1.bf16.msra.mxu0 0
    %3480 = vmatprep.subr.bf16.mxu0 0
    %3481 = vmatpush1.bf16.msra.mxu0 0
    %3482 = vmatprep.subr.bf16.mxu0 0
    %3483 = vmatpush1.bf16.msra.mxu0 0
    %3484 = vmatprep.subr.bf16.mxu0 0
    %3485 = vmatpush1.bf16.msra.mxu0 0
    %3486 = vmatprep.subr.bf16.mxu0 0
    %3487 = vmatpush1.bf16.msra.mxu0 0
    %3488 = vmatprep.subr.bf16.mxu0 0
    %3489 = vmatpush1.bf16.msra.mxu0 0
    %3490 = vmatprep.subr.bf16.mxu0 0
    %3491 = vmatpush1.bf16.msra.mxu0 0
    %3492 = vmatprep.subr.bf16.mxu0 0
    %3493 = vmatpush1.bf16.msra.mxu0 0
    %3494 = vmatprep.subr.bf16.mxu0 0
    %3495 = vmatpush1.bf16.msra.mxu0 0
    %3496 = vmatprep.subr.bf16.mxu0 0
    %3497 = vmatpush1.bf16.msra.mxu0 0
    %3498 = vmatprep.mubr.bf16.mxu0 0
    %3499 = vmatmul.mubr.bf16.gmra.mrb[0].mxu0 %v3464
    %v3500 = vpop.f32.mrb[0].mxu0
    %v3501 = vadd.f32 %v3416, %v3500
    %v3502 = vpop.f32.mrb[0].mxu0
    %v3503 = vadd.f32 %v3420, %v3502
    %v3504 = vpop.f32.mrb[0].mxu0
    %v3505 = vadd.f32 %v3416, %v3504
    %v3506 = vpop.f32.mrb[0].mxu0
    %v3507 = vadd.f32 %v3420, %v3506
    %3508 = vdwg.mxu0
    %v3509 = vmul.f32 %v3501, %v3501
    %v3510 = vmul.f32 %v3503, %v3503
    %v3511 = vmul.f32 %v3505, %v3505
    %v3512 = vmul.f32 %v3507, %v3507
    %v3513 = vmul.f32 %v3501, %v3509
    %v3514 = vmul.f32 %v3503, %v3510
    %v3515 = vmul.f32 %v3505, %v3511
    %v3516 = vmul.f32 %v3507, %v3512
    %v3517 = vmul.f32 %v3513, 0.044715
    %v3518 = vmul.f32 %v3514, 0.044715
    %v3519 = vmul.f32 %v3515, 0.044715
    %v3520 = vmul.f32 %v3516, 0.044715
    %v3521 = vadd.f32 %v3501, %v3517
    %v3522 = vadd.f32 %v3503, %v3518
    %v3523 = vadd.f32 %v3505, %v3519
    %v3524 = vadd.f32 %v3507, %v3520
    %v3525 = vmul.f32 %v3521, 0.7978846
    %v3526 = vmul.f32 %v3522, 0.7978846
    %v3527 = vmul.f32 %v3523, 0.7978846
    %v3528 = vmul.f32 %v3524, 0.7978846
    %v3529 = vtanh.pop %v3525
    %v3530 = vtanh.pop %v3526
    %v3531 = vtanh.pop %v3527
    %v3532 = vtanh.pop %v3528
    %v3533 = vadd.f32 %v3529, 1.0
    %v3534 = vadd.f32 %v3530, 1.0
    %v3535 = vadd.f32 %v3531, 1.0
    %v3536 = vadd.f32 %v3532, 1.0
    %v3537 = vmul.f32 %v3533, 0.5
    %v3538 = vmul.f32 %v3534, 0.5
    %v3539 = vmul.f32 %v3535, 0.5
    %v3540 = vmul.f32 %v3536, 0.5
    %v3541 = vmul.f32 %v3501, %v3537
    %v3542 = vmul.f32 %v3503, %v3538
    %v3543 = vmul.f32 %v3505, %v3539
    %v3544 = vmul.f32 %v3507, %v3540
    %v3545 = vpack.c.bf16 %v3543, %v3541
    %v3546 = vpack.c.bf16 %v3544, %v3542
    %s3547 = scalar_lea.vmem %s13, 128
    %v3548 = vld [vmem:[%s3547] sm:$0xf]
    %v3549 = vld [vmem:[%s3547 + $0x4] sm:$0xf]
    %v3550 = vld [vmem:[%s3547 + $0x8] sm:$0xf]
    %v3551 = vld [vmem:[%s3547 + $0xc] sm:$0xf]
    %v3552 = vld [vmem:[%s3547 + $0x10] sm:$0xf]
    %v3553 = vld [vmem:[%s3547 + $0x14] sm:$0xf]
    %v3554 = vld [vmem:[%s3547 + $0x18] sm:$0xf]
    %v3555 = vld [vmem:[%s3547 + $0x1c] sm:$0xf]
    %v3556 = vld [vmem:[%s3547 + $0x20] sm:$0xf]
    %v3557 = vld [vmem:[%s3547 + $0x24] sm:$0xf]
    %v3558 = vld [vmem:[%s3547 + $0x28] sm:$0xf]
    %v3559 = vld [vmem:[%s3547 + $0x2c] sm:$0xf]
    %v3560 = vld [vmem:[%s3547 + $0x30] sm:$0xf]
    %v3561 = vld [vmem:[%s3547 + $0x34] sm:$0xf]
    %v3562 = vld [vmem:[%s3547 + $0x38] sm:$0xf]
    %v3563 = vld [vmem:[%s3547 + $0x3c] sm:$0xf]
    %v3564 = vld [vmem:[%s3547 + $0x40] sm:$0xf]
    %v3565 = vld [vmem:[%s3547 + $0x44] sm:$0xf]
    %v3566 = vld [vmem:[%s3547 + $0x48] sm:$0xf]
    %v3567 = vld [vmem:[%s3547 + $0x4c] sm:$0xf]
    %v3568 = vld [vmem:[%s3547 + $0x50] sm:$0xf]
    %v3569 = vld [vmem:[%s3547 + $0x54] sm:$0xf]
    %v3570 = vld [vmem:[%s3547 + $0x58] sm:$0xf]
    %v3571 = vld [vmem:[%s3547 + $0x5c] sm:$0xf]
    %v3572 = vld [vmem:[%s3547 + $0x60] sm:$0xf]
    %v3573 = vld [vmem:[%s3547 + $0x64] sm:$0xf]
    %v3574 = vld [vmem:[%s3547 + $0x68] sm:$0xf]
    %v3575 = vld [vmem:[%s3547 + $0x6c] sm:$0xf]
    %v3576 = vld [vmem:[%s3547 + $0x70] sm:$0xf]
    %v3577 = vld [vmem:[%s3547 + $0x74] sm:$0xf]
    %v3578 = vld [vmem:[%s3547 + $0x78] sm:$0xf]
    %v3579 = vld [vmem:[%s3547 + $0x7c] sm:$0xf]
    %s3580 = scalar_lea.vmem %s14, 1
    %v3581 = vld [vmem:[%s3580] sm:$0x1]
    %v3583 = vlaneseq
    %v3584 = vshrl.u32 %v3583, 7
    %v3585 = vsub.s32 0, %v3584
    %v3586 = vrot.slane %v3581, %v3585
    %v3620 = vunpack.c.l.b16 %v3548
    %v3621 = vunpack.c.l.b16 %v3549
    %v3622 = vunpack.c.l.b16 %v3550
    %v3623 = vunpack.c.l.b16 %v3551
    %v3624 = vunpack.c.l.b16 %v3552
    %v3625 = vunpack.c.l.b16 %v3553
    %v3626 = vunpack.c.l.b16 %v3554
    %v3627 = vunpack.c.l.b16 %v3555
    %v3628 = vunpack.c.l.b16 %v3556
    %v3629 = vunpack.c.l.b16 %v3557
    %v3630 = vunpack.c.l.b16 %v3558
    %v3631 = vunpack.c.l.b16 %v3559
    %v3632 = vunpack.c.l.b16 %v3560
    %v3633 = vunpack.c.l.b16 %v3561
    %v3634 = vunpack.c.l.b16 %v3562
    %v3635 = vunpack.c.l.b16 %v3563
    %v3636 = vunpack.c.l.b16 %v3564
    %v3637 = vunpack.c.l.b16 %v3565
    %v3638 = vunpack.c.l.b16 %v3566
    %v3639 = vunpack.c.l.b16 %v3567
    %v3640 = vunpack.c.l.b16 %v3568
    %v3641 = vunpack.c.l.b16 %v3569
    %v3642 = vunpack.c.l.b16 %v3570
    %v3643 = vunpack.c.l.b16 %v3571
    %v3644 = vunpack.c.l.b16 %v3572
    %v3645 = vunpack.c.l.b16 %v3573
    %v3646 = vunpack.c.l.b16 %v3574
    %v3647 = vunpack.c.l.b16 %v3575
    %v3648 = vunpack.c.l.b16 %v3576
    %v3649 = vunpack.c.l.b16 %v3577
    %v3650 = vunpack.c.l.b16 %v3578
    %v3651 = vunpack.c.l.b16 %v3579
    %v3652 = vpack.c.b16 %v3621, %v3620
    %v3653 = vpack.c.b16 %v3623, %v3622
    %v3654 = vpack.c.b16 %v3625, %v3624
    %v3655 = vpack.c.b16 %v3627, %v3626
    %v3656 = vpack.c.b16 %v3629, %v3628
    %v3657 = vpack.c.b16 %v3631, %v3630
    %v3658 = vpack.c.b16 %v3633, %v3632
    %v3659 = vpack.c.b16 %v3635, %v3634
    %v3660 = vpack.c.b16 %v3637, %v3636
    %v3661 = vpack.c.b16 %v3639, %v3638
    %v3662 = vpack.c.b16 %v3641, %v3640
    %v3663 = vpack.c.b16 %v3643, %v3642
    %v3664 = vpack.c.b16 %v3645, %v3644
    %v3665 = vpack.c.b16 %v3647, %v3646
    %v3666 = vpack.c.b16 %v3649, %v3648
    %v3667 = vpack.c.b16 %v3651, %v3650
    %3684 = vmatprep.subr.bf16.mxu0 0
    %3685 = vmatpush1.bf16.msra.mxu0 %v3652
    %3686 = vmatprep.subr.bf16.mxu0 0
    %3687 = vmatpush1.bf16.msra.mxu0 %v3653
    %3688 = vmatprep.subr.bf16.mxu0 0
    %3689 = vmatpush1.bf16.msra.mxu0 %v3654
    %3690 = vmatprep.subr.bf16.mxu0 0
    %3691 = vmatpush1.bf16.msra.mxu0 %v3655
    %3692 = vmatprep.subr.bf16.mxu0 0
    %3693 = vmatpush1.bf16.msra.mxu0 %v3656
    %3694 = vmatprep.subr.bf16.mxu0 0
    %3695 = vmatpush1.bf16.msra.mxu0 %v3657
    %3696 = vmatprep.subr.bf16.mxu0 0
    %3697 = vmatpush1.bf16.msra.mxu0 %v3658
    %3698 = vmatprep.subr.bf16.mxu0 0
    %3699 = vmatpush1.bf16.msra.mxu0 %v3659
    %3700 = vmatprep.subr.bf16.mxu0 0
    %3701 = vmatpush1.bf16.msra.mxu0 %v3660
    %3702 = vmatprep.subr.bf16.mxu0 0
    %3703 = vmatpush1.bf16.msra.mxu0 %v3661
    %3704 = vmatprep.subr.bf16.mxu0 0
    %3705 = vmatpush1.bf16.msra.mxu0 %v3662
    %3706 = vmatprep.subr.bf16.mxu0 0
    %3707 = vmatpush1.bf16.msra.mxu0 %v3663
    %3708 = vmatprep.subr.bf16.mxu0 0
    %3709 = vmatpush1.bf16.msra.mxu0 %v3664
    %3710 = vmatprep.subr.bf16.mxu0 0
    %3711 = vmatpush1.bf16.msra.mxu0 %v3665
    %3712 = vmatprep.subr.bf16.mxu0 0
    %3713 = vmatpush1.bf16.msra.mxu0 %v3666
    %3714 = vmatprep.subr.bf16.mxu0 0
    %3715 = vmatpush1.bf16.msra.mxu0 %v3667
    %3716 = vmatprep.mubr.bf16.mxu0 %v3546
    %3717 = vmatmul.mubr.bf16.gmra.mrb[0].mxu0 %v3545
    %v3718 = vpop.f32.mrb[0].mxu0
    %v3719 = vadd.f32 %v3586, %v3718
    %v3720 = vpop.f32.mrb[0].mxu0
    %v3721 = vpop.f32.mrb[0].mxu0
    %v3722 = vpop.f32.mrb[0].mxu0
    %3723 = vdwg.mxu0
    %v3724 = vadd.f32 %v3352, %v3719
    %v3725 = vld [vmem:[%s15] sm:$0x1]
    %v3726 = vld [vmem:[%s16] sm:$0x1]
    %vm3727 = vcmask 516096
    %v3728 = vsel %vm3727, %v3724, 0.0
    %3729 = vadd.xlane.f32.xlu0 %v3728
    %v3730 = vpop.xlane.xlu0 %3729
    %v3731 = vmul.f32 %v3730, %v621
    %v3732 = vsub.f32 %v3724, %v3731
    %v3733 = vmul.f32 %v3732, %v3732
    %v3734 = vsel %vm3727, %v3733, 0.0
    %3735 = vadd.xlane.f32.xlu0 %v3734
    %v3736 = vpop.xlane.xlu0 %3735
    %v3737 = vmul.f32 %v3736, %v621
    %v3738 = vadd.f32 %v3737, 1e-06
    %v3739 = vrsqrt.pop %v3738
    %v3740 = vmul.f32 %v3732, %v3739
    %v3741 = vmul.f32 %v3740, %v3725
    %v3742 = vadd.f32 %v3741, %v3726
    %3743 = vst.msk [vmem:[#allocation3] sm:$0x1] %vm3727, %v3742
    %v3744 = vld [vmem:[%s17] sm:$0xff]
    %v3745 = vld [vmem:[%s17 + $0x8] sm:$0xff]
    %v3746 = vld [vmem:[%s17 + $0x10] sm:$0xff]
    %v3747 = vld [vmem:[%s17 + $0x18] sm:$0xff]
    %v3748 = vld [vmem:[%s17 + $0x20] sm:$0xff]
    %v3749 = vld [vmem:[%s17 + $0x28] sm:$0xff]
    %v3750 = vld [vmem:[%s17 + $0x30] sm:$0xff]
    %v3751 = vld [vmem:[%s17 + $0x38] sm:$0xff]
    %v3752 = vld [vmem:[%s18] sm:$0x1]
    %v3754 = vsel %vm613, %v3742, 0
    %3756 = vmatprep.subr.mxu0 0.0
    %3757 = vmatpush1.msra.mxu0 %v3744
    %3758 = vmatprep.subr.mxu0 0.0
    %3759 = vmatpush1.msra.mxu0 %v3745
    %3760 = vmatprep.subr.mxu0 0.0
    %3761 = vmatpush1.msra.mxu0 %v3746
    %3762 = vmatprep.subr.mxu0 0.0
    %3763 = vmatpush1.msra.mxu0 %v3747
    %3764 = vmatprep.subr.mxu0 0.0
    %3765 = vmatpush1.msra.mxu0 %v3748
    %3766 = vmatprep.subr.mxu0 0.0
    %3767 = vmatpush1.msra.mxu0 %v3749
    %3768 = vmatprep.subr.mxu0 0.0
    %3769 = vmatpush1.msra.mxu0 %v3750
    %3770 = vmatprep.subr.mxu0 0.0
    %3771 = vmatpush1.msra.mxu0 %v3751
    %3772 = vmatprep.subr.mxu0 0.0
    %3773 = vmatpush1.msra.mxu0 0.0
    %3774 = vmatprep.subr.mxu0 0.0
    %3775 = vmatpush1.msra.mxu0 0.0
    %3776 = vmatprep.subr.mxu0 0.0
    %3777 = vmatpush1.msra.mxu0 0.0
    %3778 = vmatprep.subr.mxu0 0.0
    %3779 = vmatpush1.msra.mxu0 0.0
    %3780 = vmatprep.subr.mxu0 0.0
    %3781 = vmatpush1.msra.mxu0 0.0
    %3782 = vmatprep.subr.mxu0 0.0
    %3783 = vmatpush1.msra.mxu0 0.0
    %3784 = vmatprep.subr.mxu0 0.0
    %3785 = vmatpush1.msra.mxu0 0.0
    %3786 = vmatprep.subr.mxu0 0.0
    %3787 = vmatpush1.msra.mxu0 0.0
    %3788 = vmatprep.subr.mxu0 0.0
    %3789 = vmatpush1.msra.mxu0 0.0
    %3790 = vmatprep.subr.mxu0 0.0
    %3791 = vmatpush1.msra.mxu0 0.0
    %3792 = vmatprep.subr.mxu0 0.0
    %3793 = vmatpush1.msra.mxu0 0.0
    %3794 = vmatprep.subr.mxu0 0.0
    %3795 = vmatpush1.msra.mxu0 0.0
    %3796 = vmatprep.subr.mxu0 0.0
    %3797 = vmatpush1.msra.mxu0 0.0
    %3798 = vmatprep.subr.mxu0 0.0
    %3799 = vmatpush1.msra.mxu0 0.0
    %3800 = vmatprep.subr.mxu0 0.0
    %3801 = vmatpush1.msra.mxu0 0.0
    %3802 = vmatprep.subr.mxu0 0.0
    %3803 = vmatpush1.msra.mxu0 0.0
    %3804 = vmatprep.subr.mxu0 0.0
    %3805 = vmatpush1.msra.mxu0 0.0
    %3806 = vmatprep.subr.mxu0 0.0
    %3807 = vmatpush1.msra.mxu0 0.0
    %3808 = vmatprep.subr.mxu0 0.0
    %3809 = vmatpush1.msra.mxu0 0.0
    %3810 = vmatprep.subr.mxu0 0.0
    %3811 = vmatpush1.msra.mxu0 0.0
    %3812 = vmatprep.subr.mxu0 0.0
    %3813 = vmatpush1.msra.mxu0 0.0
    %3814 = vmatprep.subr.mxu0 0.0
    %3815 = vmatpush1.msra.mxu0 0.0
    %3816 = vmatprep.subr.mxu0 0.0
    %3817 = vmatpush1.msra.mxu0 0.0
    %3818 = vmatprep.subr.mxu0 0.0
    %3819 = vmatpush1.msra.mxu0 0.0
    %3820 = vmatprep.mubr.f32.mxu0 0.0
    %3821 = vmatmul.mubr.f32.gmra.mrb[0].mxu0 %v3754
    %v3822 = vpop.f32.mrb[0].mxu0
    %v3823 = vadd.f32 %v3752, %v3822
    %v3824 = vpop.f32.mrb[0].mxu0
    %3825 = vdwg.mxu0
    %3826 = vst [vmem:[%s20] sm:$0x1] %v3823
    %v3827 = vld [vmem:[%s15] sm:$0x1]
    %v3828 = vld [vmem:[%s16] sm:$0x1]
    %vm3829 = vcmask 521221
    %v3830 = vsel %vm3829, %v3724, 0.0
    %3831 = vadd.xlane.f32.xlu0 %v3830
    %v3832 = vpop.xlane.xlu0 %3831
    %v3833 = vmul.f32 %v3832, %v621
    %v3834 = vsub.f32 %v3724, %v3833
    %v3835 = vmul.f32 %v3834, %v3834
    %v3836 = vsel %vm3829, %v3835, 0.0
    %3837 = vadd.xlane.f32.xlu0 %v3836
    %v3838 = vpop.xlane.xlu0 %3837
    %v3839 = vmul.f32 %v3838, %v621
    %v3840 = vadd.f32 %v3839, 1e-06
    %v3841 = vrsqrt.pop %v3840
    %v3842 = vmul.f32 %v3834, %v3841
    %v3844 = vlaneseq
    %v3845 = vshrl.u32 %v3844, 7
    %v3846 = vsub.s32 0, %v3845
    %v3847 = vrot.slane %v3827, %v3846
    %v3849 = vmul.f32 %v3842, %v3847
    %v3851 = vlaneseq
    %v3852 = vshrl.u32 %v3851, 7
    %v3853 = vsub.s32 0, %v3852
    %v3854 = vrot.slane %v3828, %v3853
    %v3856 = vadd.f32 %v3849, %v3854
    %3857 = vst.msk [vmem:[#allocation3 - $0x4] sm:$0x20] %vm3829, %v3856
    %v3858 = vld [vmem:[%s17] sm:$0xff]
    %v3859 = vld [vmem:[%s17 + $0x8] sm:$0xff]
    %v3860 = vld [vmem:[%s17 + $0x10] sm:$0xff]
    %v3861 = vld [vmem:[%s17 + $0x18] sm:$0xff]
    %v3862 = vld [vmem:[%s17 + $0x20] sm:$0xff]
    %v3863 = vld [vmem:[%s17 + $0x28] sm:$0xff]
    %v3864 = vld [vmem:[%s17 + $0x30] sm:$0xff]
    %v3865 = vld [vmem:[%s17 + $0x38] sm:$0xff]
    %v3866 = vld [vmem:[%s18] sm:$0x1]
    %v3868 = vrot.slane %v3856, 5
    %v3869 = vsel %vm613, %v3868, 0
    %3871 = vmatprep.subr.mxu0 0.0
    %3872 = vmatpush1.msra.mxu0 %v3858
    %3873 = vmatprep.subr.mxu0 0.0
    %3874 = vmatpush1.msra.mxu0 %v3859
    %3875 = vmatprep.subr.mxu0 0.0
    %3876 = vmatpush1.msra.mxu0 %v3860
    %3877 = vmatprep.subr.mxu0 0.0
    %3878 = vmatpush1.msra.mxu0 %v3861
    %3879 = vmatprep.subr.mxu0 0.0
    %3880 = vmatpush1.msra.mxu0 %v3862
    %3881 = vmatprep.subr.mxu0 0.0
    %3882 = vmatpush1.msra.mxu0 %v3863
    %3883 = vmatprep.subr.mxu0 0.0
    %3884 = vmatpush1.msra.mxu0 %v3864
    %3885 = vmatprep.subr.mxu0 0.0
    %3886 = vmatpush1.msra.mxu0 %v3865
    %3887 = vmatprep.subr.mxu0 0.0
    %3888 = vmatpush1.msra.mxu0 0.0
    %3889 = vmatprep.subr.mxu0 0.0
    %3890 = vmatpush1.msra.mxu0 0.0
    %3891 = vmatprep.subr.mxu0 0.0
    %3892 = vmatpush1.msra.mxu0 0.0
    %3893 = vmatprep.subr.mxu0 0.0
    %3894 = vmatpush1.msra.mxu0 0.0
    %3895 = vmatprep.subr.mxu0 0.0
    %3896 = vmatpush1.msra.mxu0 0.0
    %3897 = vmatprep.subr.mxu0 0.0
    %3898 = vmatpush1.msra.mxu0 0.0
    %3899 = vmatprep.subr.mxu0 0.0
    %3900 = vmatpush1.msra.mxu0 0.0
    %3901 = vmatprep.subr.mxu0 0.0
    %3902 = vmatpush1.msra.mxu0 0.0
    %3903 = vmatprep.subr.mxu0 0.0
    %3904 = vmatpush1.msra.mxu0 0.0
    %3905 = vmatprep.subr.mxu0 0.0
    %3906 = vmatpush1.msra.mxu0 0.0
    %3907 = vmatprep.subr.mxu0 0.0
    %3908 = vmatpush1.msra.mxu0 0.0
    %3909 = vmatprep.subr.mxu0 0.0
    %3910 = vmatpush1.msra.mxu0 0.0
    %3911 = vmatprep.subr.mxu0 0.0
    %3912 = vmatpush1.msra.mxu0 0.0
    %3913 = vmatprep.subr.mxu0 0.0
    %3914 = vmatpush1.msra.mxu0 0.0
    %3915 = vmatprep.subr.mxu0 0.0
    %3916 = vmatpush1.msra.mxu0 0.0
    %3917 = vmatprep.subr.mxu0 0.0
    %3918 = vmatpush1.msra.mxu0 0.0
    %3919 = vmatprep.subr.mxu0 0.0
    %3920 = vmatpush1.msra.mxu0 0.0
    %3921 = vmatprep.subr.mxu0 0.0
    %3922 = vmatpush1.msra.mxu0 0.0
    %3923 = vmatprep.subr.mxu0 0.0
    %3924 = vmatpush1.msra.mxu0 0.0
    %3925 = vmatprep.subr.mxu0 0.0
    %3926 = vmatpush1.msra.mxu0 0.0
    %3927 = vmatprep.subr.mxu0 0.0
    %3928 = vmatpush1.msra.mxu0 0.0
    %3929 = vmatprep.subr.mxu0 0.0
    %3930 = vmatpush1.msra.mxu0 0.0
    %3931 = vmatprep.subr.mxu0 0.0
    %3932 = vmatpush1.msra.mxu0 0.0
    %3933 = vmatprep.subr.mxu0 0.0
    %3934 = vmatpush1.msra.mxu0 0.0
    %3935 = vmatprep.mubr.f32.mxu0 0.0
    %3936 = vmatmul.mubr.f32.gmra.mrb[0].mxu0 %v3869
    %v3937 = vpop.f32.mrb[0].mxu0
    %v3938 = vadd.f32 %v3866, %v3937
    %v3939 = vpop.f32.mrb[0].mxu0
    %3940 = vdwg.mxu0
    %3941 = vst [vmem:[%s20 + $0x1] sm:$0x1] %v3938
    // Predicated region
    $region78: #{deit_forward.1} parent=1 // pred_check
      _
    $region79: #{deit_forward.1} parent=1 // pred_check_branch
      %3943 = sbr.rel (0) target = $region81
    $region80: #{deit_forward.1} parent=1 // pred_region
      %s3945 = ssub.s32 32, 32
      %3946 = vsyncadd [#allocation4], %s3945
      %s3948 = sshll.u32 [#allocation3], 4
      %s3949 = int_to_ptr.vmem [resolvable:$true] %s3948
      %3951 = dma.vmem_to_hbm [thread:$0]  %s3949, 32, %s19, [#allocation4]
    $region81: #{deit_forward.1} parent=1 // pred_fallthru
      _
    // Predicated region
    $region82: #{deit_forward.1} parent=1 // pred_check
      _
    $region83: #{deit_forward.1} parent=1 // pred_check_branch
      %3953 = sbr.rel (0) target = $region85
    $region84: #{deit_forward.1} parent=1 // pred_region
      _
    $region85: #{deit_forward.1} parent=1 // pred_fallthru
      _
    // Predicated region
    $region86: #{deit_forward.1} parent=1 // pred_check
      _
    $region87: #{deit_forward.1} parent=1 // pred_check_branch
      %3955 = sbr.rel (0) target = $region89
    $region88: #{deit_forward.1} parent=1 // pred_region
      %3956 = dma.done [#allocation4], 32
    $region89: #{deit_forward.1} parent=1 // pred_fallthru
      _
    // Predicated region
    $region90: #{deit_forward.1} parent=1 // pred_check
      _
    $region91: #{deit_forward.1} parent=1 // pred_check_branch
      %3958 = sbr.rel (0) target = $region93
    $region92: #{deit_forward.1} parent=1 // pred_region
      _
    $region93: #{deit_forward.1} parent=1 // pred_fallthru
      _
    %3959 = vsyncpa [#allocation4], 1

</llo_original>
